<compile_context>
chip_gen: v7x
topology: tpu7x:2x2x1
jax: 0.10.0
libtpu: 0.0.40
codegen_flags: <defaults>
</compile_context>

<pallas_src>
import numpy as np
import jax
import jax.numpy as jnp
from jax.experimental import pallas as pl
from jax.experimental.pallas import tpu as pltpu


# ----------------------------------------------------------------------------
# Static "config.get_inds()" stand-in: AU -> center assignment.
# TODO(synk): config.get_inds() definition not provided; using a fixed
# deterministic center assignment with the same semantics.
CENTERS = np.array([0, 0, 1, 1, 1, 2, 3, 3], dtype=np.int32)
_, COUNTS = np.unique(CENTERS, return_counts=True)          # counts per center
COUNTS = COUNTS.astype(np.int32)                            # e.g. [2, 3, 1, 2]
N_CENTER = int(COUNTS.shape[0])                             # C
N_AU = int(COUNTS.sum())                                    # A (total AUs)

HIDDEN = 32          # transformer.d_model
ENC_SEQ = 16         # backbone encoder tokens (4x4 feature map)
IMG_C, IMG_HW = 3, 16
N_LMK = 68

LANE = 128                       # lane-dense packed-logit width per class
D_OUT = 2 * LANE                 # output slab: [class0 block | class1 block]
assert N_AU <= LANE


def _num_tensorcores():
    """v7x has 2 TensorCores per chip; v5e/v6e have 1."""
    try:
        kind = jax.devices()[0].device_kind.lower()
    except Exception:
        return 1
    return 2 if ("v7" in kind or "7x" in kind) else 1


# ----------------------------------------------------------------------------
# Fused Pallas kernel: (enc+pos) cross-attention + block-diag classifier + log_softmax
# ----------------------------------------------------------------------------
def _fused_audetr_kernel(q_ref, enc_ref, pos_ref, w_ref, b_ref, o_ref):
    """Fused transformer-stand-in + Classifier for block_b batch elements.

    q_ref:   (Bt, C, H)       decoder queries (one per AU center)
    enc_ref: (Bt, S, H)       encoder tokens (used as V; K = enc + pos)
    pos_ref: (S, H)           positional embedding (constant block index)
    w_ref:   (C*H, 2*LANE)    block-diagonal classifier weight (flattened rows)
    b_ref:   (1, 2*LANE)      packed classifier bias
    o_ref:   (Bt, 2*LANE)     packed log-probs: [:, :LANE]=class0, [:, LANE:]=class1
    """
    n_center = q_ref.shape[1]
    hidden = q_ref.shape[2]
    half = o_ref.shape[-1] // 2

    # ---- cross attention: softmax(Q (enc+pos)^T / sqrt(H)) enc -------------
    enc = enc_ref[...]                                               # (Bt, S, H)
    k = enc + pos_ref[...]                                           # fused k = enc + pos
    scale = 1.0 / float(np.sqrt(hidden))
    q = q_ref[...] * scale                                           # fold scale into Q
    s = jnp.einsum('bqd,bkd->bqk', q, k,
                   preferred_element_type=jnp.float32)               # (Bt, C, S)
    m = jnp.max(s, axis=-1, keepdims=True)
    p = jnp.exp(s - m)
    denom = jnp.sum(p, axis=-1, keepdims=True)
    p = p * pl.reciprocal(denom, approx=True)                        # EUP slot
    hs = jnp.einsum('bqk,bkd->bqd', p, enc,
                    preferred_element_type=jnp.float32)              # (Bt, C, H)

    # ---- classifier: single K = C*H = 128 MXU contraction -------------------
    # Flatten (Bt, C, H) -> (Bt, C*H) via a lane-concat (avoids an in-kernel
    # reshape/relayout), then one (Bt,128) @ (128,256) block-diagonal matmul.
    hs_flat = jnp.concatenate([hs[:, c, :] for c in range(n_center)], axis=-1)
    logits = jnp.dot(hs_flat, w_ref[...],
                     preferred_element_type=jnp.float32) + b_ref[...]  # (Bt, 2*LANE)

    # ---- paired log_softmax over (class0, class1) ---------------------------
    l0 = logits[:, :half]
    l1 = logits[:, half:]
    mx = jnp.maximum(l0, l1)
    lse = mx + jnp.log(jnp.exp(l0 - mx) + jnp.exp(l1 - mx))
    # two 128-lane-aligned, full-width stores (no masked partial stores)
    o_ref[:, :half] = l0 - lse
    o_ref[:, half:] = l1 - lse


def fused_attention_classifier(dec, enc, pos, w_flat, b_packed, *, block_b=None):
    """dec: (B,C,H), enc: (B,S,H), pos: (S,H), w: (C*H,2*LANE), b: (1,2*LANE)
    -> packed log-probs (B, 2*LANE)."""
    B, C, H = dec.shape
    S = enc.shape[1]
    D = w_flat.shape[-1]

    if block_b is None:
        # grid=1 on single-TC v5e/v6e; grid=2 parallel steps on dual-TC v7x.
        n_tc = _num_tensorcores()
        block_b = -(-B // n_tc)                       # ceil(B / n_tc)
    block_b = max(8, ((block_b + 7) // 8) * 8)        # sublane-friendly
    Bp = ((B + block_b - 1) // block_b) * block_b
    if Bp != B:                                       # pad batch to a multiple of block_b
        pad = ((0, Bp - B), (0, 0), (0, 0))
        dec = jnp.pad(dec, pad)
        enc = jnp.pad(enc, pad)

    packed = pl.pallas_call(
        _fused_audetr_kernel,
        out_shape=jax.ShapeDtypeStruct((Bp, D), jnp.float32),
        grid=(Bp // block_b,),
        in_specs=[
            pl.BlockSpec((block_b, C, H), lambda i: (i, 0, 0)),
            pl.BlockSpec((block_b, S, H), lambda i: (i, 0, 0)),
            # constant block index -> pos / weights / bias DMA'd once and reused
            pl.BlockSpec((S, H), lambda i: (0, 0)),
            pl.BlockSpec((C * H, D), lambda i: (0, 0)),
            pl.BlockSpec((1, D), lambda i: (0, 0)),
        ],
        out_specs=pl.BlockSpec((block_b, D), lambda i: (i, 0)),
        compiler_params=pltpu.CompilerParams(dimension_semantics=("parallel",)),
    )(dec, enc, pos, w_flat, b_packed)
    return packed[:B]


# ----------------------------------------------------------------------------
# Deterministic parameter setup (synthetic, no checkpoint loading)
# ----------------------------------------------------------------------------
def init_params(key):
    ks = jax.random.split(key, 2 + N_CENTER)
    params = {}
    # TODO(synk): backbone definition not provided; stand-in = patch + landmark
    # linear projections producing enc (B,S,H) and dec (B,C,H).
    params["w_enc"] = (
        jax.random.normal(ks[0], (IMG_C * 16, HIDDEN), jnp.float32) / np.sqrt(IMG_C * 16))
    params["w_dec"] = (
        jax.random.normal(ks[1], (N_LMK * 2, N_CENTER * HIDDEN), jnp.float32) / np.sqrt(N_LMK * 2))

    # Classifier: one nn.Linear(hidden_dim, 2*counts[i]) per center, packed into a
    # flattened block-diagonal weight in PyTorch concat order:
    #   w_flat[i*H:(i+1)*H, a]        = class-0 column of global AU a (center i)
    #   w_flat[i*H:(i+1)*H, LANE + a] = class-1 column
    w_flat = np.zeros((N_CENTER * HIDDEN, D_OUT), dtype=np.float32)
    b_packed = np.zeros((1, D_OUT), dtype=np.float32)
    raw = []
    bound = 1.0 / np.sqrt(HIDDEN)
    off = 0
    for i, c in enumerate(COUNTS.tolist()):
        kw, kb = jax.random.split(ks[2 + i])
        w_i = np.asarray(jax.random.uniform(kw, (HIDDEN, 2 * c), jnp.float32, -bound, bound))
        b_i = np.asarray(jax.random.uniform(kb, (2 * c,), jnp.float32, -bound, bound))
        raw.append((jnp.asarray(w_i), jnp.asarray(b_i)))
        for j in range(c):
            a = off + j
            w_flat[i * HIDDEN:(i + 1) * HIDDEN, a] = w_i[:, 2 * j]           # class 0
            w_flat[i * HIDDEN:(i + 1) * HIDDEN, LANE + a] = w_i[:, 2 * j + 1]  # class 1
            b_packed[0, a] = b_i[2 * j]
            b_packed[0, LANE + a] = b_i[2 * j + 1]
        off += c
    params["cls_w"] = jnp.asarray(w_flat)
    params["cls_b"] = jnp.asarray(b_packed)
    params["cls_raw"] = raw          # unpacked per-center weights (reference only)
    return params


# ----------------------------------------------------------------------------
# Forward pass (AUdetection.forward)
# ----------------------------------------------------------------------------
def backbone_stub(images, landmarks, params):
    # TODO(synk): real backbone not provided; deterministic linear stand-in.
    B = images.shape[0]
    x = images.reshape(B, IMG_C, 4, 4, 4, 4)
    x = x.transpose(0, 2, 4, 1, 3, 5).reshape(B, ENC_SEQ, IMG_C * 16)
    enc = x @ params["w_enc"]                                        # (B, S, H)
    dec = (landmarks.reshape(B, -1) @ params["w_dec"]).reshape(B, N_CENTER, HIDDEN)
    return enc, dec


def position_embedding_sine(S, H):
    # TODO(synk): PositionEmbeddingSine definition not provided; 1-D sine stand-in.
    pos = jnp.arange(S, dtype=jnp.float32)[:, None]
    dim = jnp.arange(H // 2, dtype=jnp.float32)[None, :]
    inv_freq = 1.0 / (10000.0 ** (2.0 * dim / H))
    ang = pos * inv_freq
    return jnp.concatenate([jnp.sin(ang), jnp.cos(ang)], axis=-1)    # (S, H)


def audetection_forward(images_tensor, data, params):
    landmarks = data["landmarks"]
    enc, dec = backbone_stub(images_tensor, landmarks, params)
    pos_embed = position_embedding_sine(enc.shape[1], enc.shape[2])
    enc_mask, dec_mask = data["left_center_mask"], data["right_center_mask"]
    del enc_mask  # TODO(synk): transformer definition not provided; enc_mask unused in stand-in.

    # Fused Pallas kernel: k = enc + pos, cross-attention (dec -> enc),
    # block-diagonal classifier, paired log_softmax.  hidden_state stays in VMEM.
    packed = fused_attention_classifier(
        dec, enc, pos_embed, params["cls_w"], params["cls_b"])      # (B, 2*LANE)

    # Loop-free unpack: class-0 logits at lanes [0, A), class-1 at [LANE, LANE+A),
    # already in PyTorch concat order.
    output = jnp.stack([packed[:, :N_AU], packed[:, LANE:LANE + N_AU]], axis=-1)  # (B, A, 2)

    au_masks = jnp.repeat(dec_mask, np.asarray(COUNTS), axis=1)      # (B, A)
    return output, au_masks


# ----------------------------------------------------------------------------
# Pure-JAX reference of the same forward (for correctness checking)
# ----------------------------------------------------------------------------
def reference_forward(images_tensor, data, params):
    enc, dec = backbone_stub(images_tensor, data["landmarks"], params)
    pos = position_embedding_sine(enc.shape[1], enc.shape[2])
    k = enc + pos[None]
    scale = 1.0 / np.sqrt(HIDDEN)
    s = jnp.einsum('bqd,bkd->bqk', dec * scale, k)
    p = jax.nn.softmax(s, axis=-1)
    hidden = jnp.einsum('bqk,bkd->bqd', p, enc)                      # (B, C, H)
    bs = hidden.shape[0]
    pieces = []
    for i, (w_i, b_i) in enumerate(params["cls_raw"]):
        logits = hidden[:, i, :] @ w_i + b_i                         # (B, 2*c)
        pieces.append(logits.reshape(bs, -1, 2))
    out = jax.nn.log_softmax(jnp.concatenate(pieces, axis=1), axis=2)
    au_masks = jnp.repeat(data["right_center_mask"], np.asarray(COUNTS), axis=1)
    return out, au_masks


# ----------------------------------------------------------------------------
if __name__ == "__main__":
    key = jax.random.PRNGKey(0)
    k_img, k_lmk, k_m1, k_m2, k_par = jax.random.split(key, 5)

    # B=16: whole-batch single block (grid=1) on v5e/v6e; two parallel 8-row
    # blocks (grid=2) on dual-TC v7x.
    B = 16
    images_tensor = jax.random.normal(k_img, (B, IMG_C, IMG_HW, IMG_HW), jnp.float32)
    data = {
        "landmarks": jax.random.normal(k_lmk, (B, N_LMK, 2), jnp.float32),
        "left_center_mask": (jax.random.uniform(k_m1, (B, N_CENTER)) > 0.3).astype(jnp.float32),
        "right_center_mask": (jax.random.uniform(k_m2, (B, N_CENTER)) > 0.3).astype(jnp.float32),
    }
    params = init_params(k_par)

    output, au_masks = audetection_forward(images_tensor, data, params)
    jax.block_until_ready((output, au_masks))

    assert output.shape == (B, N_AU, 2)
    assert au_masks.shape == (B, N_AU)

    ref_out, ref_masks = reference_forward(images_tensor, data, params)
    np.testing.assert_allclose(np.asarray(output), np.asarray(ref_out), rtol=2e-3, atol=2e-3)
    np.testing.assert_allclose(np.asarray(au_masks), np.asarray(ref_masks))

    print("KERNEL_OK")
</pallas_src>

<mosaic_0001>
module attributes {stable_mosaic.version = 11 : i64} {
  func.func @_fused_audetr_kernel(%arg0: i32, %arg1: memref<16x4x32xf32, #tpu.memory_space<vmem>>, %arg2: memref<16x16x32xf32, #tpu.memory_space<vmem>>, %arg3: memref<16x32xf32, #tpu.memory_space<vmem>>, %arg4: memref<128x256xf32, #tpu.memory_space<vmem>>, %arg5: memref<1x256xf32, #tpu.memory_space<vmem>>, %arg6: memref<16x256xf32, #tpu.memory_space<vmem>>) attributes {dimension_semantics = [#tpu.dimension_semantics<parallel>], iteration_bounds = array<i64: 1>, scalar_prefetch = 0 : i64, scratch_operands = 0 : i64, tpu.core_type = #tpu.core_type<tc>, window_params = [{transform_indices = @transform_0, window_bounds = array<i64: 16, 4, 32>}, {transform_indices = @transform_1, window_bounds = array<i64: 16, 16, 32>}, {pipeline_mode = #tpu.pipeline_mode<synchronous>, transform_indices = @transform_2, window_bounds = array<i64: 16, 32>}, {pipeline_mode = #tpu.pipeline_mode<synchronous>, transform_indices = @transform_3, window_bounds = array<i64: 128, 256>}, {pipeline_mode = #tpu.pipeline_mode<synchronous>, transform_indices = @transform_4, window_bounds = array<i64: 1, 256>}, {transform_indices = @transform_5, window_bounds = array<i64: 16, 256>}]} {
    %c0 = arith.constant 0 : index
    %c0_0 = arith.constant 0 : index
    %c0_1 = arith.constant 0 : index
    %0 = vector.load %arg2[%c0, %c0_0, %c0_1] : memref<16x16x32xf32, #tpu.memory_space<vmem>>, vector<16x16x32xf32>
    %c0_2 = arith.constant 0 : index
    %c0_3 = arith.constant 0 : index
    %1 = vector.load %arg3[%c0_2, %c0_3] : memref<16x32xf32, #tpu.memory_space<vmem>>, vector<16x32xf32>
    %2 = vector.shape_cast %1 : vector<16x32xf32> to vector<1x16x32xf32>
    %3 = vector.broadcast %2 : vector<1x16x32xf32> to vector<16x16x32xf32>
    %4 = arith.addf %0, %3 : vector<16x16x32xf32>
    %c0_4 = arith.constant 0 : index
    %c0_5 = arith.constant 0 : index
    %c0_6 = arith.constant 0 : index
    %5 = vector.load %arg1[%c0_4, %c0_5, %c0_6] : memref<16x4x32xf32, #tpu.memory_space<vmem>>, vector<16x4x32xf32>
    %cst = arith.constant 0.176776692 : f32
    %6 = vector.broadcast %cst : f32 to vector<16x4x32xf32>
    %7 = arith.mulf %5, %6 : vector<16x4x32xf32>
    "tpu.trace_start"() <{level = 10 : i32, message = "bqd,bkd->bqk"}> : () -> ()
    %cst_7 = arith.constant dense<0.000000e+00> : vector<16x4x16xf32>
    %8 = tpu.matmul %7, %4, %cst_7 {dimension_numbers = #tpu.dot_dimension_numbers<[2], [2], [1], [1], [0, 0, 0, 1, 1, 1], [0], [0]>} : vector<16x4x32xf32>, vector<16x16x32xf32>, vector<16x4x16xf32> -> vector<16x4x16xf32>
    "tpu.trace_stop"() : () -> ()
    %cst_8 = arith.constant dense<0xFF800000> : vector<16x4xf32>
    %9 = vector.multi_reduction <maximumf>, %8, %cst_8 [2] : vector<16x4x16xf32> to vector<16x4xf32>
    %10 = vector.shape_cast %9 : vector<16x4xf32> to vector<16x4x1xf32>
    %11 = vector.broadcast %10 : vector<16x4x1xf32> to vector<16x4x16xf32>
    %12 = arith.subf %8, %11 : vector<16x4x16xf32>
    %13 = math.exp %12 : vector<16x4x16xf32>
    %cst_9 = arith.constant dense<0.000000e+00> : vector<16x4xf32>
    %14 = vector.multi_reduction <add>, %13, %cst_9 [2] : vector<16x4x16xf32> to vector<16x4xf32>
    %15 = vector.shape_cast %14 : vector<16x4xf32> to vector<16x4x1xf32>
    %16 = tpu.reciprocal %15 {approx = true} : vector<16x4x1xf32> -> vector<16x4x1xf32>
    %17 = vector.broadcast %16 : vector<16x4x1xf32> to vector<16x4x16xf32>
    %18 = arith.mulf %13, %17 : vector<16x4x16xf32>
    "tpu.trace_start"() <{level = 10 : i32, message = "bqk,bkd->bqd"}> : () -> ()
    %cst_10 = arith.constant dense<0.000000e+00> : vector<16x4x32xf32>
    %19 = tpu.matmul %18, %0, %cst_10 {dimension_numbers = #tpu.dot_dimension_numbers<[2], [1], [1], [2], [0, 0, 0, 1, 1, 2], [0], [0]>} : vector<16x4x16xf32>, vector<16x16x32xf32>, vector<16x4x32xf32> -> vector<16x4x32xf32>
    "tpu.trace_stop"() : () -> ()
    %20 = vector.extract_strided_slice %19 {offsets = [0, 0, 0], sizes = [16, 1, 32], strides = [1, 1, 1]} : vector<16x4x32xf32> to vector<16x1x32xf32>
    %21 = vector.shape_cast %20 : vector<16x1x32xf32> to vector<16x32xf32>
    %22 = vector.extract_strided_slice %19 {offsets = [0, 1, 0], sizes = [16, 1, 32], strides = [1, 1, 1]} : vector<16x4x32xf32> to vector<16x1x32xf32>
    %23 = vector.shape_cast %22 : vector<16x1x32xf32> to vector<16x32xf32>
    %24 = vector.extract_strided_slice %19 {offsets = [0, 2, 0], sizes = [16, 1, 32], strides = [1, 1, 1]} : vector<16x4x32xf32> to vector<16x1x32xf32>
    %25 = vector.shape_cast %24 : vector<16x1x32xf32> to vector<16x32xf32>
    %26 = vector.extract_strided_slice %19 {offsets = [0, 3, 0], sizes = [16, 1, 32], strides = [1, 1, 1]} : vector<16x4x32xf32> to vector<16x1x32xf32>
    %27 = vector.shape_cast %26 : vector<16x1x32xf32> to vector<16x32xf32>
    %28 = tpu.concatenate %21, %23, %25, %27 in 1 : vector<16x32xf32>, vector<16x32xf32>, vector<16x32xf32>, vector<16x32xf32> -> vector<16x128xf32>
    %c0_11 = arith.constant 0 : index
    %c0_12 = arith.constant 0 : index
    %29 = vector.load %arg4[%c0_11, %c0_12] : memref<128x256xf32, #tpu.memory_space<vmem>>, vector<128x256xf32>
    %cst_13 = arith.constant dense<0.000000e+00> : vector<16x256xf32>
    %30 = tpu.matmul %28, %29, %cst_13 {dimension_numbers = #tpu.dot_dimension_numbers<[1], [0], [0], [1], [0, 0, 1, 1], [], []>} : vector<16x128xf32>, vector<128x256xf32>, vector<16x256xf32> -> vector<16x256xf32>
    %c0_14 = arith.constant 0 : index
    %c0_15 = arith.constant 0 : index
    %31 = vector.load %arg5[%c0_14, %c0_15] : memref<1x256xf32, #tpu.memory_space<vmem>>, vector<1x256xf32>
    %32 = vector.broadcast %31 : vector<1x256xf32> to vector<16x256xf32>
    %33 = arith.addf %30, %32 : vector<16x256xf32>
    %34 = vector.extract_strided_slice %33 {offsets = [0, 0], sizes = [16, 128], strides = [1, 1]} : vector<16x256xf32> to vector<16x128xf32>
    %35 = vector.extract_strided_slice %33 {offsets = [0, 128], sizes = [16, 128], strides = [1, 1]} : vector<16x256xf32> to vector<16x128xf32>
    %36 = arith.maximumf %34, %35 : vector<16x128xf32>
    %37 = arith.subf %34, %36 : vector<16x128xf32>
    %38 = math.exp %37 : vector<16x128xf32>
    %39 = arith.subf %35, %36 : vector<16x128xf32>
    %40 = math.exp %39 : vector<16x128xf32>
    %41 = arith.addf %38, %40 : vector<16x128xf32>
    %42 = math.log %41 : vector<16x128xf32>
    %43 = arith.addf %36, %42 : vector<16x128xf32>
    %44 = arith.subf %34, %43 : vector<16x128xf32>
    %c0_16 = arith.constant 0 : index
    %c0_17 = arith.constant 0 : index
    %45 = vector.load %arg6[%c0_16, %c0_17] : memref<16x256xf32, #tpu.memory_space<vmem>>, vector<16x128xf32>
    tpu.vector_store %arg6[%c0_16, %c0_17], %44 {strides = array<i32>} : memref<16x256xf32, #tpu.memory_space<vmem>>, vector<16x128xf32>,
    %46 = arith.subf %35, %43 : vector<16x128xf32>
    %c0_18 = arith.constant 0 : index
    %c128 = arith.constant 128 : index
    %47 = vector.load %arg6[%c0_18, %c128] : memref<16x256xf32, #tpu.memory_space<vmem>>, vector<16x128xf32>
    tpu.vector_store %arg6[%c0_18, %c128], %46 {strides = array<i32>} : memref<16x256xf32, #tpu.memory_space<vmem>>, vector<16x128xf32>,
    return
  }
  func.func @transform_0(%arg0: i32) -> (i32, i32, i32) {
    %c0_i32 = arith.constant 0 : i32
    %c0_i32_0 = arith.constant 0 : i32
    %c0_i32_1 = arith.constant 0 : i32
    return %arg0, %c0_i32, %c0_i32_0 : i32, i32, i32
  }
  func.func @transform_1(%arg0: i32) -> (i32, i32, i32) {
    %c0_i32 = arith.constant 0 : i32
    %c0_i32_0 = arith.constant 0 : i32
    %c0_i32_1 = arith.constant 0 : i32
    return %arg0, %c0_i32, %c0_i32_0 : i32, i32, i32
  }
  func.func @transform_2(%arg0: i32) -> (i32, i32) {
    %c0_i32 = arith.constant 0 : i32
    %c0_i32_0 = arith.constant 0 : i32
    %c0_i32_1 = arith.constant 0 : i32
    return %c0_i32, %c0_i32_0 : i32, i32
  }
  func.func @transform_3(%arg0: i32) -> (i32, i32) {
    %c0_i32 = arith.constant 0 : i32
    %c0_i32_0 = arith.constant 0 : i32
    %c0_i32_1 = arith.constant 0 : i32
    return %c0_i32, %c0_i32_0 : i32, i32
  }
  func.func @transform_4(%arg0: i32) -> (i32, i32) {
    %c0_i32 = arith.constant 0 : i32
    %c0_i32_0 = arith.constant 0 : i32
    %c0_i32_1 = arith.constant 0 : i32
    return %c0_i32, %c0_i32_0 : i32, i32
  }
  func.func @transform_5(%arg0: i32) -> (i32, i32) {
    %c0_i32 = arith.constant 0 : i32
    %c0_i32_0 = arith.constant 0 : i32
    return %arg0, %c0_i32 : i32, i32
  }
}

</mosaic_0001>

<llo_original>
// kernel: tpu_custom_call.1
$region0: #{tpu_custom_call.1}
  #allocation0 [shape = 'u32[]', space=smem, size = 0x4, offset = 0x4, fixed_abs, tag = 'smem constant byte address 0x4 - core index']
  #allocation1 [shape = 'u32[144,128]{1,0:T(1,128)}', space=vmem, size = 0x12000, scoped, tag = 'internal scratch']
  %s0 = inlined_call_operand.hbm [shape: f32[16,4,32], index: 0, kind: input, shape index: {}]
  %s1 = inlined_call_operand.hbm [shape: f32[16,16,32], index: 1, kind: input, shape index: {}]
  %s2 = inlined_call_operand.hbm [shape: f32[16,32], index: 2, kind: input, shape index: {}]
  %s3 = inlined_call_operand.hbm [shape: f32[128,256], index: 3, kind: input, shape index: {}]
  %s4 = inlined_call_operand.vmem [shape: f32[1,256], index: 4, kind: input, shape index: {}]
  %s5 = inlined_call_operand.hbm [shape: f32[16,256], index: 5, kind: output, shape index: {}]
  %s6 = sld [smem:[#allocation0]]
  $region46: #{tpu_custom_call.1} parent=0
    _
  %s8 = ssub.s32 1, %s6
  %s9 = scalar_select 0, %s8, %s6
  $region1: #{tpu_custom_call.1} parent=0
    #allocation2 [shape = 'u8[32768]{0}', space=vmem, size = 0x8000, scoped, tag = 'input window, operand 0, single buffered']
    #allocation3 [shape = 's32[1]{0}', space=sflag, size = 0x4, scoped, tag = 'scoped memory for tpu_custom_call.1']
    #allocation4 [shape = 's32[1]{0}', space=sflag, size = 0x4, scoped, tag = 'scoped memory for tpu_custom_call.1']
    #allocation5 [shape = 'u8[131072]{0}', space=vmem, size = 0x20000, scoped, tag = 'input window, operand 1, single buffered']
    #allocation6 [shape = 's32[1]{0}', space=sflag, size = 0x4, scoped, tag = 'scoped memory for tpu_custom_call.1']
    #allocation7 [shape = 'u8[8192]{0}', space=vmem, size = 0x2000, scoped, tag = 'input window, operand 2, single buffered']
    #allocation8 [shape = 'u8[131072]{0}', space=vmem, size = 0x20000, scoped, tag = 'input window, operand 3, single buffered']
    #allocation9 [shape = 's32[1]{0}', space=sflag, size = 0x4, scoped, tag = 'scoped memory for tpu_custom_call.1']
    #allocation10 [shape = 'u8[16384]{0}', space=vmem, size = 0x4000, scoped, tag = 'output window, operand 0, single buffered']
    %10 = vsyncpa [#allocation3], 0
    %11 = vsyncpa [#allocation6], 0
    %12 = vsyncpa [#allocation9], 0
    %13 = vsyncpa [#allocation4], 0
    // Predicated region
    $region2: #{tpu_custom_call.1} parent=1 // pred_check
      _
    $region3: #{tpu_custom_call.1} parent=1 // pred_check_branch
      %15 = sbr.rel (0) target = $region5
    $region4: #{tpu_custom_call.1} parent=1 // pred_region
      %s17 = ssub.s32 1024, 1024
      %18 = vsyncadd [#allocation3], %s17
      %s19 = sshll.u32 [#allocation2], 4
      %s20 = int_to_ptr.vmem [resolvable:$true] %s19
      %25 = dma.hbm_to_vmem [thread:$0]  %s0, 1024, %s20, [#allocation3], 64, 64, 4
    $region5: #{tpu_custom_call.1} parent=1 // pred_fallthru
      _
    // Predicated region
    $region6: #{tpu_custom_call.1} parent=1 // pred_check
      _
    $region7: #{tpu_custom_call.1} parent=1 // pred_check_branch
      %27 = sbr.rel (0) target = $region9
    $region8: #{tpu_custom_call.1} parent=1 // pred_region
      %s29 = ssub.s32 4096, 4096
      %30 = vsyncadd [#allocation6], %s29
      %s31 = sshll.u32 [#allocation5], 4
      %s32 = int_to_ptr.vmem [resolvable:$true] %s31
      %37 = dma.hbm_to_vmem [thread:$0]  %s1, 4096, %s32, [#allocation6], 128, 128, 8
    $region9: #{tpu_custom_call.1} parent=1 // pred_fallthru
      _
    // Predicated region
    $region10: #{tpu_custom_call.1} parent=1 // pred_check
      _
    $region11: #{tpu_custom_call.1} parent=1 // pred_check_branch
      %39 = sbr.rel (0) target = $region13
    $region12: #{tpu_custom_call.1} parent=1 // pred_region
      %s41 = ssub.s32 256, 256
      %42 = vsyncadd [#allocation6], %s41
      %s43 = sshll.u32 [#allocation7], 4
      %s44 = int_to_ptr.vmem [resolvable:$true] %s43
      %49 = dma.hbm_to_vmem [thread:$0]  %s2, 256, %s44, [#allocation6], 128, 128, 8
    $region13: #{tpu_custom_call.1} parent=1 // pred_fallthru
      _
    // Predicated region
    $region14: #{tpu_custom_call.1} parent=1 // pred_check
      _
    $region15: #{tpu_custom_call.1} parent=1 // pred_check_branch
      %51 = sbr.rel (0) target = $region17
    $region16: #{tpu_custom_call.1} parent=1 // pred_region
      %s53 = ssub.s32 4096, 4096
      %54 = vsyncadd [#allocation9], %s53
      %s55 = sshll.u32 [#allocation8], 4
      %s56 = int_to_ptr.vmem [resolvable:$true] %s55
      %61 = dma.hbm_to_vmem [thread:$0]  %s3, 4096, %s56, [#allocation9], 256, 256, 16
    $region17: #{tpu_custom_call.1} parent=1 // pred_fallthru
      _
    // Predicated region
    $region18: #{tpu_custom_call.1} parent=1 // pred_check
      _
    $region19: #{tpu_custom_call.1} parent=1 // pred_check_branch
      %63 = sbr.rel (0) target = $region21
    $region20: #{tpu_custom_call.1} parent=1 // pred_region
      _
    $region21: #{tpu_custom_call.1} parent=1 // pred_fallthru
      _
    // Predicated region
    $region22: #{tpu_custom_call.1} parent=1 // pred_check
      _
    $region23: #{tpu_custom_call.1} parent=1 // pred_check_branch
      %65 = sbr.rel (0) target = $region25
    $region24: #{tpu_custom_call.1} parent=1 // pred_region
      %66 = dma.done [#allocation3], 1024
    $region25: #{tpu_custom_call.1} parent=1 // pred_fallthru
      _
    // Predicated region
    $region26: #{tpu_custom_call.1} parent=1 // pred_check
      _
    $region27: #{tpu_custom_call.1} parent=1 // pred_check_branch
      %68 = sbr.rel (0) target = $region29
    $region28: #{tpu_custom_call.1} parent=1 // pred_region
      %69 = dma.done [#allocation6], 4096
    $region29: #{tpu_custom_call.1} parent=1 // pred_fallthru
      _
    // Predicated region
    $region30: #{tpu_custom_call.1} parent=1 // pred_check
      _
    $region31: #{tpu_custom_call.1} parent=1 // pred_check_branch
      %71 = sbr.rel (0) target = $region33
    $region32: #{tpu_custom_call.1} parent=1 // pred_region
      %72 = dma.done [#allocation6], 256
    $region33: #{tpu_custom_call.1} parent=1 // pred_fallthru
      _
    // Predicated region
    $region34: #{tpu_custom_call.1} parent=1 // pred_check
      _
    $region35: #{tpu_custom_call.1} parent=1 // pred_check_branch
      %74 = sbr.rel (0) target = $region37
    $region36: #{tpu_custom_call.1} parent=1 // pred_region
      %75 = dma.done [#allocation9], 4096
    $region37: #{tpu_custom_call.1} parent=1 // pred_fallthru
      _
    %v76 = vld [vmem:[#allocation5] sm:$0xff]
    %v77 = vld [vmem:[#allocation5 + $0x8] sm:$0xff]
    %v78 = vld [vmem:[#allocation5 + $0x10] sm:$0xff]
    %v79 = vld [vmem:[#allocation5 + $0x18] sm:$0xff]
    %v80 = vld [vmem:[#allocation5 + $0x20] sm:$0xff]
    %v81 = vld [vmem:[#allocation5 + $0x28] sm:$0xff]
    %v82 = vld [vmem:[#allocation5 + $0x30] sm:$0xff]
    %v83 = vld [vmem:[#allocation5 + $0x38] sm:$0xff]
    %v84 = vld [vmem:[#allocation5 + $0x40] sm:$0xff]
    %v85 = vld [vmem:[#allocation5 + $0x48] sm:$0xff]
    %v86 = vld [vmem:[#allocation5 + $0x50] sm:$0xff]
    %v87 = vld [vmem:[#allocation5 + $0x58] sm:$0xff]
    %v88 = vld [vmem:[#allocation5 + $0x60] sm:$0xff]
    %v89 = vld [vmem:[#allocation5 + $0x68] sm:$0xff]
    %v90 = vld [vmem:[#allocation5 + $0x70] sm:$0xff]
    %v91 = vld [vmem:[#allocation5 + $0x78] sm:$0xff]
    %v92 = vld [vmem:[#allocation5 + $0x80] sm:$0xff]
    %v93 = vld [vmem:[#allocation5 + $0x88] sm:$0xff]
    %v94 = vld [vmem:[#allocation5 + $0x90] sm:$0xff]
    %v95 = vld [vmem:[#allocation5 + $0x98] sm:$0xff]
    %v96 = vld [vmem:[#allocation5 + $0xa0] sm:$0xff]
    %v97 = vld [vmem:[#allocation5 + $0xa8] sm:$0xff]
    %v98 = vld [vmem:[#allocation5 + $0xb0] sm:$0xff]
    %v99 = vld [vmem:[#allocation5 + $0xb8] sm:$0xff]
    %v100 = vld [vmem:[#allocation5 + $0xc0] sm:$0xff]
    %v101 = vld [vmem:[#allocation5 + $0xc8] sm:$0xff]
    %v102 = vld [vmem:[#allocation5 + $0xd0] sm:$0xff]
    %v103 = vld [vmem:[#allocation5 + $0xd8] sm:$0xff]
    %v104 = vld [vmem:[#allocation5 + $0xe0] sm:$0xff]
    %v105 = vld [vmem:[#allocation5 + $0xe8] sm:$0xff]
    %v106 = vld [vmem:[#allocation5 + $0xf0] sm:$0xff]
    %v107 = vld [vmem:[#allocation5 + $0xf8] sm:$0xff]
    %v108 = vld [vmem:[#allocation7] sm:$0xff]
    %v109 = vld [vmem:[#allocation7 + $0x8] sm:$0xff]
    %v110 = vadd.f32 %v76, %v108
    %v111 = vadd.f32 %v77, %v109
    %v112 = vadd.f32 %v78, %v108
    %v113 = vadd.f32 %v79, %v109
    %v114 = vadd.f32 %v80, %v108
    %v115 = vadd.f32 %v81, %v109
    %v116 = vadd.f32 %v82, %v108
    %v117 = vadd.f32 %v83, %v109
    %v118 = vadd.f32 %v84, %v108
    %v119 = vadd.f32 %v85, %v109
    %v120 = vadd.f32 %v86, %v108
    %v121 = vadd.f32 %v87, %v109
    %v122 = vadd.f32 %v88, %v108
    %v123 = vadd.f32 %v89, %v109
    %v124 = vadd.f32 %v90, %v108
    %v125 = vadd.f32 %v91, %v109
    %v126 = vadd.f32 %v92, %v108
    %v127 = vadd.f32 %v93, %v109
    %v128 = vadd.f32 %v94, %v108
    %v129 = vadd.f32 %v95, %v109
    %v130 = vadd.f32 %v96, %v108
    %v131 = vadd.f32 %v97, %v109
    %v132 = vadd.f32 %v98, %v108
    %v133 = vadd.f32 %v99, %v109
    %v134 = vadd.f32 %v100, %v108
    %v135 = vadd.f32 %v101, %v109
    %v136 = vadd.f32 %v102, %v108
    %v137 = vadd.f32 %v103, %v109
    %v138 = vadd.f32 %v104, %v108
    %v139 = vadd.f32 %v105, %v109
    %v140 = vadd.f32 %v106, %v108
    %v141 = vadd.f32 %v107, %v109
    %v142 = vld [vmem:[#allocation2] sm:$0xf]
    %v143 = vld [vmem:[#allocation2 + $0x4] sm:$0xf]
    %v144 = vld [vmem:[#allocation2 + $0x8] sm:$0xf]
    %v145 = vld [vmem:[#allocation2 + $0xc] sm:$0xf]
    %v146 = vld [vmem:[#allocation2 + $0x10] sm:$0xf]
    %v147 = vld [vmem:[#allocation2 + $0x14] sm:$0xf]
    %v148 = vld [vmem:[#allocation2 + $0x18] sm:$0xf]
    %v149 = vld [vmem:[#allocation2 + $0x1c] sm:$0xf]
    %v150 = vld [vmem:[#allocation2 + $0x20] sm:$0xf]
    %v151 = vld [vmem:[#allocation2 + $0x24] sm:$0xf]
    %v152 = vld [vmem:[#allocation2 + $0x28] sm:$0xf]
    %v153 = vld [vmem:[#allocation2 + $0x2c] sm:$0xf]
    %v154 = vld [vmem:[#allocation2 + $0x30] sm:$0xf]
    %v155 = vld [vmem:[#allocation2 + $0x34] sm:$0xf]
    %v156 = vld [vmem:[#allocation2 + $0x38] sm:$0xf]
    %v157 = vld [vmem:[#allocation2 + $0x3c] sm:$0xf]
    %v158 = vmul.f32 %v142, 0.17677669
    %v159 = vmul.f32 %v143, 0.17677669
    %v160 = vmul.f32 %v144, 0.17677669
    %v161 = vmul.f32 %v145, 0.17677669
    %v162 = vmul.f32 %v146, 0.17677669
    %v163 = vmul.f32 %v147, 0.17677669
    %v164 = vmul.f32 %v148, 0.17677669
    %v165 = vmul.f32 %v149, 0.17677669
    %v166 = vmul.f32 %v150, 0.17677669
    %v167 = vmul.f32 %v151, 0.17677669
    %v168 = vmul.f32 %v152, 0.17677669
    %v169 = vmul.f32 %v153, 0.17677669
    %v170 = vmul.f32 %v154, 0.17677669
    %v171 = vmul.f32 %v155, 0.17677669
    %v172 = vmul.f32 %v156, 0.17677669
    %v173 = vmul.f32 %v157, 0.17677669
    %vm174 = vcmask 261120
    %v176 = vsel %vm174, %v158, 0
    %v179 = vsel %vm174, %v110, 0
    %v182 = vsel %vm174, %v111, 0
    %184 = vmatprep.subr.mxu0 0.0
    %185 = vmatpush1.xpose.msra.mxu0 %v179
    %186 = vmatprep.subr.mxu0 0.0
    %187 = vmatpush1.xpose.msra.mxu0 %v182
    %188 = vmatprep.subr.mxu0 0.0
    %189 = vmatpush1.xpose.msra.mxu0 0.0
    %190 = vmatprep.subr.mxu0 0.0
    %191 = vmatpush1.xpose.msra.mxu0 0.0
    %192 = vmatprep.subr.mxu0 0.0
    %193 = vmatpush1.xpose.msra.mxu0 0.0
    %194 = vmatprep.subr.mxu0 0.0
    %195 = vmatpush1.xpose.msra.mxu0 0.0
    %196 = vmatprep.subr.mxu0 0.0
    %197 = vmatpush1.xpose.msra.mxu0 0.0
    %198 = vmatprep.subr.mxu0 0.0
    %199 = vmatpush1.xpose.msra.mxu0 0.0
    %200 = vmatprep.subr.mxu0 0.0
    %201 = vmatpush1.xpose.msra.mxu0 0.0
    %202 = vmatprep.subr.mxu0 0.0
    %203 = vmatpush1.xpose.msra.mxu0 0.0
    %204 = vmatprep.subr.mxu0 0.0
    %205 = vmatpush1.xpose.msra.mxu0 0.0
    %206 = vmatprep.subr.mxu0 0.0
    %207 = vmatpush1.xpose.msra.mxu0 0.0
    %208 = vmatprep.subr.mxu0 0.0
    %209 = vmatpush1.xpose.msra.mxu0 0.0
    %210 = vmatprep.subr.mxu0 0.0
    %211 = vmatpush1.xpose.msra.mxu0 0.0
    %212 = vmatprep.subr.mxu0 0.0
    %213 = vmatpush1.xpose.msra.mxu0 0.0
    %214 = vmatprep.subr.mxu0 0.0
    %215 = vmatpush1.xpose.msra.mxu0 0.0
    %216 = vmatprep.subr.mxu0 0.0
    %217 = vmatpush1.xpose.msra.mxu0 0.0
    %218 = vmatprep.subr.mxu0 0.0
    %219 = vmatpush1.xpose.msra.mxu0 0.0
    %220 = vmatprep.subr.mxu0 0.0
    %221 = vmatpush1.xpose.msra.mxu0 0.0
    %222 = vmatprep.subr.mxu0 0.0
    %223 = vmatpush1.xpose.msra.mxu0 0.0
    %224 = vmatprep.subr.mxu0 0.0
    %225 = vmatpush1.xpose.msra.mxu0 0.0
    %226 = vmatprep.subr.mxu0 0.0
    %227 = vmatpush1.xpose.msra.mxu0 0.0
    %228 = vmatprep.subr.mxu0 0.0
    %229 = vmatpush1.xpose.msra.mxu0 0.0
    %230 = vmatprep.subr.mxu0 0.0
    %231 = vmatpush1.xpose.msra.mxu0 0.0
    %232 = vmatprep.subr.mxu0 0.0
    %233 = vmatpush1.xpose.msra.mxu0 0.0
    %234 = vmatprep.subr.mxu0 0.0
    %235 = vmatpush1.xpose.msra.mxu0 0.0
    %236 = vmatprep.subr.mxu0 0.0
    %237 = vmatpush1.xpose.msra.mxu0 0.0
    %238 = vmatprep.subr.mxu0 0.0
    %239 = vmatpush1.xpose.msra.mxu0 0.0
    %240 = vmatprep.subr.mxu0 0.0
    %241 = vmatpush1.xpose.msra.mxu0 0.0
    %242 = vmatprep.subr.mxu0 0.0
    %243 = vmatpush1.xpose.msra.mxu0 0.0
    %244 = vmatprep.subr.mxu0 0.0
    %245 = vmatpush1.xpose.msra.mxu0 0.0
    %246 = vmatprep.subr.mxu0 0.0
    %247 = vmatpush1.xpose.msra.mxu0 0.0
    %248 = vmatprep.mubr.f32.mxu0 0.0
    %249 = vmatmul.mubr.f32.gmra.mrb[0].mxu0 %v176
    %v250 = vpop.f32.mrb[0].mxu0
    %v251 = vadd.f32 0.0, %v250
    %v252 = vpop.f32.mrb[0].mxu0
    %253 = vdwg.mxu0
    %v255 = vsel %vm174, %v159, 0
    %v258 = vsel %vm174, %v112, 0
    %v261 = vsel %vm174, %v113, 0
    %263 = vmatprep.subr.mxu0 0.0
    %264 = vmatpush1.xpose.msra.mxu0 %v258
    %265 = vmatprep.subr.mxu0 0.0
    %266 = vmatpush1.xpose.msra.mxu0 %v261
    %267 = vmatprep.subr.mxu0 0.0
    %268 = vmatpush1.xpose.msra.mxu0 0.0
    %269 = vmatprep.subr.mxu0 0.0
    %270 = vmatpush1.xpose.msra.mxu0 0.0
    %271 = vmatprep.subr.mxu0 0.0
    %272 = vmatpush1.xpose.msra.mxu0 0.0
    %273 = vmatprep.subr.mxu0 0.0
    %274 = vmatpush1.xpose.msra.mxu0 0.0
    %275 = vmatprep.subr.mxu0 0.0
    %276 = vmatpush1.xpose.msra.mxu0 0.0
    %277 = vmatprep.subr.mxu0 0.0
    %278 = vmatpush1.xpose.msra.mxu0 0.0
    %279 = vmatprep.subr.mxu0 0.0
    %280 = vmatpush1.xpose.msra.mxu0 0.0
    %281 = vmatprep.subr.mxu0 0.0
    %282 = vmatpush1.xpose.msra.mxu0 0.0
    %283 = vmatprep.subr.mxu0 0.0
    %284 = vmatpush1.xpose.msra.mxu0 0.0
    %285 = vmatprep.subr.mxu0 0.0
    %286 = vmatpush1.xpose.msra.mxu0 0.0
    %287 = vmatprep.subr.mxu0 0.0
    %288 = vmatpush1.xpose.msra.mxu0 0.0
    %289 = vmatprep.subr.mxu0 0.0
    %290 = vmatpush1.xpose.msra.mxu0 0.0
    %291 = vmatprep.subr.mxu0 0.0
    %292 = vmatpush1.xpose.msra.mxu0 0.0
    %293 = vmatprep.subr.mxu0 0.0
    %294 = vmatpush1.xpose.msra.mxu0 0.0
    %295 = vmatprep.subr.mxu0 0.0
    %296 = vmatpush1.xpose.msra.mxu0 0.0
    %297 = vmatprep.subr.mxu0 0.0
    %298 = vmatpush1.xpose.msra.mxu0 0.0
    %299 = vmatprep.subr.mxu0 0.0
    %300 = vmatpush1.xpose.msra.mxu0 0.0
    %301 = vmatprep.subr.mxu0 0.0
    %302 = vmatpush1.xpose.msra.mxu0 0.0
    %303 = vmatprep.subr.mxu0 0.0
    %304 = vmatpush1.xpose.msra.mxu0 0.0
    %305 = vmatprep.subr.mxu0 0.0
    %306 = vmatpush1.xpose.msra.mxu0 0.0
    %307 = vmatprep.subr.mxu0 0.0
    %308 = vmatpush1.xpose.msra.mxu0 0.0
    %309 = vmatprep.subr.mxu0 0.0
    %310 = vmatpush1.xpose.msra.mxu0 0.0
    %311 = vmatprep.subr.mxu0 0.0
    %312 = vmatpush1.xpose.msra.mxu0 0.0
    %313 = vmatprep.subr.mxu0 0.0
    %314 = vmatpush1.xpose.msra.mxu0 0.0
    %315 = vmatprep.subr.mxu0 0.0
    %316 = vmatpush1.xpose.msra.mxu0 0.0
    %317 = vmatprep.subr.mxu0 0.0
    %318 = vmatpush1.xpose.msra.mxu0 0.0
    %319 = vmatprep.subr.mxu0 0.0
    %320 = vmatpush1.xpose.msra.mxu0 0.0
    %321 = vmatprep.subr.mxu0 0.0
    %322 = vmatpush1.xpose.msra.mxu0 0.0
    %323 = vmatprep.subr.mxu0 0.0
    %324 = vmatpush1.xpose.msra.mxu0 0.0
    %325 = vmatprep.subr.mxu0 0.0
    %326 = vmatpush1.xpose.msra.mxu0 0.0
    %327 = vmatprep.mubr.f32.mxu0 0.0
    %328 = vmatmul.mubr.f32.gmra.mrb[0].mxu0 %v255
    %v329 = vpop.f32.mrb[0].mxu0
    %v330 = vadd.f32 0.0, %v329
    %v331 = vpop.f32.mrb[0].mxu0
    %332 = vdwg.mxu0
    %v334 = vsel %vm174, %v160, 0
    %v337 = vsel %vm174, %v114, 0
    %v340 = vsel %vm174, %v115, 0
    %342 = vmatprep.subr.mxu0 0.0
    %343 = vmatpush1.xpose.msra.mxu0 %v337
    %344 = vmatprep.subr.mxu0 0.0
    %345 = vmatpush1.xpose.msra.mxu0 %v340
    %346 = vmatprep.subr.mxu0 0.0
    %347 = vmatpush1.xpose.msra.mxu0 0.0
    %348 = vmatprep.subr.mxu0 0.0
    %349 = vmatpush1.xpose.msra.mxu0 0.0
    %350 = vmatprep.subr.mxu0 0.0
    %351 = vmatpush1.xpose.msra.mxu0 0.0
    %352 = vmatprep.subr.mxu0 0.0
    %353 = vmatpush1.xpose.msra.mxu0 0.0
    %354 = vmatprep.subr.mxu0 0.0
    %355 = vmatpush1.xpose.msra.mxu0 0.0
    %356 = vmatprep.subr.mxu0 0.0
    %357 = vmatpush1.xpose.msra.mxu0 0.0
    %358 = vmatprep.subr.mxu0 0.0
    %359 = vmatpush1.xpose.msra.mxu0 0.0
    %360 = vmatprep.subr.mxu0 0.0
    %361 = vmatpush1.xpose.msra.mxu0 0.0
    %362 = vmatprep.subr.mxu0 0.0
    %363 = vmatpush1.xpose.msra.mxu0 0.0
    %364 = vmatprep.subr.mxu0 0.0
    %365 = vmatpush1.xpose.msra.mxu0 0.0
    %366 = vmatprep.subr.mxu0 0.0
    %367 = vmatpush1.xpose.msra.mxu0 0.0
    %368 = vmatprep.subr.mxu0 0.0
    %369 = vmatpush1.xpose.msra.mxu0 0.0
    %370 = vmatprep.subr.mxu0 0.0
    %371 = vmatpush1.xpose.msra.mxu0 0.0
    %372 = vmatprep.subr.mxu0 0.0
    %373 = vmatpush1.xpose.msra.mxu0 0.0
    %374 = vmatprep.subr.mxu0 0.0
    %375 = vmatpush1.xpose.msra.mxu0 0.0
    %376 = vmatprep.subr.mxu0 0.0
    %377 = vmatpush1.xpose.msra.mxu0 0.0
    %378 = vmatprep.subr.mxu0 0.0
    %379 = vmatpush1.xpose.msra.mxu0 0.0
    %380 = vmatprep.subr.mxu0 0.0
    %381 = vmatpush1.xpose.msra.mxu0 0.0
    %382 = vmatprep.subr.mxu0 0.0
    %383 = vmatpush1.xpose.msra.mxu0 0.0
    %384 = vmatprep.subr.mxu0 0.0
    %385 = vmatpush1.xpose.msra.mxu0 0.0
    %386 = vmatprep.subr.mxu0 0.0
    %387 = vmatpush1.xpose.msra.mxu0 0.0
    %388 = vmatprep.subr.mxu0 0.0
    %389 = vmatpush1.xpose.msra.mxu0 0.0
    %390 = vmatprep.subr.mxu0 0.0
    %391 = vmatpush1.xpose.msra.mxu0 0.0
    %392 = vmatprep.subr.mxu0 0.0
    %393 = vmatpush1.xpose.msra.mxu0 0.0
    %394 = vmatprep.subr.mxu0 0.0
    %395 = vmatpush1.xpose.msra.mxu0 0.0
    %396 = vmatprep.subr.mxu0 0.0
    %397 = vmatpush1.xpose.msra.mxu0 0.0
    %398 = vmatprep.subr.mxu0 0.0
    %399 = vmatpush1.xpose.msra.mxu0 0.0
    %400 = vmatprep.subr.mxu0 0.0
    %401 = vmatpush1.xpose.msra.mxu0 0.0
    %402 = vmatprep.subr.mxu0 0.0
    %403 = vmatpush1.xpose.msra.mxu0 0.0
    %404 = vmatprep.subr.mxu0 0.0
    %405 = vmatpush1.xpose.msra.mxu0 0.0
    %406 = vmatprep.mubr.f32.mxu0 0.0
    %407 = vmatmul.mubr.f32.gmra.mrb[0].mxu0 %v334
    %v408 = vpop.f32.mrb[0].mxu0
    %v409 = vadd.f32 0.0, %v408
    %v410 = vpop.f32.mrb[0].mxu0
    %411 = vdwg.mxu0
    %v413 = vsel %vm174, %v161, 0
    %v416 = vsel %vm174, %v116, 0
    %v419 = vsel %vm174, %v117, 0
    %421 = vmatprep.subr.mxu0 0.0
    %422 = vmatpush1.xpose.msra.mxu0 %v416
    %423 = vmatprep.subr.mxu0 0.0
    %424 = vmatpush1.xpose.msra.mxu0 %v419
    %425 = vmatprep.subr.mxu0 0.0
    %426 = vmatpush1.xpose.msra.mxu0 0.0
    %427 = vmatprep.subr.mxu0 0.0
    %428 = vmatpush1.xpose.msra.mxu0 0.0
    %429 = vmatprep.subr.mxu0 0.0
    %430 = vmatpush1.xpose.msra.mxu0 0.0
    %431 = vmatprep.subr.mxu0 0.0
    %432 = vmatpush1.xpose.msra.mxu0 0.0
    %433 = vmatprep.subr.mxu0 0.0
    %434 = vmatpush1.xpose.msra.mxu0 0.0
    %435 = vmatprep.subr.mxu0 0.0
    %436 = vmatpush1.xpose.msra.mxu0 0.0
    %437 = vmatprep.subr.mxu0 0.0
    %438 = vmatpush1.xpose.msra.mxu0 0.0
    %439 = vmatprep.subr.mxu0 0.0
    %440 = vmatpush1.xpose.msra.mxu0 0.0
    %441 = vmatprep.subr.mxu0 0.0
    %442 = vmatpush1.xpose.msra.mxu0 0.0
    %443 = vmatprep.subr.mxu0 0.0
    %444 = vmatpush1.xpose.msra.mxu0 0.0
    %445 = vmatprep.subr.mxu0 0.0
    %446 = vmatpush1.xpose.msra.mxu0 0.0
    %447 = vmatprep.subr.mxu0 0.0
    %448 = vmatpush1.xpose.msra.mxu0 0.0
    %449 = vmatprep.subr.mxu0 0.0
    %450 = vmatpush1.xpose.msra.mxu0 0.0
    %451 = vmatprep.subr.mxu0 0.0
    %452 = vmatpush1.xpose.msra.mxu0 0.0
    %453 = vmatprep.subr.mxu0 0.0
    %454 = vmatpush1.xpose.msra.mxu0 0.0
    %455 = vmatprep.subr.mxu0 0.0
    %456 = vmatpush1.xpose.msra.mxu0 0.0
    %457 = vmatprep.subr.mxu0 0.0
    %458 = vmatpush1.xpose.msra.mxu0 0.0
    %459 = vmatprep.subr.mxu0 0.0
    %460 = vmatpush1.xpose.msra.mxu0 0.0
    %461 = vmatprep.subr.mxu0 0.0
    %462 = vmatpush1.xpose.msra.mxu0 0.0
    %463 = vmatprep.subr.mxu0 0.0
    %464 = vmatpush1.xpose.msra.mxu0 0.0
    %465 = vmatprep.subr.mxu0 0.0
    %466 = vmatpush1.xpose.msra.mxu0 0.0
    %467 = vmatprep.subr.mxu0 0.0
    %468 = vmatpush1.xpose.msra.mxu0 0.0
    %469 = vmatprep.subr.mxu0 0.0
    %470 = vmatpush1.xpose.msra.mxu0 0.0
    %471 = vmatprep.subr.mxu0 0.0
    %472 = vmatpush1.xpose.msra.mxu0 0.0
    %473 = vmatprep.subr.mxu0 0.0
    %474 = vmatpush1.xpose.msra.mxu0 0.0
    %475 = vmatprep.subr.mxu0 0.0
    %476 = vmatpush1.xpose.msra.mxu0 0.0
    %477 = vmatprep.subr.mxu0 0.0
    %478 = vmatpush1.xpose.msra.mxu0 0.0
    %479 = vmatprep.subr.mxu0 0.0
    %480 = vmatpush1.xpose.msra.mxu0 0.0
    %481 = vmatprep.subr.mxu0 0.0
    %482 = vmatpush1.xpose.msra.mxu0 0.0
    %483 = vmatprep.subr.mxu0 0.0
    %484 = vmatpush1.xpose.msra.mxu0 0.0
    %485 = vmatprep.mubr.f32.mxu0 0.0
    %486 = vmatmul.mubr.f32.gmra.mrb[0].mxu0 %v413
    %v487 = vpop.f32.mrb[0].mxu0
    %v488 = vadd.f32 0.0, %v487
    %v489 = vpop.f32.mrb[0].mxu0
    %490 = vdwg.mxu0
    %v492 = vsel %vm174, %v162, 0
    %v495 = vsel %vm174, %v118, 0
    %v498 = vsel %vm174, %v119, 0
    %500 = vmatprep.subr.mxu0 0.0
    %501 = vmatpush1.xpose.msra.mxu0 %v495
    %502 = vmatprep.subr.mxu0 0.0
    %503 = vmatpush1.xpose.msra.mxu0 %v498
    %504 = vmatprep.subr.mxu0 0.0
    %505 = vmatpush1.xpose.msra.mxu0 0.0
    %506 = vmatprep.subr.mxu0 0.0
    %507 = vmatpush1.xpose.msra.mxu0 0.0
    %508 = vmatprep.subr.mxu0 0.0
    %509 = vmatpush1.xpose.msra.mxu0 0.0
    %510 = vmatprep.subr.mxu0 0.0
    %511 = vmatpush1.xpose.msra.mxu0 0.0
    %512 = vmatprep.subr.mxu0 0.0
    %513 = vmatpush1.xpose.msra.mxu0 0.0
    %514 = vmatprep.subr.mxu0 0.0
    %515 = vmatpush1.xpose.msra.mxu0 0.0
    %516 = vmatprep.subr.mxu0 0.0
    %517 = vmatpush1.xpose.msra.mxu0 0.0
    %518 = vmatprep.subr.mxu0 0.0
    %519 = vmatpush1.xpose.msra.mxu0 0.0
    %520 = vmatprep.subr.mxu0 0.0
    %521 = vmatpush1.xpose.msra.mxu0 0.0
    %522 = vmatprep.subr.mxu0 0.0
    %523 = vmatpush1.xpose.msra.mxu0 0.0
    %524 = vmatprep.subr.mxu0 0.0
    %525 = vmatpush1.xpose.msra.mxu0 0.0
    %526 = vmatprep.subr.mxu0 0.0
    %527 = vmatpush1.xpose.msra.mxu0 0.0
    %528 = vmatprep.subr.mxu0 0.0
    %529 = vmatpush1.xpose.msra.mxu0 0.0
    %530 = vmatprep.subr.mxu0 0.0
    %531 = vmatpush1.xpose.msra.mxu0 0.0
    %532 = vmatprep.subr.mxu0 0.0
    %533 = vmatpush1.xpose.msra.mxu0 0.0
    %534 = vmatprep.subr.mxu0 0.0
    %535 = vmatpush1.xpose.msra.mxu0 0.0
    %536 = vmatprep.subr.mxu0 0.0
    %537 = vmatpush1.xpose.msra.mxu0 0.0
    %538 = vmatprep.subr.mxu0 0.0
    %539 = vmatpush1.xpose.msra.mxu0 0.0
    %540 = vmatprep.subr.mxu0 0.0
    %541 = vmatpush1.xpose.msra.mxu0 0.0
    %542 = vmatprep.subr.mxu0 0.0
    %543 = vmatpush1.xpose.msra.mxu0 0.0
    %544 = vmatprep.subr.mxu0 0.0
    %545 = vmatpush1.xpose.msra.mxu0 0.0
    %546 = vmatprep.subr.mxu0 0.0
    %547 = vmatpush1.xpose.msra.mxu0 0.0
    %548 = vmatprep.subr.mxu0 0.0
    %549 = vmatpush1.xpose.msra.mxu0 0.0
    %550 = vmatprep.subr.mxu0 0.0
    %551 = vmatpush1.xpose.msra.mxu0 0.0
    %552 = vmatprep.subr.mxu0 0.0
    %553 = vmatpush1.xpose.msra.mxu0 0.0
    %554 = vmatprep.subr.mxu0 0.0
    %555 = vmatpush1.xpose.msra.mxu0 0.0
    %556 = vmatprep.subr.mxu0 0.0
    %557 = vmatpush1.xpose.msra.mxu0 0.0
    %558 = vmatprep.subr.mxu0 0.0
    %559 = vmatpush1.xpose.msra.mxu0 0.0
    %560 = vmatprep.subr.mxu0 0.0
    %561 = vmatpush1.xpose.msra.mxu0 0.0
    %562 = vmatprep.subr.mxu0 0.0
    %563 = vmatpush1.xpose.msra.mxu0 0.0
    %564 = vmatprep.mubr.f32.mxu0 0.0
    %565 = vmatmul.mubr.f32.gmra.mrb[0].mxu0 %v492
    %v566 = vpop.f32.mrb[0].mxu0
    %v567 = vadd.f32 0.0, %v566
    %v568 = vpop.f32.mrb[0].mxu0
    %569 = vdwg.mxu0
    %v571 = vsel %vm174, %v163, 0
    %v574 = vsel %vm174, %v120, 0
    %v577 = vsel %vm174, %v121, 0
    %579 = vmatprep.subr.mxu0 0.0
    %580 = vmatpush1.xpose.msra.mxu0 %v574
    %581 = vmatprep.subr.mxu0 0.0
    %582 = vmatpush1.xpose.msra.mxu0 %v577
    %583 = vmatprep.subr.mxu0 0.0
    %584 = vmatpush1.xpose.msra.mxu0 0.0
    %585 = vmatprep.subr.mxu0 0.0
    %586 = vmatpush1.xpose.msra.mxu0 0.0
    %587 = vmatprep.subr.mxu0 0.0
    %588 = vmatpush1.xpose.msra.mxu0 0.0
    %589 = vmatprep.subr.mxu0 0.0
    %590 = vmatpush1.xpose.msra.mxu0 0.0
    %591 = vmatprep.subr.mxu0 0.0
    %592 = vmatpush1.xpose.msra.mxu0 0.0
    %593 = vmatprep.subr.mxu0 0.0
    %594 = vmatpush1.xpose.msra.mxu0 0.0
    %595 = vmatprep.subr.mxu0 0.0
    %596 = vmatpush1.xpose.msra.mxu0 0.0
    %597 = vmatprep.subr.mxu0 0.0
    %598 = vmatpush1.xpose.msra.mxu0 0.0
    %599 = vmatprep.subr.mxu0 0.0
    %600 = vmatpush1.xpose.msra.mxu0 0.0
    %601 = vmatprep.subr.mxu0 0.0
    %602 = vmatpush1.xpose.msra.mxu0 0.0
    %603 = vmatprep.subr.mxu0 0.0
    %604 = vmatpush1.xpose.msra.mxu0 0.0
    %605 = vmatprep.subr.mxu0 0.0
    %606 = vmatpush1.xpose.msra.mxu0 0.0
    %607 = vmatprep.subr.mxu0 0.0
    %608 = vmatpush1.xpose.msra.mxu0 0.0
    %609 = vmatprep.subr.mxu0 0.0
    %610 = vmatpush1.xpose.msra.mxu0 0.0
    %611 = vmatprep.subr.mxu0 0.0
    %612 = vmatpush1.xpose.msra.mxu0 0.0
    %613 = vmatprep.subr.mxu0 0.0
    %614 = vmatpush1.xpose.msra.mxu0 0.0
    %615 = vmatprep.subr.mxu0 0.0
    %616 = vmatpush1.xpose.msra.mxu0 0.0
    %617 = vmatprep.subr.mxu0 0.0
    %618 = vmatpush1.xpose.msra.mxu0 0.0
    %619 = vmatprep.subr.mxu0 0.0
    %620 = vmatpush1.xpose.msra.mxu0 0.0
    %621 = vmatprep.subr.mxu0 0.0
    %622 = vmatpush1.xpose.msra.mxu0 0.0
    %623 = vmatprep.subr.mxu0 0.0
    %624 = vmatpush1.xpose.msra.mxu0 0.0
    %625 = vmatprep.subr.mxu0 0.0
    %626 = vmatpush1.xpose.msra.mxu0 0.0
    %627 = vmatprep.subr.mxu0 0.0
    %628 = vmatpush1.xpose.msra.mxu0 0.0
    %629 = vmatprep.subr.mxu0 0.0
    %630 = vmatpush1.xpose.msra.mxu0 0.0
    %631 = vmatprep.subr.mxu0 0.0
    %632 = vmatpush1.xpose.msra.mxu0 0.0
    %633 = vmatprep.subr.mxu0 0.0
    %634 = vmatpush1.xpose.msra.mxu0 0.0
    %635 = vmatprep.subr.mxu0 0.0
    %636 = vmatpush1.xpose.msra.mxu0 0.0
    %637 = vmatprep.subr.mxu0 0.0
    %638 = vmatpush1.xpose.msra.mxu0 0.0
    %639 = vmatprep.subr.mxu0 0.0
    %640 = vmatpush1.xpose.msra.mxu0 0.0
    %641 = vmatprep.subr.mxu0 0.0
    %642 = vmatpush1.xpose.msra.mxu0 0.0
    %643 = vmatprep.mubr.f32.mxu0 0.0
    %644 = vmatmul.mubr.f32.gmra.mrb[0].mxu0 %v571
    %v645 = vpop.f32.mrb[0].mxu0
    %v646 = vadd.f32 0.0, %v645
    %v647 = vpop.f32.mrb[0].mxu0
    %648 = vdwg.mxu0
    %v650 = vsel %vm174, %v164, 0
    %v653 = vsel %vm174, %v122, 0
    %v656 = vsel %vm174, %v123, 0
    %658 = vmatprep.subr.mxu0 0.0
    %659 = vmatpush1.xpose.msra.mxu0 %v653
    %660 = vmatprep.subr.mxu0 0.0
    %661 = vmatpush1.xpose.msra.mxu0 %v656
    %662 = vmatprep.subr.mxu0 0.0
    %663 = vmatpush1.xpose.msra.mxu0 0.0
    %664 = vmatprep.subr.mxu0 0.0
    %665 = vmatpush1.xpose.msra.mxu0 0.0
    %666 = vmatprep.subr.mxu0 0.0
    %667 = vmatpush1.xpose.msra.mxu0 0.0
    %668 = vmatprep.subr.mxu0 0.0
    %669 = vmatpush1.xpose.msra.mxu0 0.0
    %670 = vmatprep.subr.mxu0 0.0
    %671 = vmatpush1.xpose.msra.mxu0 0.0
    %672 = vmatprep.subr.mxu0 0.0
    %673 = vmatpush1.xpose.msra.mxu0 0.0
    %674 = vmatprep.subr.mxu0 0.0
    %675 = vmatpush1.xpose.msra.mxu0 0.0
    %676 = vmatprep.subr.mxu0 0.0
    %677 = vmatpush1.xpose.msra.mxu0 0.0
    %678 = vmatprep.subr.mxu0 0.0
    %679 = vmatpush1.xpose.msra.mxu0 0.0
    %680 = vmatprep.subr.mxu0 0.0
    %681 = vmatpush1.xpose.msra.mxu0 0.0
    %682 = vmatprep.subr.mxu0 0.0
    %683 = vmatpush1.xpose.msra.mxu0 0.0
    %684 = vmatprep.subr.mxu0 0.0
    %685 = vmatpush1.xpose.msra.mxu0 0.0
    %686 = vmatprep.subr.mxu0 0.0
    %687 = vmatpush1.xpose.msra.mxu0 0.0
    %688 = vmatprep.subr.mxu0 0.0
    %689 = vmatpush1.xpose.msra.mxu0 0.0
    %690 = vmatprep.subr.mxu0 0.0
    %691 = vmatpush1.xpose.msra.mxu0 0.0
    %692 = vmatprep.subr.mxu0 0.0
    %693 = vmatpush1.xpose.msra.mxu0 0.0
    %694 = vmatprep.subr.mxu0 0.0
    %695 = vmatpush1.xpose.msra.mxu0 0.0
    %696 = vmatprep.subr.mxu0 0.0
    %697 = vmatpush1.xpose.msra.mxu0 0.0
    %698 = vmatprep.subr.mxu0 0.0
    %699 = vmatpush1.xpose.msra.mxu0 0.0
    %700 = vmatprep.subr.mxu0 0.0
    %701 = vmatpush1.xpose.msra.mxu0 0.0
    %702 = vmatprep.subr.mxu0 0.0
    %703 = vmatpush1.xpose.msra.mxu0 0.0
    %704 = vmatprep.subr.mxu0 0.0
    %705 = vmatpush1.xpose.msra.mxu0 0.0
    %706 = vmatprep.subr.mxu0 0.0
    %707 = vmatpush1.xpose.msra.mxu0 0.0
    %708 = vmatprep.subr.mxu0 0.0
    %709 = vmatpush1.xpose.msra.mxu0 0.0
    %710 = vmatprep.subr.mxu0 0.0
    %711 = vmatpush1.xpose.msra.mxu0 0.0
    %712 = vmatprep.subr.mxu0 0.0
    %713 = vmatpush1.xpose.msra.mxu0 0.0
    %714 = vmatprep.subr.mxu0 0.0
    %715 = vmatpush1.xpose.msra.mxu0 0.0
    %716 = vmatprep.subr.mxu0 0.0
    %717 = vmatpush1.xpose.msra.mxu0 0.0
    %718 = vmatprep.subr.mxu0 0.0
    %719 = vmatpush1.xpose.msra.mxu0 0.0
    %720 = vmatprep.subr.mxu0 0.0
    %721 = vmatpush1.xpose.msra.mxu0 0.0
    %722 = vmatprep.mubr.f32.mxu0 0.0
    %723 = vmatmul.mubr.f32.gmra.mrb[0].mxu0 %v650
    %v724 = vpop.f32.mrb[0].mxu0
    %v725 = vadd.f32 0.0, %v724
    %v726 = vpop.f32.mrb[0].mxu0
    %727 = vdwg.mxu0
    %v729 = vsel %vm174, %v165, 0
    %v732 = vsel %vm174, %v124, 0
    %v735 = vsel %vm174, %v125, 0
    %737 = vmatprep.subr.mxu0 0.0
    %738 = vmatpush1.xpose.msra.mxu0 %v732
    %739 = vmatprep.subr.mxu0 0.0
    %740 = vmatpush1.xpose.msra.mxu0 %v735
    %741 = vmatprep.subr.mxu0 0.0
    %742 = vmatpush1.xpose.msra.mxu0 0.0
    %743 = vmatprep.subr.mxu0 0.0
    %744 = vmatpush1.xpose.msra.mxu0 0.0
    %745 = vmatprep.subr.mxu0 0.0
    %746 = vmatpush1.xpose.msra.mxu0 0.0
    %747 = vmatprep.subr.mxu0 0.0
    %748 = vmatpush1.xpose.msra.mxu0 0.0
    %749 = vmatprep.subr.mxu0 0.0
    %750 = vmatpush1.xpose.msra.mxu0 0.0
    %751 = vmatprep.subr.mxu0 0.0
    %752 = vmatpush1.xpose.msra.mxu0 0.0
    %753 = vmatprep.subr.mxu0 0.0
    %754 = vmatpush1.xpose.msra.mxu0 0.0
    %755 = vmatprep.subr.mxu0 0.0
    %756 = vmatpush1.xpose.msra.mxu0 0.0
    %757 = vmatprep.subr.mxu0 0.0
    %758 = vmatpush1.xpose.msra.mxu0 0.0
    %759 = vmatprep.subr.mxu0 0.0
    %760 = vmatpush1.xpose.msra.mxu0 0.0
    %761 = vmatprep.subr.mxu0 0.0
    %762 = vmatpush1.xpose.msra.mxu0 0.0
    %763 = vmatprep.subr.mxu0 0.0
    %764 = vmatpush1.xpose.msra.mxu0 0.0
    %765 = vmatprep.subr.mxu0 0.0
    %766 = vmatpush1.xpose.msra.mxu0 0.0
    %767 = vmatprep.subr.mxu0 0.0
    %768 = vmatpush1.xpose.msra.mxu0 0.0
    %769 = vmatprep.subr.mxu0 0.0
    %770 = vmatpush1.xpose.msra.mxu0 0.0
    %771 = vmatprep.subr.mxu0 0.0
    %772 = vmatpush1.xpose.msra.mxu0 0.0
    %773 = vmatprep.subr.mxu0 0.0
    %774 = vmatpush1.xpose.msra.mxu0 0.0
    %775 = vmatprep.subr.mxu0 0.0
    %776 = vmatpush1.xpose.msra.mxu0 0.0
    %777 = vmatprep.subr.mxu0 0.0
    %778 = vmatpush1.xpose.msra.mxu0 0.0
    %779 = vmatprep.subr.mxu0 0.0
    %780 = vmatpush1.xpose.msra.mxu0 0.0
    %781 = vmatprep.subr.mxu0 0.0
    %782 = vmatpush1.xpose.msra.mxu0 0.0
    %783 = vmatprep.subr.mxu0 0.0
    %784 = vmatpush1.xpose.msra.mxu0 0.0
    %785 = vmatprep.subr.mxu0 0.0
    %786 = vmatpush1.xpose.msra.mxu0 0.0
    %787 = vmatprep.subr.mxu0 0.0
    %788 = vmatpush1.xpose.msra.mxu0 0.0
    %789 = vmatprep.subr.mxu0 0.0
    %790 = vmatpush1.xpose.msra.mxu0 0.0
    %791 = vmatprep.subr.mxu0 0.0
    %792 = vmatpush1.xpose.msra.mxu0 0.0
    %793 = vmatprep.subr.mxu0 0.0
    %794 = vmatpush1.xpose.msra.mxu0 0.0
    %795 = vmatprep.subr.mxu0 0.0
    %796 = vmatpush1.xpose.msra.mxu0 0.0
    %797 = vmatprep.subr.mxu0 0.0
    %798 = vmatpush1.xpose.msra.mxu0 0.0
    %799 = vmatprep.subr.mxu0 0.0
    %800 = vmatpush1.xpose.msra.mxu0 0.0
    %801 = vmatprep.mubr.f32.mxu0 0.0
    %802 = vmatmul.mubr.f32.gmra.mrb[0].mxu0 %v729
    %v803 = vpop.f32.mrb[0].mxu0
    %v804 = vadd.f32 0.0, %v803
    %v805 = vpop.f32.mrb[0].mxu0
    %806 = vdwg.mxu0
    %v808 = vsel %vm174, %v166, 0
    %v811 = vsel %vm174, %v126, 0
    %v814 = vsel %vm174, %v127, 0
    %816 = vmatprep.subr.mxu0 0.0
    %817 = vmatpush1.xpose.msra.mxu0 %v811
    %818 = vmatprep.subr.mxu0 0.0
    %819 = vmatpush1.xpose.msra.mxu0 %v814
    %820 = vmatprep.subr.mxu0 0.0
    %821 = vmatpush1.xpose.msra.mxu0 0.0
    %822 = vmatprep.subr.mxu0 0.0
    %823 = vmatpush1.xpose.msra.mxu0 0.0
    %824 = vmatprep.subr.mxu0 0.0
    %825 = vmatpush1.xpose.msra.mxu0 0.0
    %826 = vmatprep.subr.mxu0 0.0
    %827 = vmatpush1.xpose.msra.mxu0 0.0
    %828 = vmatprep.subr.mxu0 0.0
    %829 = vmatpush1.xpose.msra.mxu0 0.0
    %830 = vmatprep.subr.mxu0 0.0
    %831 = vmatpush1.xpose.msra.mxu0 0.0
    %832 = vmatprep.subr.mxu0 0.0
    %833 = vmatpush1.xpose.msra.mxu0 0.0
    %834 = vmatprep.subr.mxu0 0.0
    %835 = vmatpush1.xpose.msra.mxu0 0.0
    %836 = vmatprep.subr.mxu0 0.0
    %837 = vmatpush1.xpose.msra.mxu0 0.0
    %838 = vmatprep.subr.mxu0 0.0
    %839 = vmatpush1.xpose.msra.mxu0 0.0
    %840 = vmatprep.subr.mxu0 0.0
    %841 = vmatpush1.xpose.msra.mxu0 0.0
    %842 = vmatprep.subr.mxu0 0.0
    %843 = vmatpush1.xpose.msra.mxu0 0.0
    %844 = vmatprep.subr.mxu0 0.0
    %845 = vmatpush1.xpose.msra.mxu0 0.0
    %846 = vmatprep.subr.mxu0 0.0
    %847 = vmatpush1.xpose.msra.mxu0 0.0
    %848 = vmatprep.subr.mxu0 0.0
    %849 = vmatpush1.xpose.msra.mxu0 0.0
    %850 = vmatprep.subr.mxu0 0.0
    %851 = vmatpush1.xpose.msra.mxu0 0.0
    %852 = vmatprep.subr.mxu0 0.0
    %853 = vmatpush1.xpose.msra.mxu0 0.0
    %854 = vmatprep.subr.mxu0 0.0
    %855 = vmatpush1.xpose.msra.mxu0 0.0
    %856 = vmatprep.subr.mxu0 0.0
    %857 = vmatpush1.xpose.msra.mxu0 0.0
    %858 = vmatprep.subr.mxu0 0.0
    %859 = vmatpush1.xpose.msra.mxu0 0.0
    %860 = vmatprep.subr.mxu0 0.0
    %861 = vmatpush1.xpose.msra.mxu0 0.0
    %862 = vmatprep.subr.mxu0 0.0
    %863 = vmatpush1.xpose.msra.mxu0 0.0
    %864 = vmatprep.subr.mxu0 0.0
    %865 = vmatpush1.xpose.msra.mxu0 0.0
    %866 = vmatprep.subr.mxu0 0.0
    %867 = vmatpush1.xpose.msra.mxu0 0.0
    %868 = vmatprep.subr.mxu0 0.0
    %869 = vmatpush1.xpose.msra.mxu0 0.0
    %870 = vmatprep.subr.mxu0 0.0
    %871 = vmatpush1.xpose.msra.mxu0 0.0
    %872 = vmatprep.subr.mxu0 0.0
    %873 = vmatpush1.xpose.msra.mxu0 0.0
    %874 = vmatprep.subr.mxu0 0.0
    %875 = vmatpush1.xpose.msra.mxu0 0.0
    %876 = vmatprep.subr.mxu0 0.0
    %877 = vmatpush1.xpose.msra.mxu0 0.0
    %878 = vmatprep.subr.mxu0 0.0
    %879 = vmatpush1.xpose.msra.mxu0 0.0
    %880 = vmatprep.mubr.f32.mxu0 0.0
    %881 = vmatmul.mubr.f32.gmra.mrb[0].mxu0 %v808
    %v882 = vpop.f32.mrb[0].mxu0
    %v883 = vadd.f32 0.0, %v882
    %v884 = vpop.f32.mrb[0].mxu0
    %885 = vdwg.mxu0
    %v887 = vsel %vm174, %v167, 0
    %v890 = vsel %vm174, %v128, 0
    %v893 = vsel %vm174, %v129, 0
    %895 = vmatprep.subr.mxu0 0.0
    %896 = vmatpush1.xpose.msra.mxu0 %v890
    %897 = vmatprep.subr.mxu0 0.0
    %898 = vmatpush1.xpose.msra.mxu0 %v893
    %899 = vmatprep.subr.mxu0 0.0
    %900 = vmatpush1.xpose.msra.mxu0 0.0
    %901 = vmatprep.subr.mxu0 0.0
    %902 = vmatpush1.xpose.msra.mxu0 0.0
    %903 = vmatprep.subr.mxu0 0.0
    %904 = vmatpush1.xpose.msra.mxu0 0.0
    %905 = vmatprep.subr.mxu0 0.0
    %906 = vmatpush1.xpose.msra.mxu0 0.0
    %907 = vmatprep.subr.mxu0 0.0
    %908 = vmatpush1.xpose.msra.mxu0 0.0
    %909 = vmatprep.subr.mxu0 0.0
    %910 = vmatpush1.xpose.msra.mxu0 0.0
    %911 = vmatprep.subr.mxu0 0.0
    %912 = vmatpush1.xpose.msra.mxu0 0.0
    %913 = vmatprep.subr.mxu0 0.0
    %914 = vmatpush1.xpose.msra.mxu0 0.0
    %915 = vmatprep.subr.mxu0 0.0
    %916 = vmatpush1.xpose.msra.mxu0 0.0
    %917 = vmatprep.subr.mxu0 0.0
    %918 = vmatpush1.xpose.msra.mxu0 0.0
    %919 = vmatprep.subr.mxu0 0.0
    %920 = vmatpush1.xpose.msra.mxu0 0.0
    %921 = vmatprep.subr.mxu0 0.0
    %922 = vmatpush1.xpose.msra.mxu0 0.0
    %923 = vmatprep.subr.mxu0 0.0
    %924 = vmatpush1.xpose.msra.mxu0 0.0
    %925 = vmatprep.subr.mxu0 0.0
    %926 = vmatpush1.xpose.msra.mxu0 0.0
    %927 = vmatprep.subr.mxu0 0.0
    %928 = vmatpush1.xpose.msra.mxu0 0.0
    %929 = vmatprep.subr.mxu0 0.0
    %930 = vmatpush1.xpose.msra.mxu0 0.0
    %931 = vmatprep.subr.mxu0 0.0
    %932 = vmatpush1.xpose.msra.mxu0 0.0
    %933 = vmatprep.subr.mxu0 0.0
    %934 = vmatpush1.xpose.msra.mxu0 0.0
    %935 = vmatprep.subr.mxu0 0.0
    %936 = vmatpush1.xpose.msra.mxu0 0.0
    %937 = vmatprep.subr.mxu0 0.0
    %938 = vmatpush1.xpose.msra.mxu0 0.0
    %939 = vmatprep.subr.mxu0 0.0
    %940 = vmatpush1.xpose.msra.mxu0 0.0
    %941 = vmatprep.subr.mxu0 0.0
    %942 = vmatpush1.xpose.msra.mxu0 0.0
    %943 = vmatprep.subr.mxu0 0.0
    %944 = vmatpush1.xpose.msra.mxu0 0.0
    %945 = vmatprep.subr.mxu0 0.0
    %946 = vmatpush1.xpose.msra.mxu0 0.0
    %947 = vmatprep.subr.mxu0 0.0
    %948 = vmatpush1.xpose.msra.mxu0 0.0
    %949 = vmatprep.subr.mxu0 0.0
    %950 = vmatpush1.xpose.msra.mxu0 0.0
    %951 = vmatprep.subr.mxu0 0.0
    %952 = vmatpush1.xpose.msra.mxu0 0.0
    %953 = vmatprep.subr.mxu0 0.0
    %954 = vmatpush1.xpose.msra.mxu0 0.0
    %955 = vmatprep.subr.mxu0 0.0
    %956 = vmatpush1.xpose.msra.mxu0 0.0
    %957 = vmatprep.subr.mxu0 0.0
    %958 = vmatpush1.xpose.msra.mxu0 0.0
    %959 = vmatprep.mubr.f32.mxu0 0.0
    %960 = vmatmul.mubr.f32.gmra.mrb[0].mxu0 %v887
    %v961 = vpop.f32.mrb[0].mxu0
    %v962 = vadd.f32 0.0, %v961
    %v963 = vpop.f32.mrb[0].mxu0
    %964 = vdwg.mxu0
    %v966 = vsel %vm174, %v168, 0
    %v969 = vsel %vm174, %v130, 0
    %v972 = vsel %vm174, %v131, 0
    %974 = vmatprep.subr.mxu0 0.0
    %975 = vmatpush1.xpose.msra.mxu0 %v969
    %976 = vmatprep.subr.mxu0 0.0
    %977 = vmatpush1.xpose.msra.mxu0 %v972
    %978 = vmatprep.subr.mxu0 0.0
    %979 = vmatpush1.xpose.msra.mxu0 0.0
    %980 = vmatprep.subr.mxu0 0.0
    %981 = vmatpush1.xpose.msra.mxu0 0.0
    %982 = vmatprep.subr.mxu0 0.0
    %983 = vmatpush1.xpose.msra.mxu0 0.0
    %984 = vmatprep.subr.mxu0 0.0
    %985 = vmatpush1.xpose.msra.mxu0 0.0
    %986 = vmatprep.subr.mxu0 0.0
    %987 = vmatpush1.xpose.msra.mxu0 0.0
    %988 = vmatprep.subr.mxu0 0.0
    %989 = vmatpush1.xpose.msra.mxu0 0.0
    %990 = vmatprep.subr.mxu0 0.0
    %991 = vmatpush1.xpose.msra.mxu0 0.0
    %992 = vmatprep.subr.mxu0 0.0
    %993 = vmatpush1.xpose.msra.mxu0 0.0
    %994 = vmatprep.subr.mxu0 0.0
    %995 = vmatpush1.xpose.msra.mxu0 0.0
    %996 = vmatprep.subr.mxu0 0.0
    %997 = vmatpush1.xpose.msra.mxu0 0.0
    %998 = vmatprep.subr.mxu0 0.0
    %999 = vmatpush1.xpose.msra.mxu0 0.0
    %1000 = vmatprep.subr.mxu0 0.0
    %1001 = vmatpush1.xpose.msra.mxu0 0.0
    %1002 = vmatprep.subr.mxu0 0.0
    %1003 = vmatpush1.xpose.msra.mxu0 0.0
    %1004 = vmatprep.subr.mxu0 0.0
    %1005 = vmatpush1.xpose.msra.mxu0 0.0
    %1006 = vmatprep.subr.mxu0 0.0
    %1007 = vmatpush1.xpose.msra.mxu0 0.0
    %1008 = vmatprep.subr.mxu0 0.0
    %1009 = vmatpush1.xpose.msra.mxu0 0.0
    %1010 = vmatprep.subr.mxu0 0.0
    %1011 = vmatpush1.xpose.msra.mxu0 0.0
    %1012 = vmatprep.subr.mxu0 0.0
    %1013 = vmatpush1.xpose.msra.mxu0 0.0
    %1014 = vmatprep.subr.mxu0 0.0
    %1015 = vmatpush1.xpose.msra.mxu0 0.0
    %1016 = vmatprep.subr.mxu0 0.0
    %1017 = vmatpush1.xpose.msra.mxu0 0.0
    %1018 = vmatprep.subr.mxu0 0.0
    %1019 = vmatpush1.xpose.msra.mxu0 0.0
    %1020 = vmatprep.subr.mxu0 0.0
    %1021 = vmatpush1.xpose.msra.mxu0 0.0
    %1022 = vmatprep.subr.mxu0 0.0
    %1023 = vmatpush1.xpose.msra.mxu0 0.0
    %1024 = vmatprep.subr.mxu0 0.0
    %1025 = vmatpush1.xpose.msra.mxu0 0.0
    %1026 = vmatprep.subr.mxu0 0.0
    %1027 = vmatpush1.xpose.msra.mxu0 0.0
    %1028 = vmatprep.subr.mxu0 0.0
    %1029 = vmatpush1.xpose.msra.mxu0 0.0
    %1030 = vmatprep.subr.mxu0 0.0
    %1031 = vmatpush1.xpose.msra.mxu0 0.0
    %1032 = vmatprep.subr.mxu0 0.0
    %1033 = vmatpush1.xpose.msra.mxu0 0.0
    %1034 = vmatprep.subr.mxu0 0.0
    %1035 = vmatpush1.xpose.msra.mxu0 0.0
    %1036 = vmatprep.subr.mxu0 0.0
    %1037 = vmatpush1.xpose.msra.mxu0 0.0
    %1038 = vmatprep.mubr.f32.mxu0 0.0
    %1039 = vmatmul.mubr.f32.gmra.mrb[0].mxu0 %v966
    %v1040 = vpop.f32.mrb[0].mxu0
    %v1041 = vadd.f32 0.0, %v1040
    %v1042 = vpop.f32.mrb[0].mxu0
    %1043 = vdwg.mxu0
    %v1045 = vsel %vm174, %v169, 0
    %v1048 = vsel %vm174, %v132, 0
    %v1051 = vsel %vm174, %v133, 0
    %1053 = vmatprep.subr.mxu0 0.0
    %1054 = vmatpush1.xpose.msra.mxu0 %v1048
    %1055 = vmatprep.subr.mxu0 0.0
    %1056 = vmatpush1.xpose.msra.mxu0 %v1051
    %1057 = vmatprep.subr.mxu0 0.0
    %1058 = vmatpush1.xpose.msra.mxu0 0.0
    %1059 = vmatprep.subr.mxu0 0.0
    %1060 = vmatpush1.xpose.msra.mxu0 0.0
    %1061 = vmatprep.subr.mxu0 0.0
    %1062 = vmatpush1.xpose.msra.mxu0 0.0
    %1063 = vmatprep.subr.mxu0 0.0
    %1064 = vmatpush1.xpose.msra.mxu0 0.0
    %1065 = vmatprep.subr.mxu0 0.0
    %1066 = vmatpush1.xpose.msra.mxu0 0.0
    %1067 = vmatprep.subr.mxu0 0.0
    %1068 = vmatpush1.xpose.msra.mxu0 0.0
    %1069 = vmatprep.subr.mxu0 0.0
    %1070 = vmatpush1.xpose.msra.mxu0 0.0
    %1071 = vmatprep.subr.mxu0 0.0
    %1072 = vmatpush1.xpose.msra.mxu0 0.0
    %1073 = vmatprep.subr.mxu0 0.0
    %1074 = vmatpush1.xpose.msra.mxu0 0.0
    %1075 = vmatprep.subr.mxu0 0.0
    %1076 = vmatpush1.xpose.msra.mxu0 0.0
    %1077 = vmatprep.subr.mxu0 0.0
    %1078 = vmatpush1.xpose.msra.mxu0 0.0
    %1079 = vmatprep.subr.mxu0 0.0
    %1080 = vmatpush1.xpose.msra.mxu0 0.0
    %1081 = vmatprep.subr.mxu0 0.0
    %1082 = vmatpush1.xpose.msra.mxu0 0.0
    %1083 = vmatprep.subr.mxu0 0.0
    %1084 = vmatpush1.xpose.msra.mxu0 0.0
    %1085 = vmatprep.subr.mxu0 0.0
    %1086 = vmatpush1.xpose.msra.mxu0 0.0
    %1087 = vmatprep.subr.mxu0 0.0
    %1088 = vmatpush1.xpose.msra.mxu0 0.0
    %1089 = vmatprep.subr.mxu0 0.0
    %1090 = vmatpush1.xpose.msra.mxu0 0.0
    %1091 = vmatprep.subr.mxu0 0.0
    %1092 = vmatpush1.xpose.msra.mxu0 0.0
    %1093 = vmatprep.subr.mxu0 0.0
    %1094 = vmatpush1.xpose.msra.mxu0 0.0
    %1095 = vmatprep.subr.mxu0 0.0
    %1096 = vmatpush1.xpose.msra.mxu0 0.0
    %1097 = vmatprep.subr.mxu0 0.0
    %1098 = vmatpush1.xpose.msra.mxu0 0.0
    %1099 = vmatprep.subr.mxu0 0.0
    %1100 = vmatpush1.xpose.msra.mxu0 0.0
    %1101 = vmatprep.subr.mxu0 0.0
    %1102 = vmatpush1.xpose.msra.mxu0 0.0
    %1103 = vmatprep.subr.mxu0 0.0
    %1104 = vmatpush1.xpose.msra.mxu0 0.0
    %1105 = vmatprep.subr.mxu0 0.0
    %1106 = vmatpush1.xpose.msra.mxu0 0.0
    %1107 = vmatprep.subr.mxu0 0.0
    %1108 = vmatpush1.xpose.msra.mxu0 0.0
    %1109 = vmatprep.subr.mxu0 0.0
    %1110 = vmatpush1.xpose.msra.mxu0 0.0
    %1111 = vmatprep.subr.mxu0 0.0
    %1112 = vmatpush1.xpose.msra.mxu0 0.0
    %1113 = vmatprep.subr.mxu0 0.0
    %1114 = vmatpush1.xpose.msra.mxu0 0.0
    %1115 = vmatprep.subr.mxu0 0.0
    %1116 = vmatpush1.xpose.msra.mxu0 0.0
    %1117 = vmatprep.mubr.f32.mxu0 0.0
    %1118 = vmatmul.mubr.f32.gmra.mrb[0].mxu0 %v1045
    %v1119 = vpop.f32.mrb[0].mxu0
    %v1120 = vadd.f32 0.0, %v1119
    %v1121 = vpop.f32.mrb[0].mxu0
    %1122 = vdwg.mxu0
    %v1124 = vsel %vm174, %v170, 0
    %v1127 = vsel %vm174, %v134, 0
    %v1130 = vsel %vm174, %v135, 0
    %1132 = vmatprep.subr.mxu0 0.0
    %1133 = vmatpush1.xpose.msra.mxu0 %v1127
    %1134 = vmatprep.subr.mxu0 0.0
    %1135 = vmatpush1.xpose.msra.mxu0 %v1130
    %1136 = vmatprep.subr.mxu0 0.0
    %1137 = vmatpush1.xpose.msra.mxu0 0.0
    %1138 = vmatprep.subr.mxu0 0.0
    %1139 = vmatpush1.xpose.msra.mxu0 0.0
    %1140 = vmatprep.subr.mxu0 0.0
    %1141 = vmatpush1.xpose.msra.mxu0 0.0
    %1142 = vmatprep.subr.mxu0 0.0
    %1143 = vmatpush1.xpose.msra.mxu0 0.0
    %1144 = vmatprep.subr.mxu0 0.0
    %1145 = vmatpush1.xpose.msra.mxu0 0.0
    %1146 = vmatprep.subr.mxu0 0.0
    %1147 = vmatpush1.xpose.msra.mxu0 0.0
    %1148 = vmatprep.subr.mxu0 0.0
    %1149 = vmatpush1.xpose.msra.mxu0 0.0
    %1150 = vmatprep.subr.mxu0 0.0
    %1151 = vmatpush1.xpose.msra.mxu0 0.0
    %1152 = vmatprep.subr.mxu0 0.0
    %1153 = vmatpush1.xpose.msra.mxu0 0.0
    %1154 = vmatprep.subr.mxu0 0.0
    %1155 = vmatpush1.xpose.msra.mxu0 0.0
    %1156 = vmatprep.subr.mxu0 0.0
    %1157 = vmatpush1.xpose.msra.mxu0 0.0
    %1158 = vmatprep.subr.mxu0 0.0
    %1159 = vmatpush1.xpose.msra.mxu0 0.0
    %1160 = vmatprep.subr.mxu0 0.0
    %1161 = vmatpush1.xpose.msra.mxu0 0.0
    %1162 = vmatprep.subr.mxu0 0.0
    %1163 = vmatpush1.xpose.msra.mxu0 0.0
    %1164 = vmatprep.subr.mxu0 0.0
    %1165 = vmatpush1.xpose.msra.mxu0 0.0
    %1166 = vmatprep.subr.mxu0 0.0
    %1167 = vmatpush1.xpose.msra.mxu0 0.0
    %1168 = vmatprep.subr.mxu0 0.0
    %1169 = vmatpush1.xpose.msra.mxu0 0.0
    %1170 = vmatprep.subr.mxu0 0.0
    %1171 = vmatpush1.xpose.msra.mxu0 0.0
    %1172 = vmatprep.subr.mxu0 0.0
    %1173 = vmatpush1.xpose.msra.mxu0 0.0
    %1174 = vmatprep.subr.mxu0 0.0
    %1175 = vmatpush1.xpose.msra.mxu0 0.0
    %1176 = vmatprep.subr.mxu0 0.0
    %1177 = vmatpush1.xpose.msra.mxu0 0.0
    %1178 = vmatprep.subr.mxu0 0.0
    %1179 = vmatpush1.xpose.msra.mxu0 0.0
    %1180 = vmatprep.subr.mxu0 0.0
    %1181 = vmatpush1.xpose.msra.mxu0 0.0
    %1182 = vmatprep.subr.mxu0 0.0
    %1183 = vmatpush1.xpose.msra.mxu0 0.0
    %1184 = vmatprep.subr.mxu0 0.0
    %1185 = vmatpush1.xpose.msra.mxu0 0.0
    %1186 = vmatprep.subr.mxu0 0.0
    %1187 = vmatpush1.xpose.msra.mxu0 0.0
    %1188 = vmatprep.subr.mxu0 0.0
    %1189 = vmatpush1.xpose.msra.mxu0 0.0
    %1190 = vmatprep.subr.mxu0 0.0
    %1191 = vmatpush1.xpose.msra.mxu0 0.0
    %1192 = vmatprep.subr.mxu0 0.0
    %1193 = vmatpush1.xpose.msra.mxu0 0.0
    %1194 = vmatprep.subr.mxu0 0.0
    %1195 = vmatpush1.xpose.msra.mxu0 0.0
    %1196 = vmatprep.mubr.f32.mxu0 0.0
    %1197 = vmatmul.mubr.f32.gmra.mrb[0].mxu0 %v1124
    %v1198 = vpop.f32.mrb[0].mxu0
    %v1199 = vadd.f32 0.0, %v1198
    %v1200 = vpop.f32.mrb[0].mxu0
    %1201 = vdwg.mxu0
    %v1203 = vsel %vm174, %v171, 0
    %v1206 = vsel %vm174, %v136, 0
    %v1209 = vsel %vm174, %v137, 0
    %1211 = vmatprep.subr.mxu0 0.0
    %1212 = vmatpush1.xpose.msra.mxu0 %v1206
    %1213 = vmatprep.subr.mxu0 0.0
    %1214 = vmatpush1.xpose.msra.mxu0 %v1209
    %1215 = vmatprep.subr.mxu0 0.0
    %1216 = vmatpush1.xpose.msra.mxu0 0.0
    %1217 = vmatprep.subr.mxu0 0.0
    %1218 = vmatpush1.xpose.msra.mxu0 0.0
    %1219 = vmatprep.subr.mxu0 0.0
    %1220 = vmatpush1.xpose.msra.mxu0 0.0
    %1221 = vmatprep.subr.mxu0 0.0
    %1222 = vmatpush1.xpose.msra.mxu0 0.0
    %1223 = vmatprep.subr.mxu0 0.0
    %1224 = vmatpush1.xpose.msra.mxu0 0.0
    %1225 = vmatprep.subr.mxu0 0.0
    %1226 = vmatpush1.xpose.msra.mxu0 0.0
    %1227 = vmatprep.subr.mxu0 0.0
    %1228 = vmatpush1.xpose.msra.mxu0 0.0
    %1229 = vmatprep.subr.mxu0 0.0
    %1230 = vmatpush1.xpose.msra.mxu0 0.0
    %1231 = vmatprep.subr.mxu0 0.0
    %1232 = vmatpush1.xpose.msra.mxu0 0.0
    %1233 = vmatprep.subr.mxu0 0.0
    %1234 = vmatpush1.xpose.msra.mxu0 0.0
    %1235 = vmatprep.subr.mxu0 0.0
    %1236 = vmatpush1.xpose.msra.mxu0 0.0
    %1237 = vmatprep.subr.mxu0 0.0
    %1238 = vmatpush1.xpose.msra.mxu0 0.0
    %1239 = vmatprep.subr.mxu0 0.0
    %1240 = vmatpush1.xpose.msra.mxu0 0.0
    %1241 = vmatprep.subr.mxu0 0.0
    %1242 = vmatpush1.xpose.msra.mxu0 0.0
    %1243 = vmatprep.subr.mxu0 0.0
    %1244 = vmatpush1.xpose.msra.mxu0 0.0
    %1245 = vmatprep.subr.mxu0 0.0
    %1246 = vmatpush1.xpose.msra.mxu0 0.0
    %1247 = vmatprep.subr.mxu0 0.0
    %1248 = vmatpush1.xpose.msra.mxu0 0.0
    %1249 = vmatprep.subr.mxu0 0.0
    %1250 = vmatpush1.xpose.msra.mxu0 0.0
    %1251 = vmatprep.subr.mxu0 0.0
    %1252 = vmatpush1.xpose.msra.mxu0 0.0
    %1253 = vmatprep.subr.mxu0 0.0
    %1254 = vmatpush1.xpose.msra.mxu0 0.0
    %1255 = vmatprep.subr.mxu0 0.0
    %1256 = vmatpush1.xpose.msra.mxu0 0.0
    %1257 = vmatprep.subr.mxu0 0.0
    %1258 = vmatpush1.xpose.msra.mxu0 0.0
    %1259 = vmatprep.subr.mxu0 0.0
    %1260 = vmatpush1.xpose.msra.mxu0 0.0
    %1261 = vmatprep.subr.mxu0 0.0
    %1262 = vmatpush1.xpose.msra.mxu0 0.0
    %1263 = vmatprep.subr.mxu0 0.0
    %1264 = vmatpush1.xpose.msra.mxu0 0.0
    %1265 = vmatprep.subr.mxu0 0.0
    %1266 = vmatpush1.xpose.msra.mxu0 0.0
    %1267 = vmatprep.subr.mxu0 0.0
    %1268 = vmatpush1.xpose.msra.mxu0 0.0
    %1269 = vmatprep.subr.mxu0 0.0
    %1270 = vmatpush1.xpose.msra.mxu0 0.0
    %1271 = vmatprep.subr.mxu0 0.0
    %1272 = vmatpush1.xpose.msra.mxu0 0.0
    %1273 = vmatprep.subr.mxu0 0.0
    %1274 = vmatpush1.xpose.msra.mxu0 0.0
    %1275 = vmatprep.mubr.f32.mxu0 0.0
    %1276 = vmatmul.mubr.f32.gmra.mrb[0].mxu0 %v1203
    %v1277 = vpop.f32.mrb[0].mxu0
    %v1278 = vadd.f32 0.0, %v1277
    %v1279 = vpop.f32.mrb[0].mxu0
    %1280 = vdwg.mxu0
    %v1282 = vsel %vm174, %v172, 0
    %v1285 = vsel %vm174, %v138, 0
    %v1288 = vsel %vm174, %v139, 0
    %1290 = vmatprep.subr.mxu0 0.0
    %1291 = vmatpush1.xpose.msra.mxu0 %v1285
    %1292 = vmatprep.subr.mxu0 0.0
    %1293 = vmatpush1.xpose.msra.mxu0 %v1288
    %1294 = vmatprep.subr.mxu0 0.0
    %1295 = vmatpush1.xpose.msra.mxu0 0.0
    %1296 = vmatprep.subr.mxu0 0.0
    %1297 = vmatpush1.xpose.msra.mxu0 0.0
    %1298 = vmatprep.subr.mxu0 0.0
    %1299 = vmatpush1.xpose.msra.mxu0 0.0
    %1300 = vmatprep.subr.mxu0 0.0
    %1301 = vmatpush1.xpose.msra.mxu0 0.0
    %1302 = vmatprep.subr.mxu0 0.0
    %1303 = vmatpush1.xpose.msra.mxu0 0.0
    %1304 = vmatprep.subr.mxu0 0.0
    %1305 = vmatpush1.xpose.msra.mxu0 0.0
    %1306 = vmatprep.subr.mxu0 0.0
    %1307 = vmatpush1.xpose.msra.mxu0 0.0
    %1308 = vmatprep.subr.mxu0 0.0
    %1309 = vmatpush1.xpose.msra.mxu0 0.0
    %1310 = vmatprep.subr.mxu0 0.0
    %1311 = vmatpush1.xpose.msra.mxu0 0.0
    %1312 = vmatprep.subr.mxu0 0.0
    %1313 = vmatpush1.xpose.msra.mxu0 0.0
    %1314 = vmatprep.subr.mxu0 0.0
    %1315 = vmatpush1.xpose.msra.mxu0 0.0
    %1316 = vmatprep.subr.mxu0 0.0
    %1317 = vmatpush1.xpose.msra.mxu0 0.0
    %1318 = vmatprep.subr.mxu0 0.0
    %1319 = vmatpush1.xpose.msra.mxu0 0.0
    %1320 = vmatprep.subr.mxu0 0.0
    %1321 = vmatpush1.xpose.msra.mxu0 0.0
    %1322 = vmatprep.subr.mxu0 0.0
    %1323 = vmatpush1.xpose.msra.mxu0 0.0
    %1324 = vmatprep.subr.mxu0 0.0
    %1325 = vmatpush1.xpose.msra.mxu0 0.0
    %1326 = vmatprep.subr.mxu0 0.0
    %1327 = vmatpush1.xpose.msra.mxu0 0.0
    %1328 = vmatprep.subr.mxu0 0.0
    %1329 = vmatpush1.xpose.msra.mxu0 0.0
    %1330 = vmatprep.subr.mxu0 0.0
    %1331 = vmatpush1.xpose.msra.mxu0 0.0
    %1332 = vmatprep.subr.mxu0 0.0
    %1333 = vmatpush1.xpose.msra.mxu0 0.0
    %1334 = vmatprep.subr.mxu0 0.0
    %1335 = vmatpush1.xpose.msra.mxu0 0.0
    %1336 = vmatprep.subr.mxu0 0.0
    %1337 = vmatpush1.xpose.msra.mxu0 0.0
    %1338 = vmatprep.subr.mxu0 0.0
    %1339 = vmatpush1.xpose.msra.mxu0 0.0
    %1340 = vmatprep.subr.mxu0 0.0
    %1341 = vmatpush1.xpose.msra.mxu0 0.0
    %1342 = vmatprep.subr.mxu0 0.0
    %1343 = vmatpush1.xpose.msra.mxu0 0.0
    %1344 = vmatprep.subr.mxu0 0.0
    %1345 = vmatpush1.xpose.msra.mxu0 0.0
    %1346 = vmatprep.subr.mxu0 0.0
    %1347 = vmatpush1.xpose.msra.mxu0 0.0
    %1348 = vmatprep.subr.mxu0 0.0
    %1349 = vmatpush1.xpose.msra.mxu0 0.0
    %1350 = vmatprep.subr.mxu0 0.0
    %1351 = vmatpush1.xpose.msra.mxu0 0.0
    %1352 = vmatprep.subr.mxu0 0.0
    %1353 = vmatpush1.xpose.msra.mxu0 0.0
    %1354 = vmatprep.mubr.f32.mxu0 0.0
    %1355 = vmatmul.mubr.f32.gmra.mrb[0].mxu0 %v1282
    %v1356 = vpop.f32.mrb[0].mxu0
    %v1357 = vadd.f32 0.0, %v1356
    %v1358 = vpop.f32.mrb[0].mxu0
    %1359 = vdwg.mxu0
    %v1361 = vsel %vm174, %v173, 0
    %v1364 = vsel %vm174, %v140, 0
    %v1367 = vsel %vm174, %v141, 0
    %1369 = vmatprep.subr.mxu0 0.0
    %1370 = vmatpush1.xpose.msra.mxu0 %v1364
    %1371 = vmatprep.subr.mxu0 0.0
    %1372 = vmatpush1.xpose.msra.mxu0 %v1367
    %1373 = vmatprep.subr.mxu0 0.0
    %1374 = vmatpush1.xpose.msra.mxu0 0.0
    %1375 = vmatprep.subr.mxu0 0.0
    %1376 = vmatpush1.xpose.msra.mxu0 0.0
    %1377 = vmatprep.subr.mxu0 0.0
    %1378 = vmatpush1.xpose.msra.mxu0 0.0
    %1379 = vmatprep.subr.mxu0 0.0
    %1380 = vmatpush1.xpose.msra.mxu0 0.0
    %1381 = vmatprep.subr.mxu0 0.0
    %1382 = vmatpush1.xpose.msra.mxu0 0.0
    %1383 = vmatprep.subr.mxu0 0.0
    %1384 = vmatpush1.xpose.msra.mxu0 0.0
    %1385 = vmatprep.subr.mxu0 0.0
    %1386 = vmatpush1.xpose.msra.mxu0 0.0
    %1387 = vmatprep.subr.mxu0 0.0
    %1388 = vmatpush1.xpose.msra.mxu0 0.0
    %1389 = vmatprep.subr.mxu0 0.0
    %1390 = vmatpush1.xpose.msra.mxu0 0.0
    %1391 = vmatprep.subr.mxu0 0.0
    %1392 = vmatpush1.xpose.msra.mxu0 0.0
    %1393 = vmatprep.subr.mxu0 0.0
    %1394 = vmatpush1.xpose.msra.mxu0 0.0
    %1395 = vmatprep.subr.mxu0 0.0
    %1396 = vmatpush1.xpose.msra.mxu0 0.0
    %1397 = vmatprep.subr.mxu0 0.0
    %1398 = vmatpush1.xpose.msra.mxu0 0.0
    %1399 = vmatprep.subr.mxu0 0.0
    %1400 = vmatpush1.xpose.msra.mxu0 0.0
    %1401 = vmatprep.subr.mxu0 0.0
    %1402 = vmatpush1.xpose.msra.mxu0 0.0
    %1403 = vmatprep.subr.mxu0 0.0
    %1404 = vmatpush1.xpose.msra.mxu0 0.0
    %1405 = vmatprep.subr.mxu0 0.0
    %1406 = vmatpush1.xpose.msra.mxu0 0.0
    %1407 = vmatprep.subr.mxu0 0.0
    %1408 = vmatpush1.xpose.msra.mxu0 0.0
    %1409 = vmatprep.subr.mxu0 0.0
    %1410 = vmatpush1.xpose.msra.mxu0 0.0
    %1411 = vmatprep.subr.mxu0 0.0
    %1412 = vmatpush1.xpose.msra.mxu0 0.0
    %1413 = vmatprep.subr.mxu0 0.0
    %1414 = vmatpush1.xpose.msra.mxu0 0.0
    %1415 = vmatprep.subr.mxu0 0.0
    %1416 = vmatpush1.xpose.msra.mxu0 0.0
    %1417 = vmatprep.subr.mxu0 0.0
    %1418 = vmatpush1.xpose.msra.mxu0 0.0
    %1419 = vmatprep.subr.mxu0 0.0
    %1420 = vmatpush1.xpose.msra.mxu0 0.0
    %1421 = vmatprep.subr.mxu0 0.0
    %1422 = vmatpush1.xpose.msra.mxu0 0.0
    %1423 = vmatprep.subr.mxu0 0.0
    %1424 = vmatpush1.xpose.msra.mxu0 0.0
    %1425 = vmatprep.subr.mxu0 0.0
    %1426 = vmatpush1.xpose.msra.mxu0 0.0
    %1427 = vmatprep.subr.mxu0 0.0
    %1428 = vmatpush1.xpose.msra.mxu0 0.0
    %1429 = vmatprep.subr.mxu0 0.0
    %1430 = vmatpush1.xpose.msra.mxu0 0.0
    %1431 = vmatprep.subr.mxu0 0.0
    %1432 = vmatpush1.xpose.msra.mxu0 0.0
    %1433 = vmatprep.mubr.f32.mxu0 0.0
    %1434 = vmatmul.mubr.f32.gmra.mrb[0].mxu0 %v1361
    %v1435 = vpop.f32.mrb[0].mxu0
    %v1436 = vadd.f32 0.0, %v1435
    %v1437 = vpop.f32.mrb[0].mxu0
    %1438 = vdwg.mxu0
    %vm1439 = vcmask 125952
    %v1440 = vsel %vm1439, %v251, -inf
    %1441 = vmax.xlane.f32.xlu0 %v1440
    %v1442 = vpop.xlane.xlu0 %1441
    %v1443 = vsel %vm1439, %v330, -inf
    %1444 = vmax.xlane.f32.xlu0 %v1443
    %v1445 = vpop.xlane.xlu0 %1444
    %v1446 = vsel %vm1439, %v409, -inf
    %1447 = vmax.xlane.f32.xlu0 %v1446
    %v1448 = vpop.xlane.xlu0 %1447
    %v1449 = vsel %vm1439, %v488, -inf
    %1450 = vmax.xlane.f32.xlu0 %v1449
    %v1451 = vpop.xlane.xlu0 %1450
    %v1452 = vsel %vm1439, %v567, -inf
    %1453 = vmax.xlane.f32.xlu0 %v1452
    %v1454 = vpop.xlane.xlu0 %1453
    %v1455 = vsel %vm1439, %v646, -inf
    %1456 = vmax.xlane.f32.xlu0 %v1455
    %v1457 = vpop.xlane.xlu0 %1456
    %v1458 = vsel %vm1439, %v725, -inf
    %1459 = vmax.xlane.f32.xlu0 %v1458
    %v1460 = vpop.xlane.xlu0 %1459
    %v1461 = vsel %vm1439, %v804, -inf
    %1462 = vmax.xlane.f32.xlu0 %v1461
    %v1463 = vpop.xlane.xlu0 %1462
    %v1464 = vsel %vm1439, %v883, -inf
    %1465 = vmax.xlane.f32.xlu0 %v1464
    %v1466 = vpop.xlane.xlu0 %1465
    %v1467 = vsel %vm1439, %v962, -inf
    %1468 = vmax.xlane.f32.xlu0 %v1467
    %v1469 = vpop.xlane.xlu0 %1468
    %v1470 = vsel %vm1439, %v1041, -inf
    %1471 = vmax.xlane.f32.xlu0 %v1470
    %v1472 = vpop.xlane.xlu0 %1471
    %v1473 = vsel %vm1439, %v1120, -inf
    %1474 = vmax.xlane.f32.xlu0 %v1473
    %v1475 = vpop.xlane.xlu0 %1474
    %v1476 = vsel %vm1439, %v1199, -inf
    %1477 = vmax.xlane.f32.xlu0 %v1476
    %v1478 = vpop.xlane.xlu0 %1477
    %v1479 = vsel %vm1439, %v1278, -inf
    %1480 = vmax.xlane.f32.xlu0 %v1479
    %v1481 = vpop.xlane.xlu0 %1480
    %v1482 = vsel %vm1439, %v1357, -inf
    %1483 = vmax.xlane.f32.xlu0 %v1482
    %v1484 = vpop.xlane.xlu0 %1483
    %v1485 = vsel %vm1439, %v1436, -inf
    %1486 = vmax.xlane.f32.xlu0 %v1485
    %v1487 = vpop.xlane.xlu0 %1486
    %v1488 = vsub.f32 %v251, %v1442
    %v1489 = vsub.f32 %v330, %v1445
    %v1490 = vsub.f32 %v409, %v1448
    %v1491 = vsub.f32 %v488, %v1451
    %v1492 = vsub.f32 %v567, %v1454
    %v1493 = vsub.f32 %v646, %v1457
    %v1494 = vsub.f32 %v725, %v1460
    %v1495 = vsub.f32 %v804, %v1463
    %v1496 = vsub.f32 %v883, %v1466
    %v1497 = vsub.f32 %v962, %v1469
    %v1498 = vsub.f32 %v1041, %v1472
    %v1499 = vsub.f32 %v1120, %v1475
    %v1500 = vsub.f32 %v1199, %v1478
    %v1501 = vsub.f32 %v1278, %v1481
    %v1502 = vsub.f32 %v1357, %v1484
    %v1503 = vsub.f32 %v1436, %v1487
    %v1504 = vmul.f32 %v1488, 1.442695
    %v1505 = vpow.pop %v1504
    %v1506 = vmul.f32 %v1489, 1.442695
    %v1507 = vpow.pop %v1506
    %v1508 = vmul.f32 %v1490, 1.442695
    %v1509 = vpow.pop %v1508
    %v1510 = vmul.f32 %v1491, 1.442695
    %v1511 = vpow.pop %v1510
    %v1512 = vmul.f32 %v1492, 1.442695
    %v1513 = vpow.pop %v1512
    %v1514 = vmul.f32 %v1493, 1.442695
    %v1515 = vpow.pop %v1514
    %v1516 = vmul.f32 %v1494, 1.442695
    %v1517 = vpow.pop %v1516
    %v1518 = vmul.f32 %v1495, 1.442695
    %v1519 = vpow.pop %v1518
    %v1520 = vmul.f32 %v1496, 1.442695
    %v1521 = vpow.pop %v1520
    %v1522 = vmul.f32 %v1497, 1.442695
    %v1523 = vpow.pop %v1522
    %v1524 = vmul.f32 %v1498, 1.442695
    %v1525 = vpow.pop %v1524
    %v1526 = vmul.f32 %v1499, 1.442695
    %v1527 = vpow.pop %v1526
    %v1528 = vmul.f32 %v1500, 1.442695
    %v1529 = vpow.pop %v1528
    %v1530 = vmul.f32 %v1501, 1.442695
    %v1531 = vpow.pop %v1530
    %v1532 = vmul.f32 %v1502, 1.442695
    %v1533 = vpow.pop %v1532
    %v1534 = vmul.f32 %v1503, 1.442695
    %v1535 = vpow.pop %v1534
    %v1536 = vsel %vm1439, %v1505, 0.0
    %1537 = vadd.xlane.f32.xlu0 %v1536
    %v1538 = vpop.xlane.xlu0 %1537
    %v1539 = vsel %vm1439, %v1507, 0.0
    %1540 = vadd.xlane.f32.xlu0 %v1539
    %v1541 = vpop.xlane.xlu0 %1540
    %v1542 = vsel %vm1439, %v1509, 0.0
    %1543 = vadd.xlane.f32.xlu0 %v1542
    %v1544 = vpop.xlane.xlu0 %1543
    %v1545 = vsel %vm1439, %v1511, 0.0
    %1546 = vadd.xlane.f32.xlu0 %v1545
    %v1547 = vpop.xlane.xlu0 %1546
    %v1548 = vsel %vm1439, %v1513, 0.0
    %1549 = vadd.xlane.f32.xlu0 %v1548
    %v1550 = vpop.xlane.xlu0 %1549
    %v1551 = vsel %vm1439, %v1515, 0.0
    %1552 = vadd.xlane.f32.xlu0 %v1551
    %v1553 = vpop.xlane.xlu0 %1552
    %v1554 = vsel %vm1439, %v1517, 0.0
    %1555 = vadd.xlane.f32.xlu0 %v1554
    %v1556 = vpop.xlane.xlu0 %1555
    %v1557 = vsel %vm1439, %v1519, 0.0
    %1558 = vadd.xlane.f32.xlu0 %v1557
    %v1559 = vpop.xlane.xlu0 %1558
    %v1560 = vsel %vm1439, %v1521, 0.0
    %1561 = vadd.xlane.f32.xlu0 %v1560
    %v1562 = vpop.xlane.xlu0 %1561
    %v1563 = vsel %vm1439, %v1523, 0.0
    %1564 = vadd.xlane.f32.xlu0 %v1563
    %v1565 = vpop.xlane.xlu0 %1564
    %v1566 = vsel %vm1439, %v1525, 0.0
    %1567 = vadd.xlane.f32.xlu0 %v1566
    %v1568 = vpop.xlane.xlu0 %1567
    %v1569 = vsel %vm1439, %v1527, 0.0
    %1570 = vadd.xlane.f32.xlu0 %v1569
    %v1571 = vpop.xlane.xlu0 %1570
    %v1572 = vsel %vm1439, %v1529, 0.0
    %1573 = vadd.xlane.f32.xlu0 %v1572
    %v1574 = vpop.xlane.xlu0 %1573
    %v1575 = vsel %vm1439, %v1531, 0.0
    %1576 = vadd.xlane.f32.xlu0 %v1575
    %v1577 = vpop.xlane.xlu0 %1576
    %v1578 = vsel %vm1439, %v1533, 0.0
    %1579 = vadd.xlane.f32.xlu0 %v1578
    %v1580 = vpop.xlane.xlu0 %1579
    %v1581 = vsel %vm1439, %v1535, 0.0
    %1582 = vadd.xlane.f32.xlu0 %v1581
    %v1583 = vpop.xlane.xlu0 %1582
    %v1584 = vrcp.pop %v1538
    %v1585 = vrcp.pop %v1541
    %v1586 = vrcp.pop %v1544
    %v1587 = vrcp.pop %v1547
    %v1588 = vrcp.pop %v1550
    %v1589 = vrcp.pop %v1553
    %v1590 = vrcp.pop %v1556
    %v1591 = vrcp.pop %v1559
    %v1592 = vrcp.pop %v1562
    %v1593 = vrcp.pop %v1565
    %v1594 = vrcp.pop %v1568
    %v1595 = vrcp.pop %v1571
    %v1596 = vrcp.pop %v1574
    %v1597 = vrcp.pop %v1577
    %v1598 = vrcp.pop %v1580
    %v1599 = vrcp.pop %v1583
    %v1600 = vmul.f32 %v1505, %v1584
    %v1601 = vmul.f32 %v1507, %v1585
    %v1602 = vmul.f32 %v1509, %v1586
    %v1603 = vmul.f32 %v1511, %v1587
    %v1604 = vmul.f32 %v1513, %v1588
    %v1605 = vmul.f32 %v1515, %v1589
    %v1606 = vmul.f32 %v1517, %v1590
    %v1607 = vmul.f32 %v1519, %v1591
    %v1608 = vmul.f32 %v1521, %v1592
    %v1609 = vmul.f32 %v1523, %v1593
    %v1610 = vmul.f32 %v1525, %v1594
    %v1611 = vmul.f32 %v1527, %v1595
    %v1612 = vmul.f32 %v1529, %v1596
    %v1613 = vmul.f32 %v1531, %v1597
    %v1614 = vmul.f32 %v1533, %v1598
    %v1615 = vmul.f32 %v1535, %v1599
    %vm1616 = vcmask 130048
    %v1618 = vsel %vm1616, %v1600, 0
    %1620 = vmatprep.subr.mxu0 0.0
    %1621 = vmatpush1.msra.mxu0 %v76
    %1622 = vmatprep.subr.mxu0 0.0
    %1623 = vmatpush1.msra.mxu0 %v77
    %1624 = vmatprep.subr.mxu0 0.0
    %1625 = vmatpush1.msra.mxu0 0.0
    %1626 = vmatprep.subr.mxu0 0.0
    %1627 = vmatpush1.msra.mxu0 0.0
    %1628 = vmatprep.subr.mxu0 0.0
    %1629 = vmatpush1.msra.mxu0 0.0
    %1630 = vmatprep.subr.mxu0 0.0
    %1631 = vmatpush1.msra.mxu0 0.0
    %1632 = vmatprep.subr.mxu0 0.0
    %1633 = vmatpush1.msra.mxu0 0.0
    %1634 = vmatprep.subr.mxu0 0.0
    %1635 = vmatpush1.msra.mxu0 0.0
    %1636 = vmatprep.subr.mxu0 0.0
    %1637 = vmatpush1.msra.mxu0 0.0
    %1638 = vmatprep.subr.mxu0 0.0
    %1639 = vmatpush1.msra.mxu0 0.0
    %1640 = vmatprep.subr.mxu0 0.0
    %1641 = vmatpush1.msra.mxu0 0.0
    %1642 = vmatprep.subr.mxu0 0.0
    %1643 = vmatpush1.msra.mxu0 0.0
    %1644 = vmatprep.subr.mxu0 0.0
    %1645 = vmatpush1.msra.mxu0 0.0
    %1646 = vmatprep.subr.mxu0 0.0
    %1647 = vmatpush1.msra.mxu0 0.0
    %1648 = vmatprep.subr.mxu0 0.0
    %1649 = vmatpush1.msra.mxu0 0.0
    %1650 = vmatprep.subr.mxu0 0.0
    %1651 = vmatpush1.msra.mxu0 0.0
    %1652 = vmatprep.subr.mxu0 0.0
    %1653 = vmatpush1.msra.mxu0 0.0
    %1654 = vmatprep.subr.mxu0 0.0
    %1655 = vmatpush1.msra.mxu0 0.0
    %1656 = vmatprep.subr.mxu0 0.0
    %1657 = vmatpush1.msra.mxu0 0.0
    %1658 = vmatprep.subr.mxu0 0.0
    %1659 = vmatpush1.msra.mxu0 0.0
    %1660 = vmatprep.subr.mxu0 0.0
    %1661 = vmatpush1.msra.mxu0 0.0
    %1662 = vmatprep.subr.mxu0 0.0
    %1663 = vmatpush1.msra.mxu0 0.0
    %1664 = vmatprep.subr.mxu0 0.0
    %1665 = vmatpush1.msra.mxu0 0.0
    %1666 = vmatprep.subr.mxu0 0.0
    %1667 = vmatpush1.msra.mxu0 0.0
    %1668 = vmatprep.subr.mxu0 0.0
    %1669 = vmatpush1.msra.mxu0 0.0
    %1670 = vmatprep.subr.mxu0 0.0
    %1671 = vmatpush1.msra.mxu0 0.0
    %1672 = vmatprep.subr.mxu0 0.0
    %1673 = vmatpush1.msra.mxu0 0.0
    %1674 = vmatprep.subr.mxu0 0.0
    %1675 = vmatpush1.msra.mxu0 0.0
    %1676 = vmatprep.subr.mxu0 0.0
    %1677 = vmatpush1.msra.mxu0 0.0
    %1678 = vmatprep.subr.mxu0 0.0
    %1679 = vmatpush1.msra.mxu0 0.0
    %1680 = vmatprep.subr.mxu0 0.0
    %1681 = vmatpush1.msra.mxu0 0.0
    %1682 = vmatprep.subr.mxu0 0.0
    %1683 = vmatpush1.msra.mxu0 0.0
    %1684 = vmatprep.mubr.f32.mxu0 0.0
    %1685 = vmatmul.mubr.f32.gmra.mrb[0].mxu0 %v1618
    %v1686 = vpop.f32.mrb[0].mxu0
    %v1687 = vadd.f32 0.0, %v1686
    %v1688 = vpop.f32.mrb[0].mxu0
    %1689 = vdwg.mxu0
    %v1691 = vsel %vm1616, %v1601, 0
    %1693 = vmatprep.subr.mxu0 0.0
    %1694 = vmatpush1.msra.mxu0 %v78
    %1695 = vmatprep.subr.mxu0 0.0
    %1696 = vmatpush1.msra.mxu0 %v79
    %1697 = vmatprep.subr.mxu0 0.0
    %1698 = vmatpush1.msra.mxu0 0.0
    %1699 = vmatprep.subr.mxu0 0.0
    %1700 = vmatpush1.msra.mxu0 0.0
    %1701 = vmatprep.subr.mxu0 0.0
    %1702 = vmatpush1.msra.mxu0 0.0
    %1703 = vmatprep.subr.mxu0 0.0
    %1704 = vmatpush1.msra.mxu0 0.0
    %1705 = vmatprep.subr.mxu0 0.0
    %1706 = vmatpush1.msra.mxu0 0.0
    %1707 = vmatprep.subr.mxu0 0.0
    %1708 = vmatpush1.msra.mxu0 0.0
    %1709 = vmatprep.subr.mxu0 0.0
    %1710 = vmatpush1.msra.mxu0 0.0
    %1711 = vmatprep.subr.mxu0 0.0
    %1712 = vmatpush1.msra.mxu0 0.0
    %1713 = vmatprep.subr.mxu0 0.0
    %1714 = vmatpush1.msra.mxu0 0.0
    %1715 = vmatprep.subr.mxu0 0.0
    %1716 = vmatpush1.msra.mxu0 0.0
    %1717 = vmatprep.subr.mxu0 0.0
    %1718 = vmatpush1.msra.mxu0 0.0
    %1719 = vmatprep.subr.mxu0 0.0
    %1720 = vmatpush1.msra.mxu0 0.0
    %1721 = vmatprep.subr.mxu0 0.0
    %1722 = vmatpush1.msra.mxu0 0.0
    %1723 = vmatprep.subr.mxu0 0.0
    %1724 = vmatpush1.msra.mxu0 0.0
    %1725 = vmatprep.subr.mxu0 0.0
    %1726 = vmatpush1.msra.mxu0 0.0
    %1727 = vmatprep.subr.mxu0 0.0
    %1728 = vmatpush1.msra.mxu0 0.0
    %1729 = vmatprep.subr.mxu0 0.0
    %1730 = vmatpush1.msra.mxu0 0.0
    %1731 = vmatprep.subr.mxu0 0.0
    %1732 = vmatpush1.msra.mxu0 0.0
    %1733 = vmatprep.subr.mxu0 0.0
    %1734 = vmatpush1.msra.mxu0 0.0
    %1735 = vmatprep.subr.mxu0 0.0
    %1736 = vmatpush1.msra.mxu0 0.0
    %1737 = vmatprep.subr.mxu0 0.0
    %1738 = vmatpush1.msra.mxu0 0.0
    %1739 = vmatprep.subr.mxu0 0.0
    %1740 = vmatpush1.msra.mxu0 0.0
    %1741 = vmatprep.subr.mxu0 0.0
    %1742 = vmatpush1.msra.mxu0 0.0
    %1743 = vmatprep.subr.mxu0 0.0
    %1744 = vmatpush1.msra.mxu0 0.0
    %1745 = vmatprep.subr.mxu0 0.0
    %1746 = vmatpush1.msra.mxu0 0.0
    %1747 = vmatprep.subr.mxu0 0.0
    %1748 = vmatpush1.msra.mxu0 0.0
    %1749 = vmatprep.subr.mxu0 0.0
    %1750 = vmatpush1.msra.mxu0 0.0
    %1751 = vmatprep.subr.mxu0 0.0
    %1752 = vmatpush1.msra.mxu0 0.0
    %1753 = vmatprep.subr.mxu0 0.0
    %1754 = vmatpush1.msra.mxu0 0.0
    %1755 = vmatprep.subr.mxu0 0.0
    %1756 = vmatpush1.msra.mxu0 0.0
    %1757 = vmatprep.mubr.f32.mxu0 0.0
    %1758 = vmatmul.mubr.f32.gmra.mrb[0].mxu0 %v1691
    %v1759 = vpop.f32.mrb[0].mxu0
    %v1760 = vadd.f32 0.0, %v1759
    %v1761 = vpop.f32.mrb[0].mxu0
    %1762 = vdwg.mxu0
    %v1764 = vsel %vm1616, %v1602, 0
    %1766 = vmatprep.subr.mxu0 0.0
    %1767 = vmatpush1.msra.mxu0 %v80
    %1768 = vmatprep.subr.mxu0 0.0
    %1769 = vmatpush1.msra.mxu0 %v81
    %1770 = vmatprep.subr.mxu0 0.0
    %1771 = vmatpush1.msra.mxu0 0.0
    %1772 = vmatprep.subr.mxu0 0.0
    %1773 = vmatpush1.msra.mxu0 0.0
    %1774 = vmatprep.subr.mxu0 0.0
    %1775 = vmatpush1.msra.mxu0 0.0
    %1776 = vmatprep.subr.mxu0 0.0
    %1777 = vmatpush1.msra.mxu0 0.0
    %1778 = vmatprep.subr.mxu0 0.0
    %1779 = vmatpush1.msra.mxu0 0.0
    %1780 = vmatprep.subr.mxu0 0.0
    %1781 = vmatpush1.msra.mxu0 0.0
    %1782 = vmatprep.subr.mxu0 0.0
    %1783 = vmatpush1.msra.mxu0 0.0
    %1784 = vmatprep.subr.mxu0 0.0
    %1785 = vmatpush1.msra.mxu0 0.0
    %1786 = vmatprep.subr.mxu0 0.0
    %1787 = vmatpush1.msra.mxu0 0.0
    %1788 = vmatprep.subr.mxu0 0.0
    %1789 = vmatpush1.msra.mxu0 0.0
    %1790 = vmatprep.subr.mxu0 0.0
    %1791 = vmatpush1.msra.mxu0 0.0
    %1792 = vmatprep.subr.mxu0 0.0
    %1793 = vmatpush1.msra.mxu0 0.0
    %1794 = vmatprep.subr.mxu0 0.0
    %1795 = vmatpush1.msra.mxu0 0.0
    %1796 = vmatprep.subr.mxu0 0.0
    %1797 = vmatpush1.msra.mxu0 0.0
    %1798 = vmatprep.subr.mxu0 0.0
    %1799 = vmatpush1.msra.mxu0 0.0
    %1800 = vmatprep.subr.mxu0 0.0
    %1801 = vmatpush1.msra.mxu0 0.0
    %1802 = vmatprep.subr.mxu0 0.0
    %1803 = vmatpush1.msra.mxu0 0.0
    %1804 = vmatprep.subr.mxu0 0.0
    %1805 = vmatpush1.msra.mxu0 0.0
    %1806 = vmatprep.subr.mxu0 0.0
    %1807 = vmatpush1.msra.mxu0 0.0
    %1808 = vmatprep.subr.mxu0 0.0
    %1809 = vmatpush1.msra.mxu0 0.0
    %1810 = vmatprep.subr.mxu0 0.0
    %1811 = vmatpush1.msra.mxu0 0.0
    %1812 = vmatprep.subr.mxu0 0.0
    %1813 = vmatpush1.msra.mxu0 0.0
    %1814 = vmatprep.subr.mxu0 0.0
    %1815 = vmatpush1.msra.mxu0 0.0
    %1816 = vmatprep.subr.mxu0 0.0
    %1817 = vmatpush1.msra.mxu0 0.0
    %1818 = vmatprep.subr.mxu0 0.0
    %1819 = vmatpush1.msra.mxu0 0.0
    %1820 = vmatprep.subr.mxu0 0.0
    %1821 = vmatpush1.msra.mxu0 0.0
    %1822 = vmatprep.subr.mxu0 0.0
    %1823 = vmatpush1.msra.mxu0 0.0
    %1824 = vmatprep.subr.mxu0 0.0
    %1825 = vmatpush1.msra.mxu0 0.0
    %1826 = vmatprep.subr.mxu0 0.0
    %1827 = vmatpush1.msra.mxu0 0.0
    %1828 = vmatprep.subr.mxu0 0.0
    %1829 = vmatpush1.msra.mxu0 0.0
    %1830 = vmatprep.mubr.f32.mxu0 0.0
    %1831 = vmatmul.mubr.f32.gmra.mrb[0].mxu0 %v1764
    %v1832 = vpop.f32.mrb[0].mxu0
    %v1833 = vadd.f32 0.0, %v1832
    %v1834 = vpop.f32.mrb[0].mxu0
    %1835 = vdwg.mxu0
    %v1837 = vsel %vm1616, %v1603, 0
    %1839 = vmatprep.subr.mxu0 0.0
    %1840 = vmatpush1.msra.mxu0 %v82
    %1841 = vmatprep.subr.mxu0 0.0
    %1842 = vmatpush1.msra.mxu0 %v83
    %1843 = vmatprep.subr.mxu0 0.0
    %1844 = vmatpush1.msra.mxu0 0.0
    %1845 = vmatprep.subr.mxu0 0.0
    %1846 = vmatpush1.msra.mxu0 0.0
    %1847 = vmatprep.subr.mxu0 0.0
    %1848 = vmatpush1.msra.mxu0 0.0
    %1849 = vmatprep.subr.mxu0 0.0
    %1850 = vmatpush1.msra.mxu0 0.0
    %1851 = vmatprep.subr.mxu0 0.0
    %1852 = vmatpush1.msra.mxu0 0.0
    %1853 = vmatprep.subr.mxu0 0.0
    %1854 = vmatpush1.msra.mxu0 0.0
    %1855 = vmatprep.subr.mxu0 0.0
    %1856 = vmatpush1.msra.mxu0 0.0
    %1857 = vmatprep.subr.mxu0 0.0
    %1858 = vmatpush1.msra.mxu0 0.0
    %1859 = vmatprep.subr.mxu0 0.0
    %1860 = vmatpush1.msra.mxu0 0.0
    %1861 = vmatprep.subr.mxu0 0.0
    %1862 = vmatpush1.msra.mxu0 0.0
    %1863 = vmatprep.subr.mxu0 0.0
    %1864 = vmatpush1.msra.mxu0 0.0
    %1865 = vmatprep.subr.mxu0 0.0
    %1866 = vmatpush1.msra.mxu0 0.0
    %1867 = vmatprep.subr.mxu0 0.0
    %1868 = vmatpush1.msra.mxu0 0.0
    %1869 = vmatprep.subr.mxu0 0.0
    %1870 = vmatpush1.msra.mxu0 0.0
    %1871 = vmatprep.subr.mxu0 0.0
    %1872 = vmatpush1.msra.mxu0 0.0
    %1873 = vmatprep.subr.mxu0 0.0
    %1874 = vmatpush1.msra.mxu0 0.0
    %1875 = vmatprep.subr.mxu0 0.0
    %1876 = vmatpush1.msra.mxu0 0.0
    %1877 = vmatprep.subr.mxu0 0.0
    %1878 = vmatpush1.msra.mxu0 0.0
    %1879 = vmatprep.subr.mxu0 0.0
    %1880 = vmatpush1.msra.mxu0 0.0
    %1881 = vmatprep.subr.mxu0 0.0
    %1882 = vmatpush1.msra.mxu0 0.0
    %1883 = vmatprep.subr.mxu0 0.0
    %1884 = vmatpush1.msra.mxu0 0.0
    %1885 = vmatprep.subr.mxu0 0.0
    %1886 = vmatpush1.msra.mxu0 0.0
    %1887 = vmatprep.subr.mxu0 0.0
    %1888 = vmatpush1.msra.mxu0 0.0
    %1889 = vmatprep.subr.mxu0 0.0
    %1890 = vmatpush1.msra.mxu0 0.0
    %1891 = vmatprep.subr.mxu0 0.0
    %1892 = vmatpush1.msra.mxu0 0.0
    %1893 = vmatprep.subr.mxu0 0.0
    %1894 = vmatpush1.msra.mxu0 0.0
    %1895 = vmatprep.subr.mxu0 0.0
    %1896 = vmatpush1.msra.mxu0 0.0
    %1897 = vmatprep.subr.mxu0 0.0
    %1898 = vmatpush1.msra.mxu0 0.0
    %1899 = vmatprep.subr.mxu0 0.0
    %1900 = vmatpush1.msra.mxu0 0.0
    %1901 = vmatprep.subr.mxu0 0.0
    %1902 = vmatpush1.msra.mxu0 0.0
    %1903 = vmatprep.mubr.f32.mxu0 0.0
    %1904 = vmatmul.mubr.f32.gmra.mrb[0].mxu0 %v1837
    %v1905 = vpop.f32.mrb[0].mxu0
    %v1906 = vadd.f32 0.0, %v1905
    %v1907 = vpop.f32.mrb[0].mxu0
    %1908 = vdwg.mxu0
    %v1910 = vsel %vm1616, %v1604, 0
    %1912 = vmatprep.subr.mxu0 0.0
    %1913 = vmatpush1.msra.mxu0 %v84
    %1914 = vmatprep.subr.mxu0 0.0
    %1915 = vmatpush1.msra.mxu0 %v85
    %1916 = vmatprep.subr.mxu0 0.0
    %1917 = vmatpush1.msra.mxu0 0.0
    %1918 = vmatprep.subr.mxu0 0.0
    %1919 = vmatpush1.msra.mxu0 0.0
    %1920 = vmatprep.subr.mxu0 0.0
    %1921 = vmatpush1.msra.mxu0 0.0
    %1922 = vmatprep.subr.mxu0 0.0
    %1923 = vmatpush1.msra.mxu0 0.0
    %1924 = vmatprep.subr.mxu0 0.0
    %1925 = vmatpush1.msra.mxu0 0.0
    %1926 = vmatprep.subr.mxu0 0.0
    %1927 = vmatpush1.msra.mxu0 0.0
    %1928 = vmatprep.subr.mxu0 0.0
    %1929 = vmatpush1.msra.mxu0 0.0
    %1930 = vmatprep.subr.mxu0 0.0
    %1931 = vmatpush1.msra.mxu0 0.0
    %1932 = vmatprep.subr.mxu0 0.0
    %1933 = vmatpush1.msra.mxu0 0.0
    %1934 = vmatprep.subr.mxu0 0.0
    %1935 = vmatpush1.msra.mxu0 0.0
    %1936 = vmatprep.subr.mxu0 0.0
    %1937 = vmatpush1.msra.mxu0 0.0
    %1938 = vmatprep.subr.mxu0 0.0
    %1939 = vmatpush1.msra.mxu0 0.0
    %1940 = vmatprep.subr.mxu0 0.0
    %1941 = vmatpush1.msra.mxu0 0.0
    %1942 = vmatprep.subr.mxu0 0.0
    %1943 = vmatpush1.msra.mxu0 0.0
    %1944 = vmatprep.subr.mxu0 0.0
    %1945 = vmatpush1.msra.mxu0 0.0
    %1946 = vmatprep.subr.mxu0 0.0
    %1947 = vmatpush1.msra.mxu0 0.0
    %1948 = vmatprep.subr.mxu0 0.0
    %1949 = vmatpush1.msra.mxu0 0.0
    %1950 = vmatprep.subr.mxu0 0.0
    %1951 = vmatpush1.msra.mxu0 0.0
    %1952 = vmatprep.subr.mxu0 0.0
    %1953 = vmatpush1.msra.mxu0 0.0
    %1954 = vmatprep.subr.mxu0 0.0
    %1955 = vmatpush1.msra.mxu0 0.0
    %1956 = vmatprep.subr.mxu0 0.0
    %1957 = vmatpush1.msra.mxu0 0.0
    %1958 = vmatprep.subr.mxu0 0.0
    %1959 = vmatpush1.msra.mxu0 0.0
    %1960 = vmatprep.subr.mxu0 0.0
    %1961 = vmatpush1.msra.mxu0 0.0
    %1962 = vmatprep.subr.mxu0 0.0
    %1963 = vmatpush1.msra.mxu0 0.0
    %1964 = vmatprep.subr.mxu0 0.0
    %1965 = vmatpush1.msra.mxu0 0.0
    %1966 = vmatprep.subr.mxu0 0.0
    %1967 = vmatpush1.msra.mxu0 0.0
    %1968 = vmatprep.subr.mxu0 0.0
    %1969 = vmatpush1.msra.mxu0 0.0
    %1970 = vmatprep.subr.mxu0 0.0
    %1971 = vmatpush1.msra.mxu0 0.0
    %1972 = vmatprep.subr.mxu0 0.0
    %1973 = vmatpush1.msra.mxu0 0.0
    %1974 = vmatprep.subr.mxu0 0.0
    %1975 = vmatpush1.msra.mxu0 0.0
    %1976 = vmatprep.mubr.f32.mxu0 0.0
    %1977 = vmatmul.mubr.f32.gmra.mrb[0].mxu0 %v1910
    %v1978 = vpop.f32.mrb[0].mxu0
    %v1979 = vadd.f32 0.0, %v1978
    %v1980 = vpop.f32.mrb[0].mxu0
    %1981 = vdwg.mxu0
    %v1983 = vsel %vm1616, %v1605, 0
    %1985 = vmatprep.subr.mxu0 0.0
    %1986 = vmatpush1.msra.mxu0 %v86
    %1987 = vmatprep.subr.mxu0 0.0
    %1988 = vmatpush1.msra.mxu0 %v87
    %1989 = vmatprep.subr.mxu0 0.0
    %1990 = vmatpush1.msra.mxu0 0.0
    %1991 = vmatprep.subr.mxu0 0.0
    %1992 = vmatpush1.msra.mxu0 0.0
    %1993 = vmatprep.subr.mxu0 0.0
    %1994 = vmatpush1.msra.mxu0 0.0
    %1995 = vmatprep.subr.mxu0 0.0
    %1996 = vmatpush1.msra.mxu0 0.0
    %1997 = vmatprep.subr.mxu0 0.0
    %1998 = vmatpush1.msra.mxu0 0.0
    %1999 = vmatprep.subr.mxu0 0.0
    %2000 = vmatpush1.msra.mxu0 0.0
    %2001 = vmatprep.subr.mxu0 0.0
    %2002 = vmatpush1.msra.mxu0 0.0
    %2003 = vmatprep.subr.mxu0 0.0
    %2004 = vmatpush1.msra.mxu0 0.0
    %2005 = vmatprep.subr.mxu0 0.0
    %2006 = vmatpush1.msra.mxu0 0.0
    %2007 = vmatprep.subr.mxu0 0.0
    %2008 = vmatpush1.msra.mxu0 0.0
    %2009 = vmatprep.subr.mxu0 0.0
    %2010 = vmatpush1.msra.mxu0 0.0
    %2011 = vmatprep.subr.mxu0 0.0
    %2012 = vmatpush1.msra.mxu0 0.0
    %2013 = vmatprep.subr.mxu0 0.0
    %2014 = vmatpush1.msra.mxu0 0.0
    %2015 = vmatprep.subr.mxu0 0.0
    %2016 = vmatpush1.msra.mxu0 0.0
    %2017 = vmatprep.subr.mxu0 0.0
    %2018 = vmatpush1.msra.mxu0 0.0
    %2019 = vmatprep.subr.mxu0 0.0
    %2020 = vmatpush1.msra.mxu0 0.0
    %2021 = vmatprep.subr.mxu0 0.0
    %2022 = vmatpush1.msra.mxu0 0.0
    %2023 = vmatprep.subr.mxu0 0.0
    %2024 = vmatpush1.msra.mxu0 0.0
    %2025 = vmatprep.subr.mxu0 0.0
    %2026 = vmatpush1.msra.mxu0 0.0
    %2027 = vmatprep.subr.mxu0 0.0
    %2028 = vmatpush1.msra.mxu0 0.0
    %2029 = vmatprep.subr.mxu0 0.0
    %2030 = vmatpush1.msra.mxu0 0.0
    %2031 = vmatprep.subr.mxu0 0.0
    %2032 = vmatpush1.msra.mxu0 0.0
    %2033 = vmatprep.subr.mxu0 0.0
    %2034 = vmatpush1.msra.mxu0 0.0
    %2035 = vmatprep.subr.mxu0 0.0
    %2036 = vmatpush1.msra.mxu0 0.0
    %2037 = vmatprep.subr.mxu0 0.0
    %2038 = vmatpush1.msra.mxu0 0.0
    %2039 = vmatprep.subr.mxu0 0.0
    %2040 = vmatpush1.msra.mxu0 0.0
    %2041 = vmatprep.subr.mxu0 0.0
    %2042 = vmatpush1.msra.mxu0 0.0
    %2043 = vmatprep.subr.mxu0 0.0
    %2044 = vmatpush1.msra.mxu0 0.0
    %2045 = vmatprep.subr.mxu0 0.0
    %2046 = vmatpush1.msra.mxu0 0.0
    %2047 = vmatprep.subr.mxu0 0.0
    %2048 = vmatpush1.msra.mxu0 0.0
    %2049 = vmatprep.mubr.f32.mxu0 0.0
    %2050 = vmatmul.mubr.f32.gmra.mrb[0].mxu0 %v1983
    %v2051 = vpop.f32.mrb[0].mxu0
    %v2052 = vadd.f32 0.0, %v2051
    %v2053 = vpop.f32.mrb[0].mxu0
    %2054 = vdwg.mxu0
    %v2056 = vsel %vm1616, %v1606, 0
    %2058 = vmatprep.subr.mxu0 0.0
    %2059 = vmatpush1.msra.mxu0 %v88
    %2060 = vmatprep.subr.mxu0 0.0
    %2061 = vmatpush1.msra.mxu0 %v89
    %2062 = vmatprep.subr.mxu0 0.0
    %2063 = vmatpush1.msra.mxu0 0.0
    %2064 = vmatprep.subr.mxu0 0.0
    %2065 = vmatpush1.msra.mxu0 0.0
    %2066 = vmatprep.subr.mxu0 0.0
    %2067 = vmatpush1.msra.mxu0 0.0
    %2068 = vmatprep.subr.mxu0 0.0
    %2069 = vmatpush1.msra.mxu0 0.0
    %2070 = vmatprep.subr.mxu0 0.0
    %2071 = vmatpush1.msra.mxu0 0.0
    %2072 = vmatprep.subr.mxu0 0.0
    %2073 = vmatpush1.msra.mxu0 0.0
    %2074 = vmatprep.subr.mxu0 0.0
    %2075 = vmatpush1.msra.mxu0 0.0
    %2076 = vmatprep.subr.mxu0 0.0
    %2077 = vmatpush1.msra.mxu0 0.0
    %2078 = vmatprep.subr.mxu0 0.0
    %2079 = vmatpush1.msra.mxu0 0.0
    %2080 = vmatprep.subr.mxu0 0.0
    %2081 = vmatpush1.msra.mxu0 0.0
    %2082 = vmatprep.subr.mxu0 0.0
    %2083 = vmatpush1.msra.mxu0 0.0
    %2084 = vmatprep.subr.mxu0 0.0
    %2085 = vmatpush1.msra.mxu0 0.0
    %2086 = vmatprep.subr.mxu0 0.0
    %2087 = vmatpush1.msra.mxu0 0.0
    %2088 = vmatprep.subr.mxu0 0.0
    %2089 = vmatpush1.msra.mxu0 0.0
    %2090 = vmatprep.subr.mxu0 0.0
    %2091 = vmatpush1.msra.mxu0 0.0
    %2092 = vmatprep.subr.mxu0 0.0
    %2093 = vmatpush1.msra.mxu0 0.0
    %2094 = vmatprep.subr.mxu0 0.0
    %2095 = vmatpush1.msra.mxu0 0.0
    %2096 = vmatprep.subr.mxu0 0.0
    %2097 = vmatpush1.msra.mxu0 0.0
    %2098 = vmatprep.subr.mxu0 0.0
    %2099 = vmatpush1.msra.mxu0 0.0
    %2100 = vmatprep.subr.mxu0 0.0
    %2101 = vmatpush1.msra.mxu0 0.0
    %2102 = vmatprep.subr.mxu0 0.0
    %2103 = vmatpush1.msra.mxu0 0.0
    %2104 = vmatprep.subr.mxu0 0.0
    %2105 = vmatpush1.msra.mxu0 0.0
    %2106 = vmatprep.subr.mxu0 0.0
    %2107 = vmatpush1.msra.mxu0 0.0
    %2108 = vmatprep.subr.mxu0 0.0
    %2109 = vmatpush1.msra.mxu0 0.0
    %2110 = vmatprep.subr.mxu0 0.0
    %2111 = vmatpush1.msra.mxu0 0.0
    %2112 = vmatprep.subr.mxu0 0.0
    %2113 = vmatpush1.msra.mxu0 0.0
    %2114 = vmatprep.subr.mxu0 0.0
    %2115 = vmatpush1.msra.mxu0 0.0
    %2116 = vmatprep.subr.mxu0 0.0
    %2117 = vmatpush1.msra.mxu0 0.0
    %2118 = vmatprep.subr.mxu0 0.0
    %2119 = vmatpush1.msra.mxu0 0.0
    %2120 = vmatprep.subr.mxu0 0.0
    %2121 = vmatpush1.msra.mxu0 0.0
    %2122 = vmatprep.mubr.f32.mxu0 0.0
    %2123 = vmatmul.mubr.f32.gmra.mrb[0].mxu0 %v2056
    %v2124 = vpop.f32.mrb[0].mxu0
    %v2125 = vadd.f32 0.0, %v2124
    %v2126 = vpop.f32.mrb[0].mxu0
    %2127 = vdwg.mxu0
    %v2129 = vsel %vm1616, %v1607, 0
    %2131 = vmatprep.subr.mxu0 0.0
    %2132 = vmatpush1.msra.mxu0 %v90
    %2133 = vmatprep.subr.mxu0 0.0
    %2134 = vmatpush1.msra.mxu0 %v91
    %2135 = vmatprep.subr.mxu0 0.0
    %2136 = vmatpush1.msra.mxu0 0.0
    %2137 = vmatprep.subr.mxu0 0.0
    %2138 = vmatpush1.msra.mxu0 0.0
    %2139 = vmatprep.subr.mxu0 0.0
    %2140 = vmatpush1.msra.mxu0 0.0
    %2141 = vmatprep.subr.mxu0 0.0
    %2142 = vmatpush1.msra.mxu0 0.0
    %2143 = vmatprep.subr.mxu0 0.0
    %2144 = vmatpush1.msra.mxu0 0.0
    %2145 = vmatprep.subr.mxu0 0.0
    %2146 = vmatpush1.msra.mxu0 0.0
    %2147 = vmatprep.subr.mxu0 0.0
    %2148 = vmatpush1.msra.mxu0 0.0
    %2149 = vmatprep.subr.mxu0 0.0
    %2150 = vmatpush1.msra.mxu0 0.0
    %2151 = vmatprep.subr.mxu0 0.0
    %2152 = vmatpush1.msra.mxu0 0.0
    %2153 = vmatprep.subr.mxu0 0.0
    %2154 = vmatpush1.msra.mxu0 0.0
    %2155 = vmatprep.subr.mxu0 0.0
    %2156 = vmatpush1.msra.mxu0 0.0
    %2157 = vmatprep.subr.mxu0 0.0
    %2158 = vmatpush1.msra.mxu0 0.0
    %2159 = vmatprep.subr.mxu0 0.0
    %2160 = vmatpush1.msra.mxu0 0.0
    %2161 = vmatprep.subr.mxu0 0.0
    %2162 = vmatpush1.msra.mxu0 0.0
    %2163 = vmatprep.subr.mxu0 0.0
    %2164 = vmatpush1.msra.mxu0 0.0
    %2165 = vmatprep.subr.mxu0 0.0
    %2166 = vmatpush1.msra.mxu0 0.0
    %2167 = vmatprep.subr.mxu0 0.0
    %2168 = vmatpush1.msra.mxu0 0.0
    %2169 = vmatprep.subr.mxu0 0.0
    %2170 = vmatpush1.msra.mxu0 0.0
    %2171 = vmatprep.subr.mxu0 0.0
    %2172 = vmatpush1.msra.mxu0 0.0
    %2173 = vmatprep.subr.mxu0 0.0
    %2174 = vmatpush1.msra.mxu0 0.0
    %2175 = vmatprep.subr.mxu0 0.0
    %2176 = vmatpush1.msra.mxu0 0.0
    %2177 = vmatprep.subr.mxu0 0.0
    %2178 = vmatpush1.msra.mxu0 0.0
    %2179 = vmatprep.subr.mxu0 0.0
    %2180 = vmatpush1.msra.mxu0 0.0
    %2181 = vmatprep.subr.mxu0 0.0
    %2182 = vmatpush1.msra.mxu0 0.0
    %2183 = vmatprep.subr.mxu0 0.0
    %2184 = vmatpush1.msra.mxu0 0.0
    %2185 = vmatprep.subr.mxu0 0.0
    %2186 = vmatpush1.msra.mxu0 0.0
    %2187 = vmatprep.subr.mxu0 0.0
    %2188 = vmatpush1.msra.mxu0 0.0
    %2189 = vmatprep.subr.mxu0 0.0
    %2190 = vmatpush1.msra.mxu0 0.0
    %2191 = vmatprep.subr.mxu0 0.0
    %2192 = vmatpush1.msra.mxu0 0.0
    %2193 = vmatprep.subr.mxu0 0.0
    %2194 = vmatpush1.msra.mxu0 0.0
    %2195 = vmatprep.mubr.f32.mxu0 0.0
    %2196 = vmatmul.mubr.f32.gmra.mrb[0].mxu0 %v2129
    %v2197 = vpop.f32.mrb[0].mxu0
    %v2198 = vadd.f32 0.0, %v2197
    %v2199 = vpop.f32.mrb[0].mxu0
    %2200 = vdwg.mxu0
    %v2202 = vsel %vm1616, %v1608, 0
    %2204 = vmatprep.subr.mxu0 0.0
    %2205 = vmatpush1.msra.mxu0 %v92
    %2206 = vmatprep.subr.mxu0 0.0
    %2207 = vmatpush1.msra.mxu0 %v93
    %2208 = vmatprep.subr.mxu0 0.0
    %2209 = vmatpush1.msra.mxu0 0.0
    %2210 = vmatprep.subr.mxu0 0.0
    %2211 = vmatpush1.msra.mxu0 0.0
    %2212 = vmatprep.subr.mxu0 0.0
    %2213 = vmatpush1.msra.mxu0 0.0
    %2214 = vmatprep.subr.mxu0 0.0
    %2215 = vmatpush1.msra.mxu0 0.0
    %2216 = vmatprep.subr.mxu0 0.0
    %2217 = vmatpush1.msra.mxu0 0.0
    %2218 = vmatprep.subr.mxu0 0.0
    %2219 = vmatpush1.msra.mxu0 0.0
    %2220 = vmatprep.subr.mxu0 0.0
    %2221 = vmatpush1.msra.mxu0 0.0
    %2222 = vmatprep.subr.mxu0 0.0
    %2223 = vmatpush1.msra.mxu0 0.0
    %2224 = vmatprep.subr.mxu0 0.0
    %2225 = vmatpush1.msra.mxu0 0.0
    %2226 = vmatprep.subr.mxu0 0.0
    %2227 = vmatpush1.msra.mxu0 0.0
    %2228 = vmatprep.subr.mxu0 0.0
    %2229 = vmatpush1.msra.mxu0 0.0
    %2230 = vmatprep.subr.mxu0 0.0
    %2231 = vmatpush1.msra.mxu0 0.0
    %2232 = vmatprep.subr.mxu0 0.0
    %2233 = vmatpush1.msra.mxu0 0.0
    %2234 = vmatprep.subr.mxu0 0.0
    %2235 = vmatpush1.msra.mxu0 0.0
    %2236 = vmatprep.subr.mxu0 0.0
    %2237 = vmatpush1.msra.mxu0 0.0
    %2238 = vmatprep.subr.mxu0 0.0
    %2239 = vmatpush1.msra.mxu0 0.0
    %2240 = vmatprep.subr.mxu0 0.0
    %2241 = vmatpush1.msra.mxu0 0.0
    %2242 = vmatprep.subr.mxu0 0.0
    %2243 = vmatpush1.msra.mxu0 0.0
    %2244 = vmatprep.subr.mxu0 0.0
    %2245 = vmatpush1.msra.mxu0 0.0
    %2246 = vmatprep.subr.mxu0 0.0
    %2247 = vmatpush1.msra.mxu0 0.0
    %2248 = vmatprep.subr.mxu0 0.0
    %2249 = vmatpush1.msra.mxu0 0.0
    %2250 = vmatprep.subr.mxu0 0.0
    %2251 = vmatpush1.msra.mxu0 0.0
    %2252 = vmatprep.subr.mxu0 0.0
    %2253 = vmatpush1.msra.mxu0 0.0
    %2254 = vmatprep.subr.mxu0 0.0
    %2255 = vmatpush1.msra.mxu0 0.0
    %2256 = vmatprep.subr.mxu0 0.0
    %2257 = vmatpush1.msra.mxu0 0.0
    %2258 = vmatprep.subr.mxu0 0.0
    %2259 = vmatpush1.msra.mxu0 0.0
    %2260 = vmatprep.subr.mxu0 0.0
    %2261 = vmatpush1.msra.mxu0 0.0
    %2262 = vmatprep.subr.mxu0 0.0
    %2263 = vmatpush1.msra.mxu0 0.0
    %2264 = vmatprep.subr.mxu0 0.0
    %2265 = vmatpush1.msra.mxu0 0.0
    %2266 = vmatprep.subr.mxu0 0.0
    %2267 = vmatpush1.msra.mxu0 0.0
    %2268 = vmatprep.mubr.f32.mxu0 0.0
    %2269 = vmatmul.mubr.f32.gmra.mrb[0].mxu0 %v2202
    %v2270 = vpop.f32.mrb[0].mxu0
    %v2271 = vadd.f32 0.0, %v2270
    %v2272 = vpop.f32.mrb[0].mxu0
    %2273 = vdwg.mxu0
    %v2275 = vsel %vm1616, %v1609, 0
    %2277 = vmatprep.subr.mxu0 0.0
    %2278 = vmatpush1.msra.mxu0 %v94
    %2279 = vmatprep.subr.mxu0 0.0
    %2280 = vmatpush1.msra.mxu0 %v95
    %2281 = vmatprep.subr.mxu0 0.0
    %2282 = vmatpush1.msra.mxu0 0.0
    %2283 = vmatprep.subr.mxu0 0.0
    %2284 = vmatpush1.msra.mxu0 0.0
    %2285 = vmatprep.subr.mxu0 0.0
    %2286 = vmatpush1.msra.mxu0 0.0
    %2287 = vmatprep.subr.mxu0 0.0
    %2288 = vmatpush1.msra.mxu0 0.0
    %2289 = vmatprep.subr.mxu0 0.0
    %2290 = vmatpush1.msra.mxu0 0.0
    %2291 = vmatprep.subr.mxu0 0.0
    %2292 = vmatpush1.msra.mxu0 0.0
    %2293 = vmatprep.subr.mxu0 0.0
    %2294 = vmatpush1.msra.mxu0 0.0
    %2295 = vmatprep.subr.mxu0 0.0
    %2296 = vmatpush1.msra.mxu0 0.0
    %2297 = vmatprep.subr.mxu0 0.0
    %2298 = vmatpush1.msra.mxu0 0.0
    %2299 = vmatprep.subr.mxu0 0.0
    %2300 = vmatpush1.msra.mxu0 0.0
    %2301 = vmatprep.subr.mxu0 0.0
    %2302 = vmatpush1.msra.mxu0 0.0
    %2303 = vmatprep.subr.mxu0 0.0
    %2304 = vmatpush1.msra.mxu0 0.0
    %2305 = vmatprep.subr.mxu0 0.0
    %2306 = vmatpush1.msra.mxu0 0.0
    %2307 = vmatprep.subr.mxu0 0.0
    %2308 = vmatpush1.msra.mxu0 0.0
    %2309 = vmatprep.subr.mxu0 0.0
    %2310 = vmatpush1.msra.mxu0 0.0
    %2311 = vmatprep.subr.mxu0 0.0
    %2312 = vmatpush1.msra.mxu0 0.0
    %2313 = vmatprep.subr.mxu0 0.0
    %2314 = vmatpush1.msra.mxu0 0.0
    %2315 = vmatprep.subr.mxu0 0.0
    %2316 = vmatpush1.msra.mxu0 0.0
    %2317 = vmatprep.subr.mxu0 0.0
    %2318 = vmatpush1.msra.mxu0 0.0
    %2319 = vmatprep.subr.mxu0 0.0
    %2320 = vmatpush1.msra.mxu0 0.0
    %2321 = vmatprep.subr.mxu0 0.0
    %2322 = vmatpush1.msra.mxu0 0.0
    %2323 = vmatprep.subr.mxu0 0.0
    %2324 = vmatpush1.msra.mxu0 0.0
    %2325 = vmatprep.subr.mxu0 0.0
    %2326 = vmatpush1.msra.mxu0 0.0
    %2327 = vmatprep.subr.mxu0 0.0
    %2328 = vmatpush1.msra.mxu0 0.0
    %2329 = vmatprep.subr.mxu0 0.0
    %2330 = vmatpush1.msra.mxu0 0.0
    %2331 = vmatprep.subr.mxu0 0.0
    %2332 = vmatpush1.msra.mxu0 0.0
    %2333 = vmatprep.subr.mxu0 0.0
    %2334 = vmatpush1.msra.mxu0 0.0
    %2335 = vmatprep.subr.mxu0 0.0
    %2336 = vmatpush1.msra.mxu0 0.0
    %2337 = vmatprep.subr.mxu0 0.0
    %2338 = vmatpush1.msra.mxu0 0.0
    %2339 = vmatprep.subr.mxu0 0.0
    %2340 = vmatpush1.msra.mxu0 0.0
    %2341 = vmatprep.mubr.f32.mxu0 0.0
    %2342 = vmatmul.mubr.f32.gmra.mrb[0].mxu0 %v2275
    %v2343 = vpop.f32.mrb[0].mxu0
    %v2344 = vadd.f32 0.0, %v2343
    %v2345 = vpop.f32.mrb[0].mxu0
    %2346 = vdwg.mxu0
    %v2348 = vsel %vm1616, %v1610, 0
    %2350 = vmatprep.subr.mxu0 0.0
    %2351 = vmatpush1.msra.mxu0 %v96
    %2352 = vmatprep.subr.mxu0 0.0
    %2353 = vmatpush1.msra.mxu0 %v97
    %2354 = vmatprep.subr.mxu0 0.0
    %2355 = vmatpush1.msra.mxu0 0.0
    %2356 = vmatprep.subr.mxu0 0.0
    %2357 = vmatpush1.msra.mxu0 0.0
    %2358 = vmatprep.subr.mxu0 0.0
    %2359 = vmatpush1.msra.mxu0 0.0
    %2360 = vmatprep.subr.mxu0 0.0
    %2361 = vmatpush1.msra.mxu0 0.0
    %2362 = vmatprep.subr.mxu0 0.0
    %2363 = vmatpush1.msra.mxu0 0.0
    %2364 = vmatprep.subr.mxu0 0.0
    %2365 = vmatpush1.msra.mxu0 0.0
    %2366 = vmatprep.subr.mxu0 0.0
    %2367 = vmatpush1.msra.mxu0 0.0
    %2368 = vmatprep.subr.mxu0 0.0
    %2369 = vmatpush1.msra.mxu0 0.0
    %2370 = vmatprep.subr.mxu0 0.0
    %2371 = vmatpush1.msra.mxu0 0.0
    %2372 = vmatprep.subr.mxu0 0.0
    %2373 = vmatpush1.msra.mxu0 0.0
    %2374 = vmatprep.subr.mxu0 0.0
    %2375 = vmatpush1.msra.mxu0 0.0
    %2376 = vmatprep.subr.mxu0 0.0
    %2377 = vmatpush1.msra.mxu0 0.0
    %2378 = vmatprep.subr.mxu0 0.0
    %2379 = vmatpush1.msra.mxu0 0.0
    %2380 = vmatprep.subr.mxu0 0.0
    %2381 = vmatpush1.msra.mxu0 0.0
    %2382 = vmatprep.subr.mxu0 0.0
    %2383 = vmatpush1.msra.mxu0 0.0
    %2384 = vmatprep.subr.mxu0 0.0
    %2385 = vmatpush1.msra.mxu0 0.0
    %2386 = vmatprep.subr.mxu0 0.0
    %2387 = vmatpush1.msra.mxu0 0.0
    %2388 = vmatprep.subr.mxu0 0.0
    %2389 = vmatpush1.msra.mxu0 0.0
    %2390 = vmatprep.subr.mxu0 0.0
    %2391 = vmatpush1.msra.mxu0 0.0
    %2392 = vmatprep.subr.mxu0 0.0
    %2393 = vmatpush1.msra.mxu0 0.0
    %2394 = vmatprep.subr.mxu0 0.0
    %2395 = vmatpush1.msra.mxu0 0.0
    %2396 = vmatprep.subr.mxu0 0.0
    %2397 = vmatpush1.msra.mxu0 0.0
    %2398 = vmatprep.subr.mxu0 0.0
    %2399 = vmatpush1.msra.mxu0 0.0
    %2400 = vmatprep.subr.mxu0 0.0
    %2401 = vmatpush1.msra.mxu0 0.0
    %2402 = vmatprep.subr.mxu0 0.0
    %2403 = vmatpush1.msra.mxu0 0.0
    %2404 = vmatprep.subr.mxu0 0.0
    %2405 = vmatpush1.msra.mxu0 0.0
    %2406 = vmatprep.subr.mxu0 0.0
    %2407 = vmatpush1.msra.mxu0 0.0
    %2408 = vmatprep.subr.mxu0 0.0
    %2409 = vmatpush1.msra.mxu0 0.0
    %2410 = vmatprep.subr.mxu0 0.0
    %2411 = vmatpush1.msra.mxu0 0.0
    %2412 = vmatprep.subr.mxu0 0.0
    %2413 = vmatpush1.msra.mxu0 0.0
    %2414 = vmatprep.mubr.f32.mxu0 0.0
    %2415 = vmatmul.mubr.f32.gmra.mrb[0].mxu0 %v2348
    %v2416 = vpop.f32.mrb[0].mxu0
    %v2417 = vadd.f32 0.0, %v2416
    %v2418 = vpop.f32.mrb[0].mxu0
    %2419 = vdwg.mxu0
    %v2421 = vsel %vm1616, %v1611, 0
    %2423 = vmatprep.subr.mxu0 0.0
    %2424 = vmatpush1.msra.mxu0 %v98
    %2425 = vmatprep.subr.mxu0 0.0
    %2426 = vmatpush1.msra.mxu0 %v99
    %2427 = vmatprep.subr.mxu0 0.0
    %2428 = vmatpush1.msra.mxu0 0.0
    %2429 = vmatprep.subr.mxu0 0.0
    %2430 = vmatpush1.msra.mxu0 0.0
    %2431 = vmatprep.subr.mxu0 0.0
    %2432 = vmatpush1.msra.mxu0 0.0
    %2433 = vmatprep.subr.mxu0 0.0
    %2434 = vmatpush1.msra.mxu0 0.0
    %2435 = vmatprep.subr.mxu0 0.0
    %2436 = vmatpush1.msra.mxu0 0.0
    %2437 = vmatprep.subr.mxu0 0.0
    %2438 = vmatpush1.msra.mxu0 0.0
    %2439 = vmatprep.subr.mxu0 0.0
    %2440 = vmatpush1.msra.mxu0 0.0
    %2441 = vmatprep.subr.mxu0 0.0
    %2442 = vmatpush1.msra.mxu0 0.0
    %2443 = vmatprep.subr.mxu0 0.0
    %2444 = vmatpush1.msra.mxu0 0.0
    %2445 = vmatprep.subr.mxu0 0.0
    %2446 = vmatpush1.msra.mxu0 0.0
    %2447 = vmatprep.subr.mxu0 0.0
    %2448 = vmatpush1.msra.mxu0 0.0
    %2449 = vmatprep.subr.mxu0 0.0
    %2450 = vmatpush1.msra.mxu0 0.0
    %2451 = vmatprep.subr.mxu0 0.0
    %2452 = vmatpush1.msra.mxu0 0.0
    %2453 = vmatprep.subr.mxu0 0.0
    %2454 = vmatpush1.msra.mxu0 0.0
    %2455 = vmatprep.subr.mxu0 0.0
    %2456 = vmatpush1.msra.mxu0 0.0
    %2457 = vmatprep.subr.mxu0 0.0
    %2458 = vmatpush1.msra.mxu0 0.0
    %2459 = vmatprep.subr.mxu0 0.0
    %2460 = vmatpush1.msra.mxu0 0.0
    %2461 = vmatprep.subr.mxu0 0.0
    %2462 = vmatpush1.msra.mxu0 0.0
    %2463 = vmatprep.subr.mxu0 0.0
    %2464 = vmatpush1.msra.mxu0 0.0
    %2465 = vmatprep.subr.mxu0 0.0
    %2466 = vmatpush1.msra.mxu0 0.0
    %2467 = vmatprep.subr.mxu0 0.0
    %2468 = vmatpush1.msra.mxu0 0.0
    %2469 = vmatprep.subr.mxu0 0.0
    %2470 = vmatpush1.msra.mxu0 0.0
    %2471 = vmatprep.subr.mxu0 0.0
    %2472 = vmatpush1.msra.mxu0 0.0
    %2473 = vmatprep.subr.mxu0 0.0
    %2474 = vmatpush1.msra.mxu0 0.0
    %2475 = vmatprep.subr.mxu0 0.0
    %2476 = vmatpush1.msra.mxu0 0.0
    %2477 = vmatprep.subr.mxu0 0.0
    %2478 = vmatpush1.msra.mxu0 0.0
    %2479 = vmatprep.subr.mxu0 0.0
    %2480 = vmatpush1.msra.mxu0 0.0
    %2481 = vmatprep.subr.mxu0 0.0
    %2482 = vmatpush1.msra.mxu0 0.0
    %2483 = vmatprep.subr.mxu0 0.0
    %2484 = vmatpush1.msra.mxu0 0.0
    %2485 = vmatprep.subr.mxu0 0.0
    %2486 = vmatpush1.msra.mxu0 0.0
    %2487 = vmatprep.mubr.f32.mxu0 0.0
    %2488 = vmatmul.mubr.f32.gmra.mrb[0].mxu0 %v2421
    %v2489 = vpop.f32.mrb[0].mxu0
    %v2490 = vadd.f32 0.0, %v2489
    %v2491 = vpop.f32.mrb[0].mxu0
    %2492 = vdwg.mxu0
    %v2494 = vsel %vm1616, %v1612, 0
    %2496 = vmatprep.subr.mxu0 0.0
    %2497 = vmatpush1.msra.mxu0 %v100
    %2498 = vmatprep.subr.mxu0 0.0
    %2499 = vmatpush1.msra.mxu0 %v101
    %2500 = vmatprep.subr.mxu0 0.0
    %2501 = vmatpush1.msra.mxu0 0.0
    %2502 = vmatprep.subr.mxu0 0.0
    %2503 = vmatpush1.msra.mxu0 0.0
    %2504 = vmatprep.subr.mxu0 0.0
    %2505 = vmatpush1.msra.mxu0 0.0
    %2506 = vmatprep.subr.mxu0 0.0
    %2507 = vmatpush1.msra.mxu0 0.0
    %2508 = vmatprep.subr.mxu0 0.0
    %2509 = vmatpush1.msra.mxu0 0.0
    %2510 = vmatprep.subr.mxu0 0.0
    %2511 = vmatpush1.msra.mxu0 0.0
    %2512 = vmatprep.subr.mxu0 0.0
    %2513 = vmatpush1.msra.mxu0 0.0
    %2514 = vmatprep.subr.mxu0 0.0
    %2515 = vmatpush1.msra.mxu0 0.0
    %2516 = vmatprep.subr.mxu0 0.0
    %2517 = vmatpush1.msra.mxu0 0.0
    %2518 = vmatprep.subr.mxu0 0.0
    %2519 = vmatpush1.msra.mxu0 0.0
    %2520 = vmatprep.subr.mxu0 0.0
    %2521 = vmatpush1.msra.mxu0 0.0
    %2522 = vmatprep.subr.mxu0 0.0
    %2523 = vmatpush1.msra.mxu0 0.0
    %2524 = vmatprep.subr.mxu0 0.0
    %2525 = vmatpush1.msra.mxu0 0.0
    %2526 = vmatprep.subr.mxu0 0.0
    %2527 = vmatpush1.msra.mxu0 0.0
    %2528 = vmatprep.subr.mxu0 0.0
    %2529 = vmatpush1.msra.mxu0 0.0
    %2530 = vmatprep.subr.mxu0 0.0
    %2531 = vmatpush1.msra.mxu0 0.0
    %2532 = vmatprep.subr.mxu0 0.0
    %2533 = vmatpush1.msra.mxu0 0.0
    %2534 = vmatprep.subr.mxu0 0.0
    %2535 = vmatpush1.msra.mxu0 0.0
    %2536 = vmatprep.subr.mxu0 0.0
    %2537 = vmatpush1.msra.mxu0 0.0
    %2538 = vmatprep.subr.mxu0 0.0
    %2539 = vmatpush1.msra.mxu0 0.0
    %2540 = vmatprep.subr.mxu0 0.0
    %2541 = vmatpush1.msra.mxu0 0.0
    %2542 = vmatprep.subr.mxu0 0.0
    %2543 = vmatpush1.msra.mxu0 0.0
    %2544 = vmatprep.subr.mxu0 0.0
    %2545 = vmatpush1.msra.mxu0 0.0
    %2546 = vmatprep.subr.mxu0 0.0
    %2547 = vmatpush1.msra.mxu0 0.0
    %2548 = vmatprep.subr.mxu0 0.0
    %2549 = vmatpush1.msra.mxu0 0.0
    %2550 = vmatprep.subr.mxu0 0.0
    %2551 = vmatpush1.msra.mxu0 0.0
    %2552 = vmatprep.subr.mxu0 0.0
    %2553 = vmatpush1.msra.mxu0 0.0
    %2554 = vmatprep.subr.mxu0 0.0
    %2555 = vmatpush1.msra.mxu0 0.0
    %2556 = vmatprep.subr.mxu0 0.0
    %2557 = vmatpush1.msra.mxu0 0.0
    %2558 = vmatprep.subr.mxu0 0.0
    %2559 = vmatpush1.msra.mxu0 0.0
    %2560 = vmatprep.mubr.f32.mxu0 0.0
    %2561 = vmatmul.mubr.f32.gmra.mrb[0].mxu0 %v2494
    %v2562 = vpop.f32.mrb[0].mxu0
    %v2563 = vadd.f32 0.0, %v2562
    %v2564 = vpop.f32.mrb[0].mxu0
    %2565 = vdwg.mxu0
    %v2567 = vsel %vm1616, %v1613, 0
    %2569 = vmatprep.subr.mxu0 0.0
    %2570 = vmatpush1.msra.mxu0 %v102
    %2571 = vmatprep.subr.mxu0 0.0
    %2572 = vmatpush1.msra.mxu0 %v103
    %2573 = vmatprep.subr.mxu0 0.0
    %2574 = vmatpush1.msra.mxu0 0.0
    %2575 = vmatprep.subr.mxu0 0.0
    %2576 = vmatpush1.msra.mxu0 0.0
    %2577 = vmatprep.subr.mxu0 0.0
    %2578 = vmatpush1.msra.mxu0 0.0
    %2579 = vmatprep.subr.mxu0 0.0
    %2580 = vmatpush1.msra.mxu0 0.0
    %2581 = vmatprep.subr.mxu0 0.0
    %2582 = vmatpush1.msra.mxu0 0.0
    %2583 = vmatprep.subr.mxu0 0.0
    %2584 = vmatpush1.msra.mxu0 0.0
    %2585 = vmatprep.subr.mxu0 0.0
    %2586 = vmatpush1.msra.mxu0 0.0
    %2587 = vmatprep.subr.mxu0 0.0
    %2588 = vmatpush1.msra.mxu0 0.0
    %2589 = vmatprep.subr.mxu0 0.0
    %2590 = vmatpush1.msra.mxu0 0.0
    %2591 = vmatprep.subr.mxu0 0.0
    %2592 = vmatpush1.msra.mxu0 0.0
    %2593 = vmatprep.subr.mxu0 0.0
    %2594 = vmatpush1.msra.mxu0 0.0
    %2595 = vmatprep.subr.mxu0 0.0
    %2596 = vmatpush1.msra.mxu0 0.0
    %2597 = vmatprep.subr.mxu0 0.0
    %2598 = vmatpush1.msra.mxu0 0.0
    %2599 = vmatprep.subr.mxu0 0.0
    %2600 = vmatpush1.msra.mxu0 0.0
    %2601 = vmatprep.subr.mxu0 0.0
    %2602 = vmatpush1.msra.mxu0 0.0
    %2603 = vmatprep.subr.mxu0 0.0
    %2604 = vmatpush1.msra.mxu0 0.0
    %2605 = vmatprep.subr.mxu0 0.0
    %2606 = vmatpush1.msra.mxu0 0.0
    %2607 = vmatprep.subr.mxu0 0.0
    %2608 = vmatpush1.msra.mxu0 0.0
    %2609 = vmatprep.subr.mxu0 0.0
    %2610 = vmatpush1.msra.mxu0 0.0
    %2611 = vmatprep.subr.mxu0 0.0
    %2612 = vmatpush1.msra.mxu0 0.0
    %2613 = vmatprep.subr.mxu0 0.0
    %2614 = vmatpush1.msra.mxu0 0.0
    %2615 = vmatprep.subr.mxu0 0.0
    %2616 = vmatpush1.msra.mxu0 0.0
    %2617 = vmatprep.subr.mxu0 0.0
    %2618 = vmatpush1.msra.mxu0 0.0
    %2619 = vmatprep.subr.mxu0 0.0
    %2620 = vmatpush1.msra.mxu0 0.0
    %2621 = vmatprep.subr.mxu0 0.0
    %2622 = vmatpush1.msra.mxu0 0.0
    %2623 = vmatprep.subr.mxu0 0.0
    %2624 = vmatpush1.msra.mxu0 0.0
    %2625 = vmatprep.subr.mxu0 0.0
    %2626 = vmatpush1.msra.mxu0 0.0
    %2627 = vmatprep.subr.mxu0 0.0
    %2628 = vmatpush1.msra.mxu0 0.0
    %2629 = vmatprep.subr.mxu0 0.0
    %2630 = vmatpush1.msra.mxu0 0.0
    %2631 = vmatprep.subr.mxu0 0.0
    %2632 = vmatpush1.msra.mxu0 0.0
    %2633 = vmatprep.mubr.f32.mxu0 0.0
    %2634 = vmatmul.mubr.f32.gmra.mrb[0].mxu0 %v2567
    %v2635 = vpop.f32.mrb[0].mxu0
    %v2636 = vadd.f32 0.0, %v2635
    %v2637 = vpop.f32.mrb[0].mxu0
    %2638 = vdwg.mxu0
    %v2640 = vsel %vm1616, %v1614, 0
    %2642 = vmatprep.subr.mxu0 0.0
    %2643 = vmatpush1.msra.mxu0 %v104
    %2644 = vmatprep.subr.mxu0 0.0
    %2645 = vmatpush1.msra.mxu0 %v105
    %2646 = vmatprep.subr.mxu0 0.0
    %2647 = vmatpush1.msra.mxu0 0.0
    %2648 = vmatprep.subr.mxu0 0.0
    %2649 = vmatpush1.msra.mxu0 0.0
    %2650 = vmatprep.subr.mxu0 0.0
    %2651 = vmatpush1.msra.mxu0 0.0
    %2652 = vmatprep.subr.mxu0 0.0
    %2653 = vmatpush1.msra.mxu0 0.0
    %2654 = vmatprep.subr.mxu0 0.0
    %2655 = vmatpush1.msra.mxu0 0.0
    %2656 = vmatprep.subr.mxu0 0.0
    %2657 = vmatpush1.msra.mxu0 0.0
    %2658 = vmatprep.subr.mxu0 0.0
    %2659 = vmatpush1.msra.mxu0 0.0
    %2660 = vmatprep.subr.mxu0 0.0
    %2661 = vmatpush1.msra.mxu0 0.0
    %2662 = vmatprep.subr.mxu0 0.0
    %2663 = vmatpush1.msra.mxu0 0.0
    %2664 = vmatprep.subr.mxu0 0.0
    %2665 = vmatpush1.msra.mxu0 0.0
    %2666 = vmatprep.subr.mxu0 0.0
    %2667 = vmatpush1.msra.mxu0 0.0
    %2668 = vmatprep.subr.mxu0 0.0
    %2669 = vmatpush1.msra.mxu0 0.0
    %2670 = vmatprep.subr.mxu0 0.0
    %2671 = vmatpush1.msra.mxu0 0.0
    %2672 = vmatprep.subr.mxu0 0.0
    %2673 = vmatpush1.msra.mxu0 0.0
    %2674 = vmatprep.subr.mxu0 0.0
    %2675 = vmatpush1.msra.mxu0 0.0
    %2676 = vmatprep.subr.mxu0 0.0
    %2677 = vmatpush1.msra.mxu0 0.0
    %2678 = vmatprep.subr.mxu0 0.0
    %2679 = vmatpush1.msra.mxu0 0.0
    %2680 = vmatprep.subr.mxu0 0.0
    %2681 = vmatpush1.msra.mxu0 0.0
    %2682 = vmatprep.subr.mxu0 0.0
    %2683 = vmatpush1.msra.mxu0 0.0
    %2684 = vmatprep.subr.mxu0 0.0
    %2685 = vmatpush1.msra.mxu0 0.0
    %2686 = vmatprep.subr.mxu0 0.0
    %2687 = vmatpush1.msra.mxu0 0.0
    %2688 = vmatprep.subr.mxu0 0.0
    %2689 = vmatpush1.msra.mxu0 0.0
    %2690 = vmatprep.subr.mxu0 0.0
    %2691 = vmatpush1.msra.mxu0 0.0
    %2692 = vmatprep.subr.mxu0 0.0
    %2693 = vmatpush1.msra.mxu0 0.0
    %2694 = vmatprep.subr.mxu0 0.0
    %2695 = vmatpush1.msra.mxu0 0.0
    %2696 = vmatprep.subr.mxu0 0.0
    %2697 = vmatpush1.msra.mxu0 0.0
    %2698 = vmatprep.subr.mxu0 0.0
    %2699 = vmatpush1.msra.mxu0 0.0
    %2700 = vmatprep.subr.mxu0 0.0
    %2701 = vmatpush1.msra.mxu0 0.0
    %2702 = vmatprep.subr.mxu0 0.0
    %2703 = vmatpush1.msra.mxu0 0.0
    %2704 = vmatprep.subr.mxu0 0.0
    %2705 = vmatpush1.msra.mxu0 0.0
    %2706 = vmatprep.mubr.f32.mxu0 0.0
    %2707 = vmatmul.mubr.f32.gmra.mrb[0].mxu0 %v2640
    %v2708 = vpop.f32.mrb[0].mxu0
    %v2709 = vadd.f32 0.0, %v2708
    %v2710 = vpop.f32.mrb[0].mxu0
    %2711 = vdwg.mxu0
    %v2713 = vsel %vm1616, %v1615, 0
    %2715 = vmatprep.subr.mxu0 0.0
    %2716 = vmatpush1.msra.mxu0 %v106
    %2717 = vmatprep.subr.mxu0 0.0
    %2718 = vmatpush1.msra.mxu0 %v107
    %2719 = vmatprep.subr.mxu0 0.0
    %2720 = vmatpush1.msra.mxu0 0.0
    %2721 = vmatprep.subr.mxu0 0.0
    %2722 = vmatpush1.msra.mxu0 0.0
    %2723 = vmatprep.subr.mxu0 0.0
    %2724 = vmatpush1.msra.mxu0 0.0
    %2725 = vmatprep.subr.mxu0 0.0
    %2726 = vmatpush1.msra.mxu0 0.0
    %2727 = vmatprep.subr.mxu0 0.0
    %2728 = vmatpush1.msra.mxu0 0.0
    %2729 = vmatprep.subr.mxu0 0.0
    %2730 = vmatpush1.msra.mxu0 0.0
    %2731 = vmatprep.subr.mxu0 0.0
    %2732 = vmatpush1.msra.mxu0 0.0
    %2733 = vmatprep.subr.mxu0 0.0
    %2734 = vmatpush1.msra.mxu0 0.0
    %2735 = vmatprep.subr.mxu0 0.0
    %2736 = vmatpush1.msra.mxu0 0.0
    %2737 = vmatprep.subr.mxu0 0.0
    %2738 = vmatpush1.msra.mxu0 0.0
    %2739 = vmatprep.subr.mxu0 0.0
    %2740 = vmatpush1.msra.mxu0 0.0
    %2741 = vmatprep.subr.mxu0 0.0
    %2742 = vmatpush1.msra.mxu0 0.0
    %2743 = vmatprep.subr.mxu0 0.0
    %2744 = vmatpush1.msra.mxu0 0.0
    %2745 = vmatprep.subr.mxu0 0.0
    %2746 = vmatpush1.msra.mxu0 0.0
    %2747 = vmatprep.subr.mxu0 0.0
    %2748 = vmatpush1.msra.mxu0 0.0
    %2749 = vmatprep.subr.mxu0 0.0
    %2750 = vmatpush1.msra.mxu0 0.0
    %2751 = vmatprep.subr.mxu0 0.0
    %2752 = vmatpush1.msra.mxu0 0.0
    %2753 = vmatprep.subr.mxu0 0.0
    %2754 = vmatpush1.msra.mxu0 0.0
    %2755 = vmatprep.subr.mxu0 0.0
    %2756 = vmatpush1.msra.mxu0 0.0
    %2757 = vmatprep.subr.mxu0 0.0
    %2758 = vmatpush1.msra.mxu0 0.0
    %2759 = vmatprep.subr.mxu0 0.0
    %2760 = vmatpush1.msra.mxu0 0.0
    %2761 = vmatprep.subr.mxu0 0.0
    %2762 = vmatpush1.msra.mxu0 0.0
    %2763 = vmatprep.subr.mxu0 0.0
    %2764 = vmatpush1.msra.mxu0 0.0
    %2765 = vmatprep.subr.mxu0 0.0
    %2766 = vmatpush1.msra.mxu0 0.0
    %2767 = vmatprep.subr.mxu0 0.0
    %2768 = vmatpush1.msra.mxu0 0.0
    %2769 = vmatprep.subr.mxu0 0.0
    %2770 = vmatpush1.msra.mxu0 0.0
    %2771 = vmatprep.subr.mxu0 0.0
    %2772 = vmatpush1.msra.mxu0 0.0
    %2773 = vmatprep.subr.mxu0 0.0
    %2774 = vmatpush1.msra.mxu0 0.0
    %2775 = vmatprep.subr.mxu0 0.0
    %2776 = vmatpush1.msra.mxu0 0.0
    %2777 = vmatprep.subr.mxu0 0.0
    %2778 = vmatpush1.msra.mxu0 0.0
    %2779 = vmatprep.mubr.f32.mxu0 0.0
    %2780 = vmatmul.mubr.f32.gmra.mrb[0].mxu0 %v2713
    %v2781 = vpop.f32.mrb[0].mxu0
    %v2782 = vadd.f32 0.0, %v2781
    %v2783 = vpop.f32.mrb[0].mxu0
    %2784 = vdwg.mxu0
    %v2801 = vrot.slane %v1760, 7
    %vm2802 = vcmask 1041409
    %v2803 = vsel %vm2802, %v2801, %v1687
    %v2804 = vrot.slane %v1833, 6
    %vm2805 = vcmask 1042434
    %v2806 = vsel %vm2805, %v2804, %v2803
    %v2807 = vrot.slane %v1906, 5
    %vm2808 = vcmask 1043459
    %v2809 = vsel %vm2808, %v2807, %v2806
    %v2810 = vrot.slane %v1979, 4
    %vm2811 = vcmask 1044484
    %v2812 = vsel %vm2811, %v2810, %v2809
    %v2813 = vrot.slane %v2052, 3
    %vm2814 = vcmask 1045509
    %v2815 = vsel %vm2814, %v2813, %v2812
    %v2816 = vrot.slane %v2125, 2
    %vm2817 = vcmask 1046534
    %v2818 = vsel %vm2817, %v2816, %v2815
    %v2819 = vrot.slane %v2198, 1
    %vm2820 = vcmask 1047559
    %v2821 = vsel %vm2820, %v2819, %v2818
    %v2822 = vrot.slane %v2344, 7
    %v2823 = vsel %vm2802, %v2822, %v2271
    %v2824 = vrot.slane %v2417, 6
    %v2825 = vsel %vm2805, %v2824, %v2823
    %v2826 = vrot.slane %v2490, 5
    %v2827 = vsel %vm2808, %v2826, %v2825
    %v2828 = vrot.slane %v2563, 4
    %v2829 = vsel %vm2811, %v2828, %v2827
    %v2830 = vrot.slane %v2636, 3
    %v2831 = vsel %vm2814, %v2830, %v2829
    %v2832 = vrot.slane %v2709, 2
    %v2833 = vsel %vm2817, %v2832, %v2831
    %v2834 = vrot.slane %v2782, 1
    %v2835 = vsel %vm2820, %v2834, %v2833
    %v2838 = vrot.slane %v1687, 1
    %v2839 = vsel %vm2802, %v1760, %v2838
    %v2840 = vrot.slane %v1833, 7
    %v2841 = vsel %vm2805, %v2840, %v2839
    %v2842 = vrot.slane %v1906, 6
    %v2843 = vsel %vm2808, %v2842, %v2841
    %v2844 = vrot.slane %v1979, 5
    %v2845 = vsel %vm2811, %v2844, %v2843
    %v2846 = vrot.slane %v2052, 4
    %v2847 = vsel %vm2814, %v2846, %v2845
    %v2848 = vrot.slane %v2125, 3
    %v2849 = vsel %vm2817, %v2848, %v2847
    %v2850 = vrot.slane %v2198, 2
    %v2851 = vsel %vm2820, %v2850, %v2849
    %v2852 = vrot.slane %v2271, 1
    %v2853 = vsel %vm2802, %v2344, %v2852
    %v2854 = vrot.slane %v2417, 7
    %v2855 = vsel %vm2805, %v2854, %v2853
    %v2856 = vrot.slane %v2490, 6
    %v2857 = vsel %vm2808, %v2856, %v2855
    %v2858 = vrot.slane %v2563, 5
    %v2859 = vsel %vm2811, %v2858, %v2857
    %v2860 = vrot.slane %v2636, 4
    %v2861 = vsel %vm2814, %v2860, %v2859
    %v2862 = vrot.slane %v2709, 3
    %v2863 = vsel %vm2817, %v2862, %v2861
    %v2864 = vrot.slane %v2782, 2
    %v2865 = vsel %vm2820, %v2864, %v2863
    %2866 = vrot.lane.b32.xlu0 %v2851, 32
    %v2867 = vpop.permute.xlu0 %2866
    %2868 = vrot.lane.b32.xlu0 %v2865, 32
    %v2869 = vpop.permute.xlu0 %2868
    %v2872 = vrot.slane %v1687, 2
    %v2873 = vrot.slane %v1760, 1
    %v2874 = vsel %vm2802, %v2873, %v2872
    %v2875 = vsel %vm2805, %v1833, %v2874
    %v2876 = vrot.slane %v1906, 7
    %v2877 = vsel %vm2808, %v2876, %v2875
    %v2878 = vrot.slane %v1979, 6
    %v2879 = vsel %vm2811, %v2878, %v2877
    %v2880 = vrot.slane %v2052, 5
    %v2881 = vsel %vm2814, %v2880, %v2879
    %v2882 = vrot.slane %v2125, 4
    %v2883 = vsel %vm2817, %v2882, %v2881
    %v2884 = vrot.slane %v2198, 3
    %v2885 = vsel %vm2820, %v2884, %v2883
    %v2886 = vrot.slane %v2271, 2
    %v2887 = vrot.slane %v2344, 1
    %v2888 = vsel %vm2802, %v2887, %v2886
    %v2889 = vsel %vm2805, %v2417, %v2888
    %v2890 = vrot.slane %v2490, 7
    %v2891 = vsel %vm2808, %v2890, %v2889
    %v2892 = vrot.slane %v2563, 6
    %v2893 = vsel %vm2811, %v2892, %v2891
    %v2894 = vrot.slane %v2636, 5
    %v2895 = vsel %vm2814, %v2894, %v2893
    %v2896 = vrot.slane %v2709, 4
    %v2897 = vsel %vm2817, %v2896, %v2895
    %v2898 = vrot.slane %v2782, 3
    %v2899 = vsel %vm2820, %v2898, %v2897
    %2900 = vrot.lane.b32.xlu0 %v2885, 64
    %v2901 = vpop.permute.xlu0 %2900
    %2902 = vrot.lane.b32.xlu0 %v2899, 64
    %v2903 = vpop.permute.xlu0 %2902
    %v2906 = vrot.slane %v1687, 3
    %v2907 = vrot.slane %v1760, 2
    %v2908 = vsel %vm2802, %v2907, %v2906
    %v2909 = vrot.slane %v1833, 1
    %v2910 = vsel %vm2805, %v2909, %v2908
    %v2911 = vsel %vm2808, %v1906, %v2910
    %v2912 = vrot.slane %v1979, 7
    %v2913 = vsel %vm2811, %v2912, %v2911
    %v2914 = vrot.slane %v2052, 6
    %v2915 = vsel %vm2814, %v2914, %v2913
    %v2916 = vrot.slane %v2125, 5
    %v2917 = vsel %vm2817, %v2916, %v2915
    %v2918 = vrot.slane %v2198, 4
    %v2919 = vsel %vm2820, %v2918, %v2917
    %v2920 = vrot.slane %v2271, 3
    %v2921 = vrot.slane %v2344, 2
    %v2922 = vsel %vm2802, %v2921, %v2920
    %v2923 = vrot.slane %v2417, 1
    %v2924 = vsel %vm2805, %v2923, %v2922
    %v2925 = vsel %vm2808, %v2490, %v2924
    %v2926 = vrot.slane %v2563, 7
    %v2927 = vsel %vm2811, %v2926, %v2925
    %v2928 = vrot.slane %v2636, 6
    %v2929 = vsel %vm2814, %v2928, %v2927
    %v2930 = vrot.slane %v2709, 5
    %v2931 = vsel %vm2817, %v2930, %v2929
    %v2932 = vrot.slane %v2782, 4
    %v2933 = vsel %vm2820, %v2932, %v2931
    %2934 = vrot.lane.b32.xlu0 %v2919, 96
    %v2935 = vpop.permute.xlu0 %2934
    %2936 = vrot.lane.b32.xlu0 %v2933, 96
    %v2937 = vpop.permute.xlu0 %2936
    %v2940 = vsel %vm174, %v2821, %v2867
    %v2941 = vsel %vm174, %v2835, %v2869
    %vm2942 = vcmask 523264
    %v2943 = vsel %vm2942, %v2940, %v2901
    %v2944 = vsel %vm2942, %v2941, %v2903
    %vm2945 = vcmask 785408
    %v2946 = vsel %vm2945, %v2943, %v2935
    %v2947 = vsel %vm2945, %v2944, %v2937
    %v2948 = vld [vmem:[#allocation8] sm:$0xff]
    %v2949 = vld [vmem:[#allocation8 + $0x8] sm:$0xff]
    %v2950 = vld [vmem:[#allocation8 + $0x10] sm:$0xff]
    %v2951 = vld [vmem:[#allocation8 + $0x18] sm:$0xff]
    %v2952 = vld [vmem:[#allocation8 + $0x20] sm:$0xff]
    %v2953 = vld [vmem:[#allocation8 + $0x28] sm:$0xff]
    %v2954 = vld [vmem:[#allocation8 + $0x30] sm:$0xff]
    %v2955 = vld [vmem:[#allocation8 + $0x38] sm:$0xff]
    %v2956 = vld [vmem:[#allocation8 + $0x40] sm:$0xff]
    %v2957 = vld [vmem:[#allocation8 + $0x48] sm:$0xff]
    %v2958 = vld [vmem:[#allocation8 + $0x50] sm:$0xff]
    %v2959 = vld [vmem:[#allocation8 + $0x58] sm:$0xff]
    %v2960 = vld [vmem:[#allocation8 + $0x60] sm:$0xff]
    %v2961 = vld [vmem:[#allocation8 + $0x68] sm:$0xff]
    %v2962 = vld [vmem:[#allocation8 + $0x70] sm:$0xff]
    %v2963 = vld [vmem:[#allocation8 + $0x78] sm:$0xff]
    %v2964 = vld [vmem:[#allocation8 + $0x80] sm:$0xff]
    %v2965 = vld [vmem:[#allocation8 + $0x88] sm:$0xff]
    %v2966 = vld [vmem:[#allocation8 + $0x90] sm:$0xff]
    %v2967 = vld [vmem:[#allocation8 + $0x98] sm:$0xff]
    %v2968 = vld [vmem:[#allocation8 + $0xa0] sm:$0xff]
    %v2969 = vld [vmem:[#allocation8 + $0xa8] sm:$0xff]
    %v2970 = vld [vmem:[#allocation8 + $0xb0] sm:$0xff]
    %v2971 = vld [vmem:[#allocation8 + $0xb8] sm:$0xff]
    %v2972 = vld [vmem:[#allocation8 + $0xc0] sm:$0xff]
    %v2973 = vld [vmem:[#allocation8 + $0xc8] sm:$0xff]
    %v2974 = vld [vmem:[#allocation8 + $0xd0] sm:$0xff]
    %v2975 = vld [vmem:[#allocation8 + $0xd8] sm:$0xff]
    %v2976 = vld [vmem:[#allocation8 + $0xe0] sm:$0xff]
    %v2977 = vld [vmem:[#allocation8 + $0xe8] sm:$0xff]
    %v2978 = vld [vmem:[#allocation8 + $0xf0] sm:$0xff]
    %v2979 = vld [vmem:[#allocation8 + $0xf8] sm:$0xff]
    %v2980 = vld [vmem:[%s4] sm:$0x3]
    %v2982 = vlaneseq
    %v2983 = vshrl.u32 %v2982, 7
    %v2984 = vsub.s32 0, %v2983
    %v2985 = vrot.slane %v2980, %v2984
    %v2986 = vlaneseq
    %v2987 = vshrl.u32 %v2986, 7
    %v2988 = vsub.s32 1, %v2987
    %v2989 = vrot.slane %v2980, %v2988
    %2992 = vmatprep.subr.mxu0 %v2949
    %2993 = vmatpush1.msra.mxu0 %v2948
    %2994 = vmatprep.subr.mxu0 %v2951
    %2995 = vmatpush1.msra.mxu0 %v2950
    %2996 = vmatprep.subr.mxu0 %v2953
    %2997 = vmatpush1.msra.mxu0 %v2952
    %2998 = vmatprep.subr.mxu0 %v2955
    %2999 = vmatpush1.msra.mxu0 %v2954
    %3000 = vmatprep.subr.mxu0 %v2957
    %3001 = vmatpush1.msra.mxu0 %v2956
    %3002 = vmatprep.subr.mxu0 %v2959
    %3003 = vmatpush1.msra.mxu0 %v2958
    %3004 = vmatprep.subr.mxu0 %v2961
    %3005 = vmatpush1.msra.mxu0 %v2960
    %3006 = vmatprep.subr.mxu0 %v2963
    %3007 = vmatpush1.msra.mxu0 %v2962
    %3008 = vmatprep.subr.mxu0 %v2965
    %3009 = vmatpush1.msra.mxu0 %v2964
    %3010 = vmatprep.subr.mxu0 %v2967
    %3011 = vmatpush1.msra.mxu0 %v2966
    %3012 = vmatprep.subr.mxu0 %v2969
    %3013 = vmatpush1.msra.mxu0 %v2968
    %3014 = vmatprep.subr.mxu0 %v2971
    %3015 = vmatpush1.msra.mxu0 %v2970
    %3016 = vmatprep.subr.mxu0 %v2973
    %3017 = vmatpush1.msra.mxu0 %v2972
    %3018 = vmatprep.subr.mxu0 %v2975
    %3019 = vmatpush1.msra.mxu0 %v2974
    %3020 = vmatprep.subr.mxu0 %v2977
    %3021 = vmatpush1.msra.mxu0 %v2976
    %3022 = vmatprep.subr.mxu0 %v2979
    %3023 = vmatpush1.msra.mxu0 %v2978
    %3024 = vmatprep.subr.mxu0 0.0
    %3025 = vmatpush1.msra.mxu0 0.0
    %3026 = vmatprep.subr.mxu0 0.0
    %3027 = vmatpush1.msra.mxu0 0.0
    %3028 = vmatprep.subr.mxu0 0.0
    %3029 = vmatpush1.msra.mxu0 0.0
    %3030 = vmatprep.subr.mxu0 0.0
    %3031 = vmatpush1.msra.mxu0 0.0
    %3032 = vmatprep.subr.mxu0 0.0
    %3033 = vmatpush1.msra.mxu0 0.0
    %3034 = vmatprep.subr.mxu0 0.0
    %3035 = vmatpush1.msra.mxu0 0.0
    %3036 = vmatprep.subr.mxu0 0.0
    %3037 = vmatpush1.msra.mxu0 0.0
    %3038 = vmatprep.subr.mxu0 0.0
    %3039 = vmatpush1.msra.mxu0 0.0
    %3040 = vmatprep.subr.mxu0 0.0
    %3041 = vmatpush1.msra.mxu0 0.0
    %3042 = vmatprep.subr.mxu0 0.0
    %3043 = vmatpush1.msra.mxu0 0.0
    %3044 = vmatprep.subr.mxu0 0.0
    %3045 = vmatpush1.msra.mxu0 0.0
    %3046 = vmatprep.subr.mxu0 0.0
    %3047 = vmatpush1.msra.mxu0 0.0
    %3048 = vmatprep.subr.mxu0 0.0
    %3049 = vmatpush1.msra.mxu0 0.0
    %3050 = vmatprep.subr.mxu0 0.0
    %3051 = vmatpush1.msra.mxu0 0.0
    %3052 = vmatprep.subr.mxu0 0.0
    %3053 = vmatpush1.msra.mxu0 0.0
    %3054 = vmatprep.subr.mxu0 0.0
    %3055 = vmatpush1.msra.mxu0 0.0
    %3056 = vmatprep.mubr.f32.mxu0 0.0
    %3057 = vmatmul.mubr.f32.gmra.mrb[0].mxu0 %v2946
    %v3058 = vpop.f32.mrb[0].mxu0
    %v3059 = vadd.f32 %v2985, %v3058
    %v3060 = vpop.f32.mrb[0].mxu0
    %v3061 = vadd.f32 %v2989, %v3060
    %3062 = vmatprep.mubr.f32.mxu0 0.0
    %3063 = vmatmul.mubr.f32.gmra.mrb[0].mxu0 %v2947
    %v3064 = vpop.f32.mrb[0].mxu0
    %v3065 = vadd.f32 %v2985, %v3064
    %v3066 = vpop.f32.mrb[0].mxu0
    %v3067 = vadd.f32 %v2989, %v3066
    %3068 = vdwg.mxu0
    %v3069 = vmax.f32 %v3059, %v3061
    %v3070 = vmax.f32 %v3065, %v3067
    %v3071 = vsub.f32 %v3059, %v3069
    %v3072 = vsub.f32 %v3065, %v3070
    %v3073 = vmul.f32 %v3071, 1.442695
    %v3074 = vpow.pop %v3073
    %v3075 = vmul.f32 %v3072, 1.442695
    %v3076 = vpow.pop %v3075
    %v3077 = vsub.f32 %v3061, %v3069
    %v3078 = vsub.f32 %v3067, %v3070
    %v3079 = vmul.f32 %v3077, 1.442695
    %v3080 = vpow.pop %v3079
    %v3081 = vmul.f32 %v3078, 1.442695
    %v3082 = vpow.pop %v3081
    %v3083 = vadd.f32 %v3074, %v3080
    %v3084 = vadd.f32 %v3076, %v3082
    %v3085 = vlog2.pop %v3083
    %v3086 = vmul.f32 %v3085, 0.6931472
    %v3087 = vlog2.pop %v3084
    %v3088 = vmul.f32 %v3087, 0.6931472
    %v3089 = vadd.f32 %v3069, %v3086
    %v3090 = vadd.f32 %v3070, %v3088
    %v3091 = vsub.f32 %v3059, %v3089
    %v3092 = vsub.f32 %v3065, %v3090
    %3093 = vst [vmem:[#allocation10] sm:$0xff] %v3091
    %3094 = vst [vmem:[#allocation10 + $0x10] sm:$0xff] %v3092
    %v3095 = vsub.f32 %v3061, %v3089
    %v3096 = vsub.f32 %v3067, %v3090
    %3097 = vst [vmem:[#allocation10 + $0x8] sm:$0xff] %v3095
    %3098 = vst [vmem:[#allocation10 + $0x18] sm:$0xff] %v3096
    // Predicated region
    $region38: #{tpu_custom_call.1} parent=1 // pred_check
      _
    $region39: #{tpu_custom_call.1} parent=1 // pred_check_branch
      %3100 = sbr.rel (0) target = $region41
    $region40: #{tpu_custom_call.1} parent=1 // pred_region
      %s3102 = ssub.s32 512, 512
      %3103 = vsyncadd [#allocation4], %s3102
      %s3104 = sshll.u32 [#allocation10], 4
      %s3105 = int_to_ptr.vmem [resolvable:$true] %s3104
      %3110 = dma.vmem_to_hbm [thread:$0]  %s3105, 512, %s5, [#allocation4], 256, 256, 16
    $region41: #{tpu_custom_call.1} parent=1 // pred_fallthru
      _
    // Predicated region
    $region42: #{tpu_custom_call.1} parent=1 // pred_check
      _
    $region43: #{tpu_custom_call.1} parent=1 // pred_check_branch
      %3112 = sbr.rel (0) target = $region45
    $region44: #{tpu_custom_call.1} parent=1 // pred_region
      %3113 = dma.done [#allocation4], 512
    $region45: #{tpu_custom_call.1} parent=1 // pred_fallthru
      _
    %3114 = vsyncpa [#allocation3], 1
    %3115 = vsyncpa [#allocation6], 1
    %3116 = vsyncpa [#allocation9], 1
    %3117 = vsyncpa [#allocation4], 1

</llo_original>
